<compile_context>
chip_gen: v6e
topology: v6e:2x2x1
jax: 0.10.0
libtpu: 0.0.40
codegen_flags: <defaults>
</compile_context>

<pallas_src>
import functools

import jax
import jax.numpy as jnp
from jax.experimental import pallas as pl
from jax.experimental.pallas import tpu as pltpu


# ----------------------------- fully fused kernel ---------------------------------------------

def _bilstm_fused_kernel(*refs, seq_len, batch_p, hidden, num_layers):
    """refs = [x, (wih, whh, bias) * num_layers, w_fc, b_fc, w_out, b_out, y_out]."""
    x_ref = refs[0]
    layer_refs = refs[1:1 + 3 * num_layers]
    wfc_ref, bfc_ref, wout_ref, bout_ref = refs[1 + 3 * num_layers: 5 + 3 * num_layers]
    y_ref = refs[5 + 3 * num_layers]

    T, Bp, H = seq_len, batch_p, hidden
    H2 = 2 * H           # fused (fwd | bwd) hidden width
    G = 8 * H            # fused gate width: [i_f,i_b, f_f,f_b, o_f,o_b, g_f,g_b], H lanes each

    # Lane mask (built once): within every 2H-wide gate block the first H lanes belong to the
    # forward direction (consume x[t]); the last H lanes to the backward one (consume x[T-1-t]).
    fwd_lane = (jax.lax.broadcasted_iota(jnp.int32, (T * Bp, G), 1) % H2) < H

    def lstm_layer(x_in, wih, bias, whh, collect_seq):
        # (1) Hoisted input projection for all T steps and both directions: one lane-dense
        #     MXU matmul, off the recurrent critical path.
        gx = jnp.dot(x_in, wih, preferred_element_type=jnp.float32) + bias        # (T*Bp, G)
        # (2) Hoisted fwd/bwd input selection (one reversed copy + one big select, off the
        #     critical path) so the per-step body has no VPU select / extra slices.
        gx_rev = jnp.concatenate(
            [gx[(T - 1 - t) * Bp:(T - t) * Bp, :] for t in range(T)], axis=0)
        gin_all = jnp.where(fwd_lane, gx, gx_rev)                                  # (T*Bp, G)

        # (3) Recurrence, fully unrolled; h/c for both directions carried as register values,
        #     one (Bp,2H)x(2H,8H) block-diagonal matmul per step covers both directions.
        h = jnp.zeros((Bp, H2), jnp.float32)
        c = jnp.zeros((Bp, H2), jnp.float32)
        h_steps = [None] * T
        for t in range(T):
            gates = gin_all[t * Bp:(t + 1) * Bp, :] + jnp.dot(
                h, whh, preferred_element_type=jnp.float32)                        # (Bp, G)
            sg = jax.nn.sigmoid(gates[:, 0:3 * H2])   # contiguous i|f|o -> one EUP push
            g_g = jnp.tanh(gates[:, 3 * H2:4 * H2])   # tanh gate       -> one EUP push
            c = sg[:, H2:2 * H2] * c + sg[:, 0:H2] * g_g
            h = sg[:, 2 * H2:3 * H2] * jnp.tanh(c)
            h_steps[t] = h

        if collect_seq:
            # sequence position p output = [fwd h at step p | bwd h at step T-1-p]
            rows = [jnp.concatenate([h_steps[t][:, 0:H], h_steps[T - 1 - t][:, H:H2]], axis=-1)
                    for t in range(T)]
            return jnp.concatenate(rows, axis=0)                                   # (T*Bp, 2H)
        # last layer: only out[:, -1, :] is needed by the head
        return jnp.concatenate([h_steps[T - 1][:, 0:H], h_steps[0][:, H:H2]], axis=-1)  # (Bp,2H)

    seq = x_ref[...]
    last = None
    for li in range(num_layers):
        wih_ref, whh_ref, b_ref = layer_refs[3 * li: 3 * li + 3]
        is_last = li == num_layers - 1
        res = lstm_layer(seq, wih_ref[...], b_ref[...], whh_ref[...], collect_seq=not is_last)
        if is_last:
            last = res
        else:
            seq = res

    # (4) Fused head: fc -> relu -> dropout(identity) -> fc_out, padded to 128 output lanes
    #     so the single final store is unmasked / lane-dense.
    hid = jnp.dot(last, wfc_ref[...], preferred_element_type=jnp.float32) + bfc_ref[...]
    hid = jnp.maximum(hid, 0.0)
    # TODO(synk): Dropout(p=0.2) is identity at inference; training mode would need
    # pltpu.prng_seed / pltpu.prng_random_bits masking here.
    y_ref[...] = jnp.dot(hid, wout_ref[...], preferred_element_type=jnp.float32) + bout_ref[...]


# ----------------------------- parameters -----------------------------------------------------

def init_params(key, input_size, hidden_size, num_layers, output_size):
    """PyTorch-layout parameters with uniform(-1/sqrt(H), 1/sqrt(H)) init."""
    params = {"lstm": []}
    k = 1.0 / float(jnp.sqrt(hidden_size))
    keys = jax.random.split(key, num_layers * 2 * 4 + 4)
    idx = 0
    for layer in range(num_layers):
        in_dim = input_size if layer == 0 else 2 * hidden_size
        layer_params = []
        for _direction in range(2):
            w_ih = jax.random.uniform(keys[idx], (4 * hidden_size, in_dim),
                                      minval=-k, maxval=k, dtype=jnp.float32); idx += 1
            w_hh = jax.random.uniform(keys[idx], (4 * hidden_size, hidden_size),
                                      minval=-k, maxval=k, dtype=jnp.float32); idx += 1
            b_ih = jax.random.uniform(keys[idx], (4 * hidden_size,),
                                      minval=-k, maxval=k, dtype=jnp.float32); idx += 1
            b_hh = jax.random.uniform(keys[idx], (4 * hidden_size,),
                                      minval=-k, maxval=k, dtype=jnp.float32); idx += 1
            layer_params.append((w_ih, w_hh, b_ih, b_hh))
        params["lstm"].append(layer_params)
    kf = 1.0 / float(jnp.sqrt(2 * hidden_size))
    params["fc_w"] = jax.random.uniform(keys[idx], (128, 2 * hidden_size),
                                        minval=-kf, maxval=kf, dtype=jnp.float32); idx += 1
    params["fc_b"] = jax.random.uniform(keys[idx], (128,),
                                        minval=-kf, maxval=kf, dtype=jnp.float32); idx += 1
    ko = 1.0 / float(jnp.sqrt(128.0))
    params["out_w"] = jax.random.uniform(keys[idx], (output_size, 128),
                                         minval=-ko, maxval=ko, dtype=jnp.float32); idx += 1
    params["out_b"] = jax.random.uniform(keys[idx], (output_size,),
                                         minval=-ko, maxval=ko, dtype=jnp.float32); idx += 1
    return params


def prepare_params(params, hidden_size, output_size):
    """Pre-transpose / pre-combine weights ONCE into the fused-kernel layout.

    Gate layout along the 8H axis (sigmoid gates contiguous, tanh gate last):
        [i_f, i_b, f_f, f_b, o_f, o_b, g_f, g_b], H lanes each.
    W_hh is block-diagonal over (fwd rows 0:H, bwd rows H:2H) so a single (B,2H)x(2H,8H)
    matmul computes both directions' recurrent contributions.
    The head's output weight is zero-padded to 128 lanes for an unmasked final store.
    """
    H = hidden_size
    gate_order = (0, 1, 3, 2)  # PyTorch blocks are [i, f, g, o]; we want [i, f, o, g]
    layers = []
    for (fwd, bwd) in params["lstm"]:
        w_ih_f, w_hh_f, b_ih_f, b_hh_f = fwd
        w_ih_b, w_hh_b, b_ih_b, b_hh_b = bwd
        bf = b_ih_f + b_hh_f
        bb = b_ih_b + b_hh_b
        wih_cols, b_cols = [], []
        whh = jnp.zeros((2 * H, 8 * H), jnp.float32)
        for blk, k in enumerate(gate_order):
            wih_cols.append(jnp.transpose(w_ih_f[k * H:(k + 1) * H, :]))   # (Din, H)
            wih_cols.append(jnp.transpose(w_ih_b[k * H:(k + 1) * H, :]))
            b_cols.append(bf[k * H:(k + 1) * H])
            b_cols.append(bb[k * H:(k + 1) * H])
            whh = whh.at[0:H, 2 * H * blk:2 * H * blk + H].set(
                jnp.transpose(w_hh_f[k * H:(k + 1) * H, :]))
            whh = whh.at[H:2 * H, 2 * H * blk + H:2 * H * (blk + 1)].set(
                jnp.transpose(w_hh_b[k * H:(k + 1) * H, :]))
        wih = jnp.concatenate(wih_cols, axis=1)                 # (Din, 8H)
        bias = jnp.concatenate(b_cols).reshape(1, 8 * H)        # (1, 8H)
        layers.append((wih, whh, bias))

    O = output_size
    O_pad = ((O + 127) // 128) * 128 if O > 128 else 128
    wfc = jnp.transpose(params["fc_w"])                         # (2H, 128)
    bfc = params["fc_b"].reshape(1, -1)                         # (1, 128)
    wout = jnp.zeros((128, O_pad), jnp.float32).at[:, :O].set(jnp.transpose(params["out_w"]))
    bout = jnp.zeros((1, O_pad), jnp.float32).at[:, :O].set(params["out_b"].reshape(1, -1))
    return {"layers": layers, "head": (wfc, bfc, wout, bout),
            "hidden": H, "out_dim": O}


# ----------------------------- full forward ---------------------------------------------------

def bilstm_forward(prep, x_btd):
    """x_btd: (B, T, D) batch-first (PyTorch batch_first=True); h0 = c0 = 0."""
    B, T, D = x_btd.shape
    Bp = ((B + 7) // 8) * 8                      # pad batch to one full sublane group
    Bp = max(Bp, 8)
    x = jnp.transpose(x_btd, (1, 0, 2)).astype(jnp.float32)     # (T, B, D) time-major
    if Bp != B:
        x = jnp.pad(x, ((0, 0), (0, Bp - B), (0, 0)))
    x = x.reshape(T * Bp, D)

    num_layers = len(prep["layers"])
    wfc, bfc, wout, bout = prep["head"]
    O_pad = wout.shape[1]

    inputs = [x]
    for (wih, whh, bias) in prep["layers"]:
        inputs += [wih, whh, bias]
    inputs += [wfc, bfc, wout, bout]

    in_specs = [pl.BlockSpec(a.shape, lambda i: (0, 0)) for a in inputs]

    kernel = functools.partial(_bilstm_fused_kernel, seq_len=T, batch_p=Bp,
                               hidden=prep["hidden"], num_layers=num_layers)
    y = pl.pallas_call(
        kernel,
        out_shape=jax.ShapeDtypeStruct((Bp, O_pad), jnp.float32),
        grid=(1,),
        in_specs=in_specs,
        out_specs=pl.BlockSpec((Bp, O_pad), lambda i: (0, 0)),
        compiler_params=pltpu.CompilerParams(dimension_semantics=("arbitrary",)),
    )(*inputs)

    return y[:B, :prep["out_dim"]]


# ----------------------------- pure-JAX reference (correctness check) -------------------------

def bilstm_reference(params, x_btd, hidden, num_layers):
    B, T, _ = x_btd.shape
    seq = x_btd.astype(jnp.float32)
    for layer in range(num_layers):
        dir_outs = []
        for direction in range(2):
            w_ih, w_hh, b_ih, b_hh = params["lstm"][layer][direction]
            h = jnp.zeros((B, hidden), jnp.float32)
            c = jnp.zeros((B, hidden), jnp.float32)
            hs = [None] * T
            order = range(T) if direction == 0 else range(T - 1, -1, -1)
            for t in order:
                g = seq[:, t, :] @ w_ih.T + b_ih + h @ w_hh.T + b_hh
                i = jax.nn.sigmoid(g[:, 0:hidden])
                f = jax.nn.sigmoid(g[:, hidden:2 * hidden])
                gg = jnp.tanh(g[:, 2 * hidden:3 * hidden])
                o = jax.nn.sigmoid(g[:, 3 * hidden:4 * hidden])
                c = f * c + i * gg
                h = o * jnp.tanh(c)
                hs[t] = h
            dir_outs.append(jnp.stack(hs, axis=1))       # (B, T, H)
        seq = jnp.concatenate(dir_outs, axis=-1)         # (B, T, 2H)
    last = seq[:, -1, :]
    hid = jnp.maximum(last @ params["fc_w"].T + params["fc_b"], 0.0)
    return hid @ params["out_w"].T + params["out_b"]


if __name__ == "__main__":
    B, T, D, H, L, O = 2, 8, 16, 32, 2, 4
    key = jax.random.PRNGKey(0)
    kp, kx = jax.random.split(key)
    params = init_params(kp, D, H, L, O)
    prep = prepare_params(params, H, O)        # combine/transpose/pad weights once
    x = jax.random.normal(kx, (B, T, D), dtype=jnp.float32)

    y = bilstm_forward(prep, x)
    jax.block_until_ready(y)
    assert y.shape == (B, O), y.shape

    y_ref = bilstm_reference(params, x, H, L)
    max_err = float(jnp.max(jnp.abs(y - y_ref)))
    assert jnp.allclose(y, y_ref, atol=1e-4, rtol=1e-4), f"max |err| = {max_err}"

    print("KERNEL_OK")
</pallas_src>

<mosaic_0001>
module attributes {stable_mosaic.version = 11 : i64} {
  func.func @_bilstm_fused_kernel(%arg0: i32, %arg1: memref<64x16xf32, #tpu.memory_space<vmem>>, %arg2: memref<16x256xf32, #tpu.memory_space<vmem>>, %arg3: memref<64x256xf32, #tpu.memory_space<vmem>>, %arg4: memref<1x256xf32, #tpu.memory_space<vmem>>, %arg5: memref<64x256xf32, #tpu.memory_space<vmem>>, %arg6: memref<64x256xf32, #tpu.memory_space<vmem>>, %arg7: memref<1x256xf32, #tpu.memory_space<vmem>>, %arg8: memref<64x128xf32, #tpu.memory_space<vmem>>, %arg9: memref<1x128xf32, #tpu.memory_space<vmem>>, %arg10: memref<128x128xf32, #tpu.memory_space<vmem>>, %arg11: memref<1x128xf32, #tpu.memory_space<vmem>>, %arg12: memref<8x128xf32, #tpu.memory_space<vmem>>) attributes {dimension_semantics = [#tpu.dimension_semantics<arbitrary>], iteration_bounds = array<i64: 1>, scalar_prefetch = 0 : i64, scratch_operands = 0 : i64, tpu.core_type = #tpu.core_type<tc>, window_params = [{pipeline_mode = #tpu.pipeline_mode<synchronous>, transform_indices = @transform_0, window_bounds = array<i64: 64, 16>}, {pipeline_mode = #tpu.pipeline_mode<synchronous>, transform_indices = @transform_1, window_bounds = array<i64: 16, 256>}, {pipeline_mode = #tpu.pipeline_mode<synchronous>, transform_indices = @transform_2, window_bounds = array<i64: 64, 256>}, {pipeline_mode = #tpu.pipeline_mode<synchronous>, transform_indices = @transform_3, window_bounds = array<i64: 1, 256>}, {pipeline_mode = #tpu.pipeline_mode<synchronous>, transform_indices = @transform_4, window_bounds = array<i64: 64, 256>}, {pipeline_mode = #tpu.pipeline_mode<synchronous>, transform_indices = @transform_5, window_bounds = array<i64: 64, 256>}, {pipeline_mode = #tpu.pipeline_mode<synchronous>, transform_indices = @transform_6, window_bounds = array<i64: 1, 256>}, {pipeline_mode = #tpu.pipeline_mode<synchronous>, transform_indices = @transform_7, window_bounds = array<i64: 64, 128>}, {pipeline_mode = #tpu.pipeline_mode<synchronous>, transform_indices = @transform_8, window_bounds = array<i64: 1, 128>}, {pipeline_mode = #tpu.pipeline_mode<synchronous>, transform_indices = @transform_9, window_bounds = array<i64: 128, 128>}, {pipeline_mode = #tpu.pipeline_mode<synchronous>, transform_indices = @transform_10, window_bounds = array<i64: 1, 128>}, {pipeline_mode = #tpu.pipeline_mode<synchronous>, transform_indices = @transform_11, window_bounds = array<i64: 8, 128>}]} {
    %0 = tpu.iota {dimensions = array<i32: 1>} : vector<64x256xi32>
    %c64_i32 = arith.constant 64 : i32
    %c0_i32 = arith.constant 0 : i32
    %1 = arith.cmpi eq, %c64_i32, %c0_i32 : i32
    %c1_i32 = arith.constant 1 : i32
    %2 = arith.select %1, %c1_i32, %c64_i32 : i32
    %3 = vector.broadcast %2 : i32 to vector<64x256xi32>
    %4 = arith.remsi %0, %3 : vector<64x256xi32>
    %c0_i32_0 = arith.constant 0 : i32
    %5 = vector.broadcast %c0_i32_0 : i32 to vector<64x256xi32>
    %6 = arith.cmpi ne, %4, %5 : vector<64x256xi32>
    %c0_i32_1 = arith.constant 0 : i32
    %7 = vector.broadcast %c0_i32_1 : i32 to vector<64x256xi32>
    %8 = arith.cmpi slt, %4, %7 : vector<64x256xi32>
    %c0_i32_2 = arith.constant 0 : i32
    %9 = arith.cmpi slt, %2, %c0_i32_2 : i32
    %10 = vector.broadcast %9 : i1 to vector<64x256xi1>
    %11 = vector.broadcast %10 : vector<64x256xi1> to vector<64x256xi1>
    %12 = arith.xori %8, %11 : vector<64x256xi1>
    %13 = arith.andi %12, %6 : vector<64x256xi1>
    %14 = vector.broadcast %2 : i32 to vector<64x256xi32>
    %15 = arith.addi %4, %14 : vector<64x256xi32>
    %16 = arith.select %13, %15, %4 : vector<64x256xi1>, vector<64x256xi32>
    %c32_i32 = arith.constant 32 : i32
    %17 = vector.broadcast %c32_i32 : i32 to vector<64x256xi32>
    %18 = arith.cmpi slt, %16, %17 : vector<64x256xi32>
    %c0 = arith.constant 0 : index
    %c0_3 = arith.constant 0 : index
    %19 = vector.load %arg1[%c0, %c0_3] : memref<64x16xf32, #tpu.memory_space<vmem>>, vector<64x16xf32>
    %c0_4 = arith.constant 0 : index
    %c0_5 = arith.constant 0 : index
    %20 = vector.load %arg2[%c0_4, %c0_5] : memref<16x256xf32, #tpu.memory_space<vmem>>, vector<16x256xf32>
    %c0_6 = arith.constant 0 : index
    %c0_7 = arith.constant 0 : index
    %21 = vector.load %arg4[%c0_6, %c0_7] : memref<1x256xf32, #tpu.memory_space<vmem>>, vector<1x256xf32>
    %c0_8 = arith.constant 0 : index
    %c0_9 = arith.constant 0 : index
    %22 = vector.load %arg3[%c0_8, %c0_9] : memref<64x256xf32, #tpu.memory_space<vmem>>, vector<64x256xf32>
    %cst = arith.constant dense<0.000000e+00> : vector<64x256xf32>
    %23 = tpu.matmul %19, %20, %cst {dimension_numbers = #tpu.dot_dimension_numbers<[1], [0], [0], [1], [0, 0, 1, 1], [], []>} : vector<64x16xf32>, vector<16x256xf32>, vector<64x256xf32> -> vector<64x256xf32>
    %24 = vector.broadcast %21 : vector<1x256xf32> to vector<64x256xf32>
    %25 = arith.addf %23, %24 : vector<64x256xf32>
    %26 = vector.extract_strided_slice %25 {offsets = [56, 0], sizes = [8, 256], strides = [1, 1]} : vector<64x256xf32> to vector<8x256xf32>
    %27 = vector.extract_strided_slice %25 {offsets = [48, 0], sizes = [8, 256], strides = [1, 1]} : vector<64x256xf32> to vector<8x256xf32>
    %28 = vector.extract_strided_slice %25 {offsets = [40, 0], sizes = [8, 256], strides = [1, 1]} : vector<64x256xf32> to vector<8x256xf32>
    %29 = vector.extract_strided_slice %25 {offsets = [32, 0], sizes = [8, 256], strides = [1, 1]} : vector<64x256xf32> to vector<8x256xf32>
    %30 = vector.extract_strided_slice %25 {offsets = [24, 0], sizes = [8, 256], strides = [1, 1]} : vector<64x256xf32> to vector<8x256xf32>
    %31 = vector.extract_strided_slice %25 {offsets = [16, 0], sizes = [8, 256], strides = [1, 1]} : vector<64x256xf32> to vector<8x256xf32>
    %32 = vector.extract_strided_slice %25 {offsets = [8, 0], sizes = [8, 256], strides = [1, 1]} : vector<64x256xf32> to vector<8x256xf32>
    %33 = vector.extract_strided_slice %25 {offsets = [0, 0], sizes = [8, 256], strides = [1, 1]} : vector<64x256xf32> to vector<8x256xf32>
    %34 = tpu.concatenate %26, %27, %28, %29, %30, %31, %32, %33 in 0 : vector<8x256xf32>, vector<8x256xf32>, vector<8x256xf32>, vector<8x256xf32>, vector<8x256xf32>, vector<8x256xf32>, vector<8x256xf32>, vector<8x256xf32> -> vector<64x256xf32>
    %35 = arith.select %18, %25, %34 : vector<64x256xi1>, vector<64x256xf32>
    %cst_10 = arith.constant 0.000000e+00 : f32
    %36 = vector.broadcast %cst_10 : f32 to vector<8x64xf32>
    %cst_11 = arith.constant 0.000000e+00 : f32
    %37 = vector.broadcast %cst_11 : f32 to vector<8x64xf32>
    %38 = vector.extract_strided_slice %35 {offsets = [0, 0], sizes = [8, 256], strides = [1, 1]} : vector<64x256xf32> to vector<8x256xf32>
    %cst_12 = arith.constant dense<0.000000e+00> : vector<8x256xf32>
    %39 = tpu.matmul %36, %22, %cst_12 {dimension_numbers = #tpu.dot_dimension_numbers<[1], [0], [0], [1], [0, 0, 1, 1], [], []>} : vector<8x64xf32>, vector<64x256xf32>, vector<8x256xf32> -> vector<8x256xf32>
    %40 = arith.addf %38, %39 : vector<8x256xf32>
    %41 = vector.extract_strided_slice %40 {offsets = [0, 0], sizes = [8, 192], strides = [1, 1]} : vector<8x256xf32> to vector<8x192xf32>
    %42 = arith.negf %41 : vector<8x192xf32>
    %43 = math.exp %42 : vector<8x192xf32>
    %cst_13 = arith.constant 1.000000e+00 : f32
    %44 = vector.broadcast %cst_13 : f32 to vector<8x192xf32>
    %45 = arith.addf %44, %43 : vector<8x192xf32>
    %46 = arith.divf %44, %45 : vector<8x192xf32>
    %47 = vector.extract_strided_slice %40 {offsets = [0, 192], sizes = [8, 64], strides = [1, 1]} : vector<8x256xf32> to vector<8x64xf32>
    %48 = math.tanh %47 : vector<8x64xf32>
    %49 = vector.extract_strided_slice %46 {offsets = [0, 64], sizes = [8, 64], strides = [1, 1]} : vector<8x192xf32> to vector<8x64xf32>
    %50 = arith.mulf %49, %37 : vector<8x64xf32>
    %51 = vector.extract_strided_slice %46 {offsets = [0, 0], sizes = [8, 64], strides = [1, 1]} : vector<8x192xf32> to vector<8x64xf32>
    %52 = arith.mulf %51, %48 : vector<8x64xf32>
    %53 = arith.addf %50, %52 : vector<8x64xf32>
    %54 = vector.extract_strided_slice %46 {offsets = [0, 128], sizes = [8, 64], strides = [1, 1]} : vector<8x192xf32> to vector<8x64xf32>
    %55 = math.tanh %53 : vector<8x64xf32>
    %56 = arith.mulf %54, %55 : vector<8x64xf32>
    %57 = vector.extract_strided_slice %35 {offsets = [8, 0], sizes = [8, 256], strides = [1, 1]} : vector<64x256xf32> to vector<8x256xf32>
    %cst_14 = arith.constant dense<0.000000e+00> : vector<8x256xf32>
    %58 = tpu.matmul %56, %22, %cst_14 {dimension_numbers = #tpu.dot_dimension_numbers<[1], [0], [0], [1], [0, 0, 1, 1], [], []>} : vector<8x64xf32>, vector<64x256xf32>, vector<8x256xf32> -> vector<8x256xf32>
    %59 = arith.addf %57, %58 : vector<8x256xf32>
    %60 = vector.extract_strided_slice %59 {offsets = [0, 0], sizes = [8, 192], strides = [1, 1]} : vector<8x256xf32> to vector<8x192xf32>
    %61 = arith.negf %60 : vector<8x192xf32>
    %62 = math.exp %61 : vector<8x192xf32>
    %cst_15 = arith.constant 1.000000e+00 : f32
    %63 = vector.broadcast %cst_15 : f32 to vector<8x192xf32>
    %64 = arith.addf %63, %62 : vector<8x192xf32>
    %65 = arith.divf %63, %64 : vector<8x192xf32>
    %66 = vector.extract_strided_slice %59 {offsets = [0, 192], sizes = [8, 64], strides = [1, 1]} : vector<8x256xf32> to vector<8x64xf32>
    %67 = math.tanh %66 : vector<8x64xf32>
    %68 = vector.extract_strided_slice %65 {offsets = [0, 64], sizes = [8, 64], strides = [1, 1]} : vector<8x192xf32> to vector<8x64xf32>
    %69 = arith.mulf %68, %53 : vector<8x64xf32>
    %70 = vector.extract_strided_slice %65 {offsets = [0, 0], sizes = [8, 64], strides = [1, 1]} : vector<8x192xf32> to vector<8x64xf32>
    %71 = arith.mulf %70, %67 : vector<8x64xf32>
    %72 = arith.addf %69, %71 : vector<8x64xf32>
    %73 = vector.extract_strided_slice %65 {offsets = [0, 128], sizes = [8, 64], strides = [1, 1]} : vector<8x192xf32> to vector<8x64xf32>
    %74 = math.tanh %72 : vector<8x64xf32>
    %75 = arith.mulf %73, %74 : vector<8x64xf32>
    %76 = vector.extract_strided_slice %35 {offsets = [16, 0], sizes = [8, 256], strides = [1, 1]} : vector<64x256xf32> to vector<8x256xf32>
    %cst_16 = arith.constant dense<0.000000e+00> : vector<8x256xf32>
    %77 = tpu.matmul %75, %22, %cst_16 {dimension_numbers = #tpu.dot_dimension_numbers<[1], [0], [0], [1], [0, 0, 1, 1], [], []>} : vector<8x64xf32>, vector<64x256xf32>, vector<8x256xf32> -> vector<8x256xf32>
    %78 = arith.addf %76, %77 : vector<8x256xf32>
    %79 = vector.extract_strided_slice %78 {offsets = [0, 0], sizes = [8, 192], strides = [1, 1]} : vector<8x256xf32> to vector<8x192xf32>
    %80 = arith.negf %79 : vector<8x192xf32>
    %81 = math.exp %80 : vector<8x192xf32>
    %cst_17 = arith.constant 1.000000e+00 : f32
    %82 = vector.broadcast %cst_17 : f32 to vector<8x192xf32>
    %83 = arith.addf %82, %81 : vector<8x192xf32>
    %84 = arith.divf %82, %83 : vector<8x192xf32>
    %85 = vector.extract_strided_slice %78 {offsets = [0, 192], sizes = [8, 64], strides = [1, 1]} : vector<8x256xf32> to vector<8x64xf32>
    %86 = math.tanh %85 : vector<8x64xf32>
    %87 = vector.extract_strided_slice %84 {offsets = [0, 64], sizes = [8, 64], strides = [1, 1]} : vector<8x192xf32> to vector<8x64xf32>
    %88 = arith.mulf %87, %72 : vector<8x64xf32>
    %89 = vector.extract_strided_slice %84 {offsets = [0, 0], sizes = [8, 64], strides = [1, 1]} : vector<8x192xf32> to vector<8x64xf32>
    %90 = arith.mulf %89, %86 : vector<8x64xf32>
    %91 = arith.addf %88, %90 : vector<8x64xf32>
    %92 = vector.extract_strided_slice %84 {offsets = [0, 128], sizes = [8, 64], strides = [1, 1]} : vector<8x192xf32> to vector<8x64xf32>
    %93 = math.tanh %91 : vector<8x64xf32>
    %94 = arith.mulf %92, %93 : vector<8x64xf32>
    %95 = vector.extract_strided_slice %35 {offsets = [24, 0], sizes = [8, 256], strides = [1, 1]} : vector<64x256xf32> to vector<8x256xf32>
    %cst_18 = arith.constant dense<0.000000e+00> : vector<8x256xf32>
    %96 = tpu.matmul %94, %22, %cst_18 {dimension_numbers = #tpu.dot_dimension_numbers<[1], [0], [0], [1], [0, 0, 1, 1], [], []>} : vector<8x64xf32>, vector<64x256xf32>, vector<8x256xf32> -> vector<8x256xf32>
    %97 = arith.addf %95, %96 : vector<8x256xf32>
    %98 = vector.extract_strided_slice %97 {offsets = [0, 0], sizes = [8, 192], strides = [1, 1]} : vector<8x256xf32> to vector<8x192xf32>
    %99 = arith.negf %98 : vector<8x192xf32>
    %100 = math.exp %99 : vector<8x192xf32>
    %cst_19 = arith.constant 1.000000e+00 : f32
    %101 = vector.broadcast %cst_19 : f32 to vector<8x192xf32>
    %102 = arith.addf %101, %100 : vector<8x192xf32>
    %103 = arith.divf %101, %102 : vector<8x192xf32>
    %104 = vector.extract_strided_slice %97 {offsets = [0, 192], sizes = [8, 64], strides = [1, 1]} : vector<8x256xf32> to vector<8x64xf32>
    %105 = math.tanh %104 : vector<8x64xf32>
    %106 = vector.extract_strided_slice %103 {offsets = [0, 64], sizes = [8, 64], strides = [1, 1]} : vector<8x192xf32> to vector<8x64xf32>
    %107 = arith.mulf %106, %91 : vector<8x64xf32>
    %108 = vector.extract_strided_slice %103 {offsets = [0, 0], sizes = [8, 64], strides = [1, 1]} : vector<8x192xf32> to vector<8x64xf32>
    %109 = arith.mulf %108, %105 : vector<8x64xf32>
    %110 = arith.addf %107, %109 : vector<8x64xf32>
    %111 = vector.extract_strided_slice %103 {offsets = [0, 128], sizes = [8, 64], strides = [1, 1]} : vector<8x192xf32> to vector<8x64xf32>
    %112 = math.tanh %110 : vector<8x64xf32>
    %113 = arith.mulf %111, %112 : vector<8x64xf32>
    %114 = vector.extract_strided_slice %35 {offsets = [32, 0], sizes = [8, 256], strides = [1, 1]} : vector<64x256xf32> to vector<8x256xf32>
    %cst_20 = arith.constant dense<0.000000e+00> : vector<8x256xf32>
    %115 = tpu.matmul %113, %22, %cst_20 {dimension_numbers = #tpu.dot_dimension_numbers<[1], [0], [0], [1], [0, 0, 1, 1], [], []>} : vector<8x64xf32>, vector<64x256xf32>, vector<8x256xf32> -> vector<8x256xf32>
    %116 = arith.addf %114, %115 : vector<8x256xf32>
    %117 = vector.extract_strided_slice %116 {offsets = [0, 0], sizes = [8, 192], strides = [1, 1]} : vector<8x256xf32> to vector<8x192xf32>
    %118 = arith.negf %117 : vector<8x192xf32>
    %119 = math.exp %118 : vector<8x192xf32>
    %cst_21 = arith.constant 1.000000e+00 : f32
    %120 = vector.broadcast %cst_21 : f32 to vector<8x192xf32>
    %121 = arith.addf %120, %119 : vector<8x192xf32>
    %122 = arith.divf %120, %121 : vector<8x192xf32>
    %123 = vector.extract_strided_slice %116 {offsets = [0, 192], sizes = [8, 64], strides = [1, 1]} : vector<8x256xf32> to vector<8x64xf32>
    %124 = math.tanh %123 : vector<8x64xf32>
    %125 = vector.extract_strided_slice %122 {offsets = [0, 64], sizes = [8, 64], strides = [1, 1]} : vector<8x192xf32> to vector<8x64xf32>
    %126 = arith.mulf %125, %110 : vector<8x64xf32>
    %127 = vector.extract_strided_slice %122 {offsets = [0, 0], sizes = [8, 64], strides = [1, 1]} : vector<8x192xf32> to vector<8x64xf32>
    %128 = arith.mulf %127, %124 : vector<8x64xf32>
    %129 = arith.addf %126, %128 : vector<8x64xf32>
    %130 = vector.extract_strided_slice %122 {offsets = [0, 128], sizes = [8, 64], strides = [1, 1]} : vector<8x192xf32> to vector<8x64xf32>
    %131 = math.tanh %129 : vector<8x64xf32>
    %132 = arith.mulf %130, %131 : vector<8x64xf32>
    %133 = vector.extract_strided_slice %35 {offsets = [40, 0], sizes = [8, 256], strides = [1, 1]} : vector<64x256xf32> to vector<8x256xf32>
    %cst_22 = arith.constant dense<0.000000e+00> : vector<8x256xf32>
    %134 = tpu.matmul %132, %22, %cst_22 {dimension_numbers = #tpu.dot_dimension_numbers<[1], [0], [0], [1], [0, 0, 1, 1], [], []>} : vector<8x64xf32>, vector<64x256xf32>, vector<8x256xf32> -> vector<8x256xf32>
    %135 = arith.addf %133, %134 : vector<8x256xf32>
    %136 = vector.extract_strided_slice %135 {offsets = [0, 0], sizes = [8, 192], strides = [1, 1]} : vector<8x256xf32> to vector<8x192xf32>
    %137 = arith.negf %136 : vector<8x192xf32>
    %138 = math.exp %137 : vector<8x192xf32>
    %cst_23 = arith.constant 1.000000e+00 : f32
    %139 = vector.broadcast %cst_23 : f32 to vector<8x192xf32>
    %140 = arith.addf %139, %138 : vector<8x192xf32>
    %141 = arith.divf %139, %140 : vector<8x192xf32>
    %142 = vector.extract_strided_slice %135 {offsets = [0, 192], sizes = [8, 64], strides = [1, 1]} : vector<8x256xf32> to vector<8x64xf32>
    %143 = math.tanh %142 : vector<8x64xf32>
    %144 = vector.extract_strided_slice %141 {offsets = [0, 64], sizes = [8, 64], strides = [1, 1]} : vector<8x192xf32> to vector<8x64xf32>
    %145 = arith.mulf %144, %129 : vector<8x64xf32>
    %146 = vector.extract_strided_slice %141 {offsets = [0, 0], sizes = [8, 64], strides = [1, 1]} : vector<8x192xf32> to vector<8x64xf32>
    %147 = arith.mulf %146, %143 : vector<8x64xf32>
    %148 = arith.addf %145, %147 : vector<8x64xf32>
    %149 = vector.extract_strided_slice %141 {offsets = [0, 128], sizes = [8, 64], strides = [1, 1]} : vector<8x192xf32> to vector<8x64xf32>
    %150 = math.tanh %148 : vector<8x64xf32>
    %151 = arith.mulf %149, %150 : vector<8x64xf32>
    %152 = vector.extract_strided_slice %35 {offsets = [48, 0], sizes = [8, 256], strides = [1, 1]} : vector<64x256xf32> to vector<8x256xf32>
    %cst_24 = arith.constant dense<0.000000e+00> : vector<8x256xf32>
    %153 = tpu.matmul %151, %22, %cst_24 {dimension_numbers = #tpu.dot_dimension_numbers<[1], [0], [0], [1], [0, 0, 1, 1], [], []>} : vector<8x64xf32>, vector<64x256xf32>, vector<8x256xf32> -> vector<8x256xf32>
    %154 = arith.addf %152, %153 : vector<8x256xf32>
    %155 = vector.extract_strided_slice %154 {offsets = [0, 0], sizes = [8, 192], strides = [1, 1]} : vector<8x256xf32> to vector<8x192xf32>
    %156 = arith.negf %155 : vector<8x192xf32>
    %157 = math.exp %156 : vector<8x192xf32>
    %cst_25 = arith.constant 1.000000e+00 : f32
    %158 = vector.broadcast %cst_25 : f32 to vector<8x192xf32>
    %159 = arith.addf %158, %157 : vector<8x192xf32>
    %160 = arith.divf %158, %159 : vector<8x192xf32>
    %161 = vector.extract_strided_slice %154 {offsets = [0, 192], sizes = [8, 64], strides = [1, 1]} : vector<8x256xf32> to vector<8x64xf32>
    %162 = math.tanh %161 : vector<8x64xf32>
    %163 = vector.extract_strided_slice %160 {offsets = [0, 64], sizes = [8, 64], strides = [1, 1]} : vector<8x192xf32> to vector<8x64xf32>
    %164 = arith.mulf %163, %148 : vector<8x64xf32>
    %165 = vector.extract_strided_slice %160 {offsets = [0, 0], sizes = [8, 64], strides = [1, 1]} : vector<8x192xf32> to vector<8x64xf32>
    %166 = arith.mulf %165, %162 : vector<8x64xf32>
    %167 = arith.addf %164, %166 : vector<8x64xf32>
    %168 = vector.extract_strided_slice %160 {offsets = [0, 128], sizes = [8, 64], strides = [1, 1]} : vector<8x192xf32> to vector<8x64xf32>
    %169 = math.tanh %167 : vector<8x64xf32>
    %170 = arith.mulf %168, %169 : vector<8x64xf32>
    %171 = vector.extract_strided_slice %35 {offsets = [56, 0], sizes = [8, 256], strides = [1, 1]} : vector<64x256xf32> to vector<8x256xf32>
    %cst_26 = arith.constant dense<0.000000e+00> : vector<8x256xf32>
    %172 = tpu.matmul %170, %22, %cst_26 {dimension_numbers = #tpu.dot_dimension_numbers<[1], [0], [0], [1], [0, 0, 1, 1], [], []>} : vector<8x64xf32>, vector<64x256xf32>, vector<8x256xf32> -> vector<8x256xf32>
    %173 = arith.addf %171, %172 : vector<8x256xf32>
    %174 = vector.extract_strided_slice %173 {offsets = [0, 0], sizes = [8, 192], strides = [1, 1]} : vector<8x256xf32> to vector<8x192xf32>
    %175 = arith.negf %174 : vector<8x192xf32>
    %176 = math.exp %175 : vector<8x192xf32>
    %cst_27 = arith.constant 1.000000e+00 : f32
    %177 = vector.broadcast %cst_27 : f32 to vector<8x192xf32>
    %178 = arith.addf %177, %176 : vector<8x192xf32>
    %179 = arith.divf %177, %178 : vector<8x192xf32>
    %180 = vector.extract_strided_slice %173 {offsets = [0, 192], sizes = [8, 64], strides = [1, 1]} : vector<8x256xf32> to vector<8x64xf32>
    %181 = math.tanh %180 : vector<8x64xf32>
    %182 = vector.extract_strided_slice %179 {offsets = [0, 64], sizes = [8, 64], strides = [1, 1]} : vector<8x192xf32> to vector<8x64xf32>
    %183 = arith.mulf %182, %167 : vector<8x64xf32>
    %184 = vector.extract_strided_slice %179 {offsets = [0, 0], sizes = [8, 64], strides = [1, 1]} : vector<8x192xf32> to vector<8x64xf32>
    %185 = arith.mulf %184, %181 : vector<8x64xf32>
    %186 = arith.addf %183, %185 : vector<8x64xf32>
    %187 = vector.extract_strided_slice %179 {offsets = [0, 128], sizes = [8, 64], strides = [1, 1]} : vector<8x192xf32> to vector<8x64xf32>
    %188 = math.tanh %186 : vector<8x64xf32>
    %189 = arith.mulf %187, %188 : vector<8x64xf32>
    %190 = vector.extract_strided_slice %56 {offsets = [0, 0], sizes = [8, 32], strides = [1, 1]} : vector<8x64xf32> to vector<8x32xf32>
    %191 = vector.extract_strided_slice %189 {offsets = [0, 32], sizes = [8, 32], strides = [1, 1]} : vector<8x64xf32> to vector<8x32xf32>
    %192 = tpu.concatenate %190, %191 in 1 : vector<8x32xf32>, vector<8x32xf32> -> vector<8x64xf32>
    %193 = vector.extract_strided_slice %75 {offsets = [0, 0], sizes = [8, 32], strides = [1, 1]} : vector<8x64xf32> to vector<8x32xf32>
    %194 = vector.extract_strided_slice %170 {offsets = [0, 32], sizes = [8, 32], strides = [1, 1]} : vector<8x64xf32> to vector<8x32xf32>
    %195 = tpu.concatenate %193, %194 in 1 : vector<8x32xf32>, vector<8x32xf32> -> vector<8x64xf32>
    %196 = vector.extract_strided_slice %94 {offsets = [0, 0], sizes = [8, 32], strides = [1, 1]} : vector<8x64xf32> to vector<8x32xf32>
    %197 = vector.extract_strided_slice %151 {offsets = [0, 32], sizes = [8, 32], strides = [1, 1]} : vector<8x64xf32> to vector<8x32xf32>
    %198 = tpu.concatenate %196, %197 in 1 : vector<8x32xf32>, vector<8x32xf32> -> vector<8x64xf32>
    %199 = vector.extract_strided_slice %113 {offsets = [0, 0], sizes = [8, 32], strides = [1, 1]} : vector<8x64xf32> to vector<8x32xf32>
    %200 = vector.extract_strided_slice %132 {offsets = [0, 32], sizes = [8, 32], strides = [1, 1]} : vector<8x64xf32> to vector<8x32xf32>
    %201 = tpu.concatenate %199, %200 in 1 : vector<8x32xf32>, vector<8x32xf32> -> vector<8x64xf32>
    %202 = vector.extract_strided_slice %132 {offsets = [0, 0], sizes = [8, 32], strides = [1, 1]} : vector<8x64xf32> to vector<8x32xf32>
    %203 = vector.extract_strided_slice %113 {offsets = [0, 32], sizes = [8, 32], strides = [1, 1]} : vector<8x64xf32> to vector<8x32xf32>
    %204 = tpu.concatenate %202, %203 in 1 : vector<8x32xf32>, vector<8x32xf32> -> vector<8x64xf32>
    %205 = vector.extract_strided_slice %151 {offsets = [0, 0], sizes = [8, 32], strides = [1, 1]} : vector<8x64xf32> to vector<8x32xf32>
    %206 = vector.extract_strided_slice %94 {offsets = [0, 32], sizes = [8, 32], strides = [1, 1]} : vector<8x64xf32> to vector<8x32xf32>
    %207 = tpu.concatenate %205, %206 in 1 : vector<8x32xf32>, vector<8x32xf32> -> vector<8x64xf32>
    %208 = vector.extract_strided_slice %170 {offsets = [0, 0], sizes = [8, 32], strides = [1, 1]} : vector<8x64xf32> to vector<8x32xf32>
    %209 = vector.extract_strided_slice %75 {offsets = [0, 32], sizes = [8, 32], strides = [1, 1]} : vector<8x64xf32> to vector<8x32xf32>
    %210 = tpu.concatenate %208, %209 in 1 : vector<8x32xf32>, vector<8x32xf32> -> vector<8x64xf32>
    %211 = vector.extract_strided_slice %189 {offsets = [0, 0], sizes = [8, 32], strides = [1, 1]} : vector<8x64xf32> to vector<8x32xf32>
    %212 = vector.extract_strided_slice %56 {offsets = [0, 32], sizes = [8, 32], strides = [1, 1]} : vector<8x64xf32> to vector<8x32xf32>
    %213 = tpu.concatenate %211, %212 in 1 : vector<8x32xf32>, vector<8x32xf32> -> vector<8x64xf32>
    %214 = tpu.concatenate %192, %195, %198, %201, %204, %207, %210, %213 in 0 : vector<8x64xf32>, vector<8x64xf32>, vector<8x64xf32>, vector<8x64xf32>, vector<8x64xf32>, vector<8x64xf32>, vector<8x64xf32>, vector<8x64xf32> -> vector<64x64xf32>
    %c0_28 = arith.constant 0 : index
    %c0_29 = arith.constant 0 : index
    %215 = vector.load %arg5[%c0_28, %c0_29] : memref<64x256xf32, #tpu.memory_space<vmem>>, vector<64x256xf32>
    %c0_30 = arith.constant 0 : index
    %c0_31 = arith.constant 0 : index
    %216 = vector.load %arg7[%c0_30, %c0_31] : memref<1x256xf32, #tpu.memory_space<vmem>>, vector<1x256xf32>
    %c0_32 = arith.constant 0 : index
    %c0_33 = arith.constant 0 : index
    %217 = vector.load %arg6[%c0_32, %c0_33] : memref<64x256xf32, #tpu.memory_space<vmem>>, vector<64x256xf32>
    %cst_34 = arith.constant dense<0.000000e+00> : vector<64x256xf32>
    %218 = tpu.matmul %214, %215, %cst_34 {dimension_numbers = #tpu.dot_dimension_numbers<[1], [0], [0], [1], [0, 0, 1, 1], [], []>} : vector<64x64xf32>, vector<64x256xf32>, vector<64x256xf32> -> vector<64x256xf32>
    %219 = vector.broadcast %216 : vector<1x256xf32> to vector<64x256xf32>
    %220 = arith.addf %218, %219 : vector<64x256xf32>
    %221 = vector.extract_strided_slice %220 {offsets = [56, 0], sizes = [8, 256], strides = [1, 1]} : vector<64x256xf32> to vector<8x256xf32>
    %222 = vector.extract_strided_slice %220 {offsets = [48, 0], sizes = [8, 256], strides = [1, 1]} : vector<64x256xf32> to vector<8x256xf32>
    %223 = vector.extract_strided_slice %220 {offsets = [40, 0], sizes = [8, 256], strides = [1, 1]} : vector<64x256xf32> to vector<8x256xf32>
    %224 = vector.extract_strided_slice %220 {offsets = [32, 0], sizes = [8, 256], strides = [1, 1]} : vector<64x256xf32> to vector<8x256xf32>
    %225 = vector.extract_strided_slice %220 {offsets = [24, 0], sizes = [8, 256], strides = [1, 1]} : vector<64x256xf32> to vector<8x256xf32>
    %226 = vector.extract_strided_slice %220 {offsets = [16, 0], sizes = [8, 256], strides = [1, 1]} : vector<64x256xf32> to vector<8x256xf32>
    %227 = vector.extract_strided_slice %220 {offsets = [8, 0], sizes = [8, 256], strides = [1, 1]} : vector<64x256xf32> to vector<8x256xf32>
    %228 = vector.extract_strided_slice %220 {offsets = [0, 0], sizes = [8, 256], strides = [1, 1]} : vector<64x256xf32> to vector<8x256xf32>
    %229 = tpu.concatenate %221, %222, %223, %224, %225, %226, %227, %228 in 0 : vector<8x256xf32>, vector<8x256xf32>, vector<8x256xf32>, vector<8x256xf32>, vector<8x256xf32>, vector<8x256xf32>, vector<8x256xf32>, vector<8x256xf32> -> vector<64x256xf32>
    %230 = arith.select %18, %220, %229 : vector<64x256xi1>, vector<64x256xf32>
    %cst_35 = arith.constant 0.000000e+00 : f32
    %231 = vector.broadcast %cst_35 : f32 to vector<8x64xf32>
    %cst_36 = arith.constant 0.000000e+00 : f32
    %232 = vector.broadcast %cst_36 : f32 to vector<8x64xf32>
    %233 = vector.extract_strided_slice %230 {offsets = [0, 0], sizes = [8, 256], strides = [1, 1]} : vector<64x256xf32> to vector<8x256xf32>
    %cst_37 = arith.constant dense<0.000000e+00> : vector<8x256xf32>
    %234 = tpu.matmul %231, %217, %cst_37 {dimension_numbers = #tpu.dot_dimension_numbers<[1], [0], [0], [1], [0, 0, 1, 1], [], []>} : vector<8x64xf32>, vector<64x256xf32>, vector<8x256xf32> -> vector<8x256xf32>
    %235 = arith.addf %233, %234 : vector<8x256xf32>
    %236 = vector.extract_strided_slice %235 {offsets = [0, 0], sizes = [8, 192], strides = [1, 1]} : vector<8x256xf32> to vector<8x192xf32>
    %237 = arith.negf %236 : vector<8x192xf32>
    %238 = math.exp %237 : vector<8x192xf32>
    %cst_38 = arith.constant 1.000000e+00 : f32
    %239 = vector.broadcast %cst_38 : f32 to vector<8x192xf32>
    %240 = arith.addf %239, %238 : vector<8x192xf32>
    %241 = arith.divf %239, %240 : vector<8x192xf32>
    %242 = vector.extract_strided_slice %235 {offsets = [0, 192], sizes = [8, 64], strides = [1, 1]} : vector<8x256xf32> to vector<8x64xf32>
    %243 = math.tanh %242 : vector<8x64xf32>
    %244 = vector.extract_strided_slice %241 {offsets = [0, 64], sizes = [8, 64], strides = [1, 1]} : vector<8x192xf32> to vector<8x64xf32>
    %245 = arith.mulf %244, %232 : vector<8x64xf32>
    %246 = vector.extract_strided_slice %241 {offsets = [0, 0], sizes = [8, 64], strides = [1, 1]} : vector<8x192xf32> to vector<8x64xf32>
    %247 = arith.mulf %246, %243 : vector<8x64xf32>
    %248 = arith.addf %245, %247 : vector<8x64xf32>
    %249 = vector.extract_strided_slice %241 {offsets = [0, 128], sizes = [8, 64], strides = [1, 1]} : vector<8x192xf32> to vector<8x64xf32>
    %250 = math.tanh %248 : vector<8x64xf32>
    %251 = arith.mulf %249, %250 : vector<8x64xf32>
    %252 = vector.extract_strided_slice %230 {offsets = [8, 0], sizes = [8, 256], strides = [1, 1]} : vector<64x256xf32> to vector<8x256xf32>
    %cst_39 = arith.constant dense<0.000000e+00> : vector<8x256xf32>
    %253 = tpu.matmul %251, %217, %cst_39 {dimension_numbers = #tpu.dot_dimension_numbers<[1], [0], [0], [1], [0, 0, 1, 1], [], []>} : vector<8x64xf32>, vector<64x256xf32>, vector<8x256xf32> -> vector<8x256xf32>
    %254 = arith.addf %252, %253 : vector<8x256xf32>
    %255 = vector.extract_strided_slice %254 {offsets = [0, 0], sizes = [8, 192], strides = [1, 1]} : vector<8x256xf32> to vector<8x192xf32>
    %256 = arith.negf %255 : vector<8x192xf32>
    %257 = math.exp %256 : vector<8x192xf32>
    %cst_40 = arith.constant 1.000000e+00 : f32
    %258 = vector.broadcast %cst_40 : f32 to vector<8x192xf32>
    %259 = arith.addf %258, %257 : vector<8x192xf32>
    %260 = arith.divf %258, %259 : vector<8x192xf32>
    %261 = vector.extract_strided_slice %254 {offsets = [0, 192], sizes = [8, 64], strides = [1, 1]} : vector<8x256xf32> to vector<8x64xf32>
    %262 = math.tanh %261 : vector<8x64xf32>
    %263 = vector.extract_strided_slice %260 {offsets = [0, 64], sizes = [8, 64], strides = [1, 1]} : vector<8x192xf32> to vector<8x64xf32>
    %264 = arith.mulf %263, %248 : vector<8x64xf32>
    %265 = vector.extract_strided_slice %260 {offsets = [0, 0], sizes = [8, 64], strides = [1, 1]} : vector<8x192xf32> to vector<8x64xf32>
    %266 = arith.mulf %265, %262 : vector<8x64xf32>
    %267 = arith.addf %264, %266 : vector<8x64xf32>
    %268 = vector.extract_strided_slice %260 {offsets = [0, 128], sizes = [8, 64], strides = [1, 1]} : vector<8x192xf32> to vector<8x64xf32>
    %269 = math.tanh %267 : vector<8x64xf32>
    %270 = arith.mulf %268, %269 : vector<8x64xf32>
    %271 = vector.extract_strided_slice %230 {offsets = [16, 0], sizes = [8, 256], strides = [1, 1]} : vector<64x256xf32> to vector<8x256xf32>
    %cst_41 = arith.constant dense<0.000000e+00> : vector<8x256xf32>
    %272 = tpu.matmul %270, %217, %cst_41 {dimension_numbers = #tpu.dot_dimension_numbers<[1], [0], [0], [1], [0, 0, 1, 1], [], []>} : vector<8x64xf32>, vector<64x256xf32>, vector<8x256xf32> -> vector<8x256xf32>
    %273 = arith.addf %271, %272 : vector<8x256xf32>
    %274 = vector.extract_strided_slice %273 {offsets = [0, 0], sizes = [8, 192], strides = [1, 1]} : vector<8x256xf32> to vector<8x192xf32>
    %275 = arith.negf %274 : vector<8x192xf32>
    %276 = math.exp %275 : vector<8x192xf32>
    %cst_42 = arith.constant 1.000000e+00 : f32
    %277 = vector.broadcast %cst_42 : f32 to vector<8x192xf32>
    %278 = arith.addf %277, %276 : vector<8x192xf32>
    %279 = arith.divf %277, %278 : vector<8x192xf32>
    %280 = vector.extract_strided_slice %273 {offsets = [0, 192], sizes = [8, 64], strides = [1, 1]} : vector<8x256xf32> to vector<8x64xf32>
    %281 = math.tanh %280 : vector<8x64xf32>
    %282 = vector.extract_strided_slice %279 {offsets = [0, 64], sizes = [8, 64], strides = [1, 1]} : vector<8x192xf32> to vector<8x64xf32>
    %283 = arith.mulf %282, %267 : vector<8x64xf32>
    %284 = vector.extract_strided_slice %279 {offsets = [0, 0], sizes = [8, 64], strides = [1, 1]} : vector<8x192xf32> to vector<8x64xf32>
    %285 = arith.mulf %284, %281 : vector<8x64xf32>
    %286 = arith.addf %283, %285 : vector<8x64xf32>
    %287 = vector.extract_strided_slice %279 {offsets = [0, 128], sizes = [8, 64], strides = [1, 1]} : vector<8x192xf32> to vector<8x64xf32>
    %288 = math.tanh %286 : vector<8x64xf32>
    %289 = arith.mulf %287, %288 : vector<8x64xf32>
    %290 = vector.extract_strided_slice %230 {offsets = [24, 0], sizes = [8, 256], strides = [1, 1]} : vector<64x256xf32> to vector<8x256xf32>
    %cst_43 = arith.constant dense<0.000000e+00> : vector<8x256xf32>
    %291 = tpu.matmul %289, %217, %cst_43 {dimension_numbers = #tpu.dot_dimension_numbers<[1], [0], [0], [1], [0, 0, 1, 1], [], []>} : vector<8x64xf32>, vector<64x256xf32>, vector<8x256xf32> -> vector<8x256xf32>
    %292 = arith.addf %290, %291 : vector<8x256xf32>
    %293 = vector.extract_strided_slice %292 {offsets = [0, 0], sizes = [8, 192], strides = [1, 1]} : vector<8x256xf32> to vector<8x192xf32>
    %294 = arith.negf %293 : vector<8x192xf32>
    %295 = math.exp %294 : vector<8x192xf32>
    %cst_44 = arith.constant 1.000000e+00 : f32
    %296 = vector.broadcast %cst_44 : f32 to vector<8x192xf32>
    %297 = arith.addf %296, %295 : vector<8x192xf32>
    %298 = arith.divf %296, %297 : vector<8x192xf32>
    %299 = vector.extract_strided_slice %292 {offsets = [0, 192], sizes = [8, 64], strides = [1, 1]} : vector<8x256xf32> to vector<8x64xf32>
    %300 = math.tanh %299 : vector<8x64xf32>
    %301 = vector.extract_strided_slice %298 {offsets = [0, 64], sizes = [8, 64], strides = [1, 1]} : vector<8x192xf32> to vector<8x64xf32>
    %302 = arith.mulf %301, %286 : vector<8x64xf32>
    %303 = vector.extract_strided_slice %298 {offsets = [0, 0], sizes = [8, 64], strides = [1, 1]} : vector<8x192xf32> to vector<8x64xf32>
    %304 = arith.mulf %303, %300 : vector<8x64xf32>
    %305 = arith.addf %302, %304 : vector<8x64xf32>
    %306 = vector.extract_strided_slice %298 {offsets = [0, 128], sizes = [8, 64], strides = [1, 1]} : vector<8x192xf32> to vector<8x64xf32>
    %307 = math.tanh %305 : vector<8x64xf32>
    %308 = arith.mulf %306, %307 : vector<8x64xf32>
    %309 = vector.extract_strided_slice %230 {offsets = [32, 0], sizes = [8, 256], strides = [1, 1]} : vector<64x256xf32> to vector<8x256xf32>
    %cst_45 = arith.constant dense<0.000000e+00> : vector<8x256xf32>
    %310 = tpu.matmul %308, %217, %cst_45 {dimension_numbers = #tpu.dot_dimension_numbers<[1], [0], [0], [1], [0, 0, 1, 1], [], []>} : vector<8x64xf32>, vector<64x256xf32>, vector<8x256xf32> -> vector<8x256xf32>
    %311 = arith.addf %309, %310 : vector<8x256xf32>
    %312 = vector.extract_strided_slice %311 {offsets = [0, 0], sizes = [8, 192], strides = [1, 1]} : vector<8x256xf32> to vector<8x192xf32>
    %313 = arith.negf %312 : vector<8x192xf32>
    %314 = math.exp %313 : vector<8x192xf32>
    %cst_46 = arith.constant 1.000000e+00 : f32
    %315 = vector.broadcast %cst_46 : f32 to vector<8x192xf32>
    %316 = arith.addf %315, %314 : vector<8x192xf32>
    %317 = arith.divf %315, %316 : vector<8x192xf32>
    %318 = vector.extract_strided_slice %311 {offsets = [0, 192], sizes = [8, 64], strides = [1, 1]} : vector<8x256xf32> to vector<8x64xf32>
    %319 = math.tanh %318 : vector<8x64xf32>
    %320 = vector.extract_strided_slice %317 {offsets = [0, 64], sizes = [8, 64], strides = [1, 1]} : vector<8x192xf32> to vector<8x64xf32>
    %321 = arith.mulf %320, %305 : vector<8x64xf32>
    %322 = vector.extract_strided_slice %317 {offsets = [0, 0], sizes = [8, 64], strides = [1, 1]} : vector<8x192xf32> to vector<8x64xf32>
    %323 = arith.mulf %322, %319 : vector<8x64xf32>
    %324 = arith.addf %321, %323 : vector<8x64xf32>
    %325 = vector.extract_strided_slice %317 {offsets = [0, 128], sizes = [8, 64], strides = [1, 1]} : vector<8x192xf32> to vector<8x64xf32>
    %326 = math.tanh %324 : vector<8x64xf32>
    %327 = arith.mulf %325, %326 : vector<8x64xf32>
    %328 = vector.extract_strided_slice %230 {offsets = [40, 0], sizes = [8, 256], strides = [1, 1]} : vector<64x256xf32> to vector<8x256xf32>
    %cst_47 = arith.constant dense<0.000000e+00> : vector<8x256xf32>
    %329 = tpu.matmul %327, %217, %cst_47 {dimension_numbers = #tpu.dot_dimension_numbers<[1], [0], [0], [1], [0, 0, 1, 1], [], []>} : vector<8x64xf32>, vector<64x256xf32>, vector<8x256xf32> -> vector<8x256xf32>
    %330 = arith.addf %328, %329 : vector<8x256xf32>
    %331 = vector.extract_strided_slice %330 {offsets = [0, 0], sizes = [8, 192], strides = [1, 1]} : vector<8x256xf32> to vector<8x192xf32>
    %332 = arith.negf %331 : vector<8x192xf32>
    %333 = math.exp %332 : vector<8x192xf32>
    %cst_48 = arith.constant 1.000000e+00 : f32
    %334 = vector.broadcast %cst_48 : f32 to vector<8x192xf32>
    %335 = arith.addf %334, %333 : vector<8x192xf32>
    %336 = arith.divf %334, %335 : vector<8x192xf32>
    %337 = vector.extract_strided_slice %330 {offsets = [0, 192], sizes = [8, 64], strides = [1, 1]} : vector<8x256xf32> to vector<8x64xf32>
    %338 = math.tanh %337 : vector<8x64xf32>
    %339 = vector.extract_strided_slice %336 {offsets = [0, 64], sizes = [8, 64], strides = [1, 1]} : vector<8x192xf32> to vector<8x64xf32>
    %340 = arith.mulf %339, %324 : vector<8x64xf32>
    %341 = vector.extract_strided_slice %336 {offsets = [0, 0], sizes = [8, 64], strides = [1, 1]} : vector<8x192xf32> to vector<8x64xf32>
    %342 = arith.mulf %341, %338 : vector<8x64xf32>
    %343 = arith.addf %340, %342 : vector<8x64xf32>
    %344 = vector.extract_strided_slice %336 {offsets = [0, 128], sizes = [8, 64], strides = [1, 1]} : vector<8x192xf32> to vector<8x64xf32>
    %345 = math.tanh %343 : vector<8x64xf32>
    %346 = arith.mulf %344, %345 : vector<8x64xf32>
    %347 = vector.extract_strided_slice %230 {offsets = [48, 0], sizes = [8, 256], strides = [1, 1]} : vector<64x256xf32> to vector<8x256xf32>
    %cst_49 = arith.constant dense<0.000000e+00> : vector<8x256xf32>
    %348 = tpu.matmul %346, %217, %cst_49 {dimension_numbers = #tpu.dot_dimension_numbers<[1], [0], [0], [1], [0, 0, 1, 1], [], []>} : vector<8x64xf32>, vector<64x256xf32>, vector<8x256xf32> -> vector<8x256xf32>
    %349 = arith.addf %347, %348 : vector<8x256xf32>
    %350 = vector.extract_strided_slice %349 {offsets = [0, 0], sizes = [8, 192], strides = [1, 1]} : vector<8x256xf32> to vector<8x192xf32>
    %351 = arith.negf %350 : vector<8x192xf32>
    %352 = math.exp %351 : vector<8x192xf32>
    %cst_50 = arith.constant 1.000000e+00 : f32
    %353 = vector.broadcast %cst_50 : f32 to vector<8x192xf32>
    %354 = arith.addf %353, %352 : vector<8x192xf32>
    %355 = arith.divf %353, %354 : vector<8x192xf32>
    %356 = vector.extract_strided_slice %349 {offsets = [0, 192], sizes = [8, 64], strides = [1, 1]} : vector<8x256xf32> to vector<8x64xf32>
    %357 = math.tanh %356 : vector<8x64xf32>
    %358 = vector.extract_strided_slice %355 {offsets = [0, 64], sizes = [8, 64], strides = [1, 1]} : vector<8x192xf32> to vector<8x64xf32>
    %359 = arith.mulf %358, %343 : vector<8x64xf32>
    %360 = vector.extract_strided_slice %355 {offsets = [0, 0], sizes = [8, 64], strides = [1, 1]} : vector<8x192xf32> to vector<8x64xf32>
    %361 = arith.mulf %360, %357 : vector<8x64xf32>
    %362 = arith.addf %359, %361 : vector<8x64xf32>
    %363 = vector.extract_strided_slice %355 {offsets = [0, 128], sizes = [8, 64], strides = [1, 1]} : vector<8x192xf32> to vector<8x64xf32>
    %364 = math.tanh %362 : vector<8x64xf32>
    %365 = arith.mulf %363, %364 : vector<8x64xf32>
    %366 = vector.extract_strided_slice %230 {offsets = [56, 0], sizes = [8, 256], strides = [1, 1]} : vector<64x256xf32> to vector<8x256xf32>
    %cst_51 = arith.constant dense<0.000000e+00> : vector<8x256xf32>
    %367 = tpu.matmul %365, %217, %cst_51 {dimension_numbers = #tpu.dot_dimension_numbers<[1], [0], [0], [1], [0, 0, 1, 1], [], []>} : vector<8x64xf32>, vector<64x256xf32>, vector<8x256xf32> -> vector<8x256xf32>
    %368 = arith.addf %366, %367 : vector<8x256xf32>
    %369 = vector.extract_strided_slice %368 {offsets = [0, 0], sizes = [8, 192], strides = [1, 1]} : vector<8x256xf32> to vector<8x192xf32>
    %370 = arith.negf %369 : vector<8x192xf32>
    %371 = math.exp %370 : vector<8x192xf32>
    %cst_52 = arith.constant 1.000000e+00 : f32
    %372 = vector.broadcast %cst_52 : f32 to vector<8x192xf32>
    %373 = arith.addf %372, %371 : vector<8x192xf32>
    %374 = arith.divf %372, %373 : vector<8x192xf32>
    %375 = vector.extract_strided_slice %368 {offsets = [0, 192], sizes = [8, 64], strides = [1, 1]} : vector<8x256xf32> to vector<8x64xf32>
    %376 = math.tanh %375 : vector<8x64xf32>
    %377 = vector.extract_strided_slice %374 {offsets = [0, 64], sizes = [8, 64], strides = [1, 1]} : vector<8x192xf32> to vector<8x64xf32>
    %378 = arith.mulf %377, %362 : vector<8x64xf32>
    %379 = vector.extract_strided_slice %374 {offsets = [0, 0], sizes = [8, 64], strides = [1, 1]} : vector<8x192xf32> to vector<8x64xf32>
    %380 = arith.mulf %379, %376 : vector<8x64xf32>
    %381 = arith.addf %378, %380 : vector<8x64xf32>
    %382 = vector.extract_strided_slice %374 {offsets = [0, 128], sizes = [8, 64], strides = [1, 1]} : vector<8x192xf32> to vector<8x64xf32>
    %383 = math.tanh %381 : vector<8x64xf32>
    %384 = arith.mulf %382, %383 : vector<8x64xf32>
    %385 = vector.extract_strided_slice %384 {offsets = [0, 0], sizes = [8, 32], strides = [1, 1]} : vector<8x64xf32> to vector<8x32xf32>
    %386 = vector.extract_strided_slice %251 {offsets = [0, 32], sizes = [8, 32], strides = [1, 1]} : vector<8x64xf32> to vector<8x32xf32>
    %387 = tpu.concatenate %385, %386 in 1 : vector<8x32xf32>, vector<8x32xf32> -> vector<8x64xf32>
    %c0_53 = arith.constant 0 : index
    %c0_54 = arith.constant 0 : index
    %388 = vector.load %arg8[%c0_53, %c0_54] : memref<64x128xf32, #tpu.memory_space<vmem>>, vector<64x128xf32>
    %cst_55 = arith.constant dense<0.000000e+00> : vector<8x128xf32>
    %389 = tpu.matmul %387, %388, %cst_55 {dimension_numbers = #tpu.dot_dimension_numbers<[1], [0], [0], [1], [0, 0, 1, 1], [], []>} : vector<8x64xf32>, vector<64x128xf32>, vector<8x128xf32> -> vector<8x128xf32>
    %c0_56 = arith.constant 0 : index
    %c0_57 = arith.constant 0 : index
    %390 = vector.load %arg9[%c0_56, %c0_57] : memref<1x128xf32, #tpu.memory_space<vmem>>, vector<1x128xf32>
    %391 = vector.broadcast %390 : vector<1x128xf32> to vector<8x128xf32>
    %392 = arith.addf %389, %391 : vector<8x128xf32>
    %cst_58 = arith.constant 0.000000e+00 : f32
    %393 = vector.broadcast %cst_58 : f32 to vector<8x128xf32>
    %394 = arith.maximumf %392, %393 : vector<8x128xf32>
    %c0_59 = arith.constant 0 : index
    %c0_60 = arith.constant 0 : index
    %395 = vector.load %arg10[%c0_59, %c0_60] : memref<128x128xf32, #tpu.memory_space<vmem>>, vector<128x128xf32>
    %cst_61 = arith.constant dense<0.000000e+00> : vector<8x128xf32>
    %396 = tpu.matmul %394, %395, %cst_61 {dimension_numbers = #tpu.dot_dimension_numbers<[1], [0], [0], [1], [0, 0, 1, 1], [], []>} : vector<8x128xf32>, vector<128x128xf32>, vector<8x128xf32> -> vector<8x128xf32>
    %c0_62 = arith.constant 0 : index
    %c0_63 = arith.constant 0 : index
    %397 = vector.load %arg11[%c0_62, %c0_63] : memref<1x128xf32, #tpu.memory_space<vmem>>, vector<1x128xf32>
    %398 = vector.broadcast %397 : vector<1x128xf32> to vector<8x128xf32>
    %399 = arith.addf %396, %398 : vector<8x128xf32>
    %c0_64 = arith.constant 0 : index
    %c0_65 = arith.constant 0 : index
    %400 = vector.load %arg12[%c0_64, %c0_65] : memref<8x128xf32, #tpu.memory_space<vmem>>, vector<8x128xf32>
    tpu.vector_store %arg12[%c0_64, %c0_65], %399 {strides = array<i32>} : memref<8x128xf32, #tpu.memory_space<vmem>>, vector<8x128xf32>,
    return
  }
  func.func @transform_0(%arg0: i32) -> (i32, i32) {
    %c0_i32 = arith.constant 0 : i32
    %c0_i32_0 = arith.constant 0 : i32
    %c0_i32_1 = arith.constant 0 : i32
    return %c0_i32, %c0_i32_0 : i32, i32
  }
  func.func @transform_1(%arg0: i32) -> (i32, i32) {
    %c0_i32 = arith.constant 0 : i32
    %c0_i32_0 = arith.constant 0 : i32
    %c0_i32_1 = arith.constant 0 : i32
    return %c0_i32, %c0_i32_0 : i32, i32
  }
  func.func @transform_2(%arg0: i32) -> (i32, i32) {
    %c0_i32 = arith.constant 0 : i32
    %c0_i32_0 = arith.constant 0 : i32
    %c0_i32_1 = arith.constant 0 : i32
    return %c0_i32, %c0_i32_0 : i32, i32
  }
  func.func @transform_3(%arg0: i32) -> (i32, i32) {
    %c0_i32 = arith.constant 0 : i32
    %c0_i32_0 = arith.constant 0 : i32
    %c0_i32_1 = arith.constant 0 : i32
    return %c0_i32, %c0_i32_0 : i32, i32
  }
  func.func @transform_4(%arg0: i32) -> (i32, i32) {
    %c0_i32 = arith.constant 0 : i32
    %c0_i32_0 = arith.constant 0 : i32
    %c0_i32_1 = arith.constant 0 : i32
    return %c0_i32, %c0_i32_0 : i32, i32
  }
  func.func @transform_5(%arg0: i32) -> (i32, i32) {
    %c0_i32 = arith.constant 0 : i32
    %c0_i32_0 = arith.constant 0 : i32
    %c0_i32_1 = arith.constant 0 : i32
    return %c0_i32, %c0_i32_0 : i32, i32
  }
  func.func @transform_6(%arg0: i32) -> (i32, i32) {
    %c0_i32 = arith.constant 0 : i32
    %c0_i32_0 = arith.constant 0 : i32
    %c0_i32_1 = arith.constant 0 : i32
    return %c0_i32, %c0_i32_0 : i32, i32
  }
  func.func @transform_7(%arg0: i32) -> (i32, i32) {
    %c0_i32 = arith.constant 0 : i32
    %c0_i32_0 = arith.constant 0 : i32
    %c0_i32_1 = arith.constant 0 : i32
    return %c0_i32, %c0_i32_0 : i32, i32
  }
  func.func @transform_8(%arg0: i32) -> (i32, i32) {
    %c0_i32 = arith.constant 0 : i32
    %c0_i32_0 = arith.constant 0 : i32
    %c0_i32_1 = arith.constant 0 : i32
    return %c0_i32, %c0_i32_0 : i32, i32
  }
  func.func @transform_9(%arg0: i32) -> (i32, i32) {
    %c0_i32 = arith.constant 0 : i32
    %c0_i32_0 = arith.constant 0 : i32
    %c0_i32_1 = arith.constant 0 : i32
    return %c0_i32, %c0_i32_0 : i32, i32
  }
  func.func @transform_10(%arg0: i32) -> (i32, i32) {
    %c0_i32 = arith.constant 0 : i32
    %c0_i32_0 = arith.constant 0 : i32
    %c0_i32_1 = arith.constant 0 : i32
    return %c0_i32, %c0_i32_0 : i32, i32
  }
  func.func @transform_11(%arg0: i32) -> (i32, i32) {
    %c0_i32 = arith.constant 0 : i32
    %c0_i32_0 = arith.constant 0 : i32
    %c0_i32_1 = arith.constant 0 : i32
    return %c0_i32, %c0_i32_0 : i32, i32
  }
}

</mosaic_0001>

<llo_original>
// kernel: tpu_custom_call.1
$region0: #{tpu_custom_call.1}
  #allocation0 [shape = 'u32[]', space=smem, size = 0x4, offset = 0x4, fixed_abs, tag = 'smem constant byte address 0x4 - core index']
  #allocation1 [shape = 'u32[144,128]{1,0:T(1,128)}', space=vmem, size = 0x12000, scoped, tag = 'internal scratch']
  %s0 = inlined_call_operand.vmem [shape: f32[64,16], index: 0, kind: input, shape index: {}]
  %s1 = inlined_call_operand.hbm [shape: f32[16,256], index: 1, kind: input, shape index: {}]
  %s2 = inlined_call_operand.hbm [shape: f32[64,256], index: 2, kind: input, shape index: {}]
  %s3 = inlined_call_operand.vmem [shape: f32[1,256], index: 3, kind: input, shape index: {}]
  %s4 = inlined_call_operand.hbm [shape: f32[64,256], index: 4, kind: input, shape index: {}]
  %s5 = inlined_call_operand.hbm [shape: f32[64,256], index: 5, kind: input, shape index: {}]
  %s6 = inlined_call_operand.vmem [shape: f32[1,256], index: 6, kind: input, shape index: {}]
  %s7 = inlined_call_operand.vmem [shape: f32[64,128], index: 7, kind: input, shape index: {}]
  %s8 = inlined_call_operand.vmem [shape: f32[1,128], index: 8, kind: input, shape index: {}]
  %s9 = inlined_call_operand.hbm [shape: f32[128,128], index: 9, kind: input, shape index: {}]
  %s10 = inlined_call_operand.vmem [shape: f32[1,128], index: 10, kind: input, shape index: {}]
  %s11 = inlined_call_operand.hbm [shape: f32[8,128], index: 11, kind: output, shape index: {}]
  %s12 = sld [smem:[#allocation0]]
  $region74: #{tpu_custom_call.1} parent=0
    _
  %s14 = ssub.s32 1, %s12
  %s15 = scalar_select 0, %s14, %s12
  $region1: #{tpu_custom_call.1} parent=0
    #allocation2 [shape = 'u8[16384]{0}', space=vmem, size = 0x4000, scoped, tag = 'input window, operand 1, single buffered']
    #allocation3 [shape = 's32[1]{0}', space=sflag, size = 0x4, scoped, tag = 'scoped memory for tpu_custom_call.1']
    #allocation4 [shape = 's32[1]{0}', space=sflag, size = 0x4, scoped, tag = 'scoped memory for tpu_custom_call.1']
    #allocation5 [shape = 'u8[65536]{0}', space=vmem, size = 0x10000, scoped, tag = 'input window, operand 2, single buffered']
    #allocation6 [shape = 's32[1]{0}', space=sflag, size = 0x4, scoped, tag = 'scoped memory for tpu_custom_call.1']
    #allocation7 [shape = 'u8[65536]{0}', space=vmem, size = 0x10000, scoped, tag = 'input window, operand 4, single buffered']
    #allocation8 [shape = 'u8[65536]{0}', space=vmem, size = 0x10000, scoped, tag = 'input window, operand 5, single buffered']
    #allocation9 [shape = 's32[1]{0}', space=sflag, size = 0x4, scoped, tag = 'scoped memory for tpu_custom_call.1']
    #allocation10 [shape = 'u8[65536]{0}', space=vmem, size = 0x10000, scoped, tag = 'input window, operand 9, single buffered']
    #allocation11 [shape = 'u8[4096]{0}', space=vmem, size = 0x1000, scoped, tag = 'output window, operand 0, single buffered']
    %16 = vsyncpa [#allocation3], 0
    %17 = vsyncpa [#allocation6], 0
    %18 = vsyncpa [#allocation9], 0
    %19 = vsyncpa [#allocation4], 0
    // Predicated region
    $region2: #{tpu_custom_call.1} parent=1 // pred_check
      _
    $region3: #{tpu_custom_call.1} parent=1 // pred_check_branch
      %21 = sbr.rel (0) target = $region5
    $region4: #{tpu_custom_call.1} parent=1 // pred_region
      _
    $region5: #{tpu_custom_call.1} parent=1 // pred_fallthru
      _
    // Predicated region
    $region6: #{tpu_custom_call.1} parent=1 // pred_check
      _
    $region7: #{tpu_custom_call.1} parent=1 // pred_check_branch
      %23 = sbr.rel (0) target = $region9
    $region8: #{tpu_custom_call.1} parent=1 // pred_region
      %s25 = ssub.s32 512, 512
      %26 = vsyncadd [#allocation3], %s25
      %s27 = sshll.u32 [#allocation2], 4
      %s28 = int_to_ptr.vmem [resolvable:$true] %s27
      %33 = dma.hbm_to_vmem [thread:$0]  %s1, 512, %s28, [#allocation3], 256, 256, 16
    $region9: #{tpu_custom_call.1} parent=1 // pred_fallthru
      _
    // Predicated region
    $region10: #{tpu_custom_call.1} parent=1 // pred_check
      _
    $region11: #{tpu_custom_call.1} parent=1 // pred_check_branch
      %35 = sbr.rel (0) target = $region13
    $region12: #{tpu_custom_call.1} parent=1 // pred_region
      %s37 = ssub.s32 2048, 2048
      %38 = vsyncadd [#allocation6], %s37
      %s39 = sshll.u32 [#allocation5], 4
      %s40 = int_to_ptr.vmem [resolvable:$true] %s39
      %45 = dma.hbm_to_vmem [thread:$0]  %s2, 2048, %s40, [#allocation6], 256, 256, 16
    $region13: #{tpu_custom_call.1} parent=1 // pred_fallthru
      _
    // Predicated region
    $region14: #{tpu_custom_call.1} parent=1 // pred_check
      _
    $region15: #{tpu_custom_call.1} parent=1 // pred_check_branch
      %47 = sbr.rel (0) target = $region17
    $region16: #{tpu_custom_call.1} parent=1 // pred_region
      _
    $region17: #{tpu_custom_call.1} parent=1 // pred_fallthru
      _
    // Predicated region
    $region18: #{tpu_custom_call.1} parent=1 // pred_check
      _
    $region19: #{tpu_custom_call.1} parent=1 // pred_check_branch
      %49 = sbr.rel (0) target = $region21
    $region20: #{tpu_custom_call.1} parent=1 // pred_region
      %s51 = ssub.s32 2048, 2048
      %52 = vsyncadd [#allocation6], %s51
      %s53 = sshll.u32 [#allocation7], 4
      %s54 = int_to_ptr.vmem [resolvable:$true] %s53
      %59 = dma.hbm_to_vmem [thread:$0]  %s4, 2048, %s54, [#allocation6], 256, 256, 16
    $region21: #{tpu_custom_call.1} parent=1 // pred_fallthru
      _
    // Predicated region
    $region22: #{tpu_custom_call.1} parent=1 // pred_check
      _
    $region23: #{tpu_custom_call.1} parent=1 // pred_check_branch
      %61 = sbr.rel (0) target = $region25
    $region24: #{tpu_custom_call.1} parent=1 // pred_region
      %s63 = ssub.s32 2048, 2048
      %64 = vsyncadd [#allocation9], %s63
      %s65 = sshll.u32 [#allocation8], 4
      %s66 = int_to_ptr.vmem [resolvable:$true] %s65
      %71 = dma.hbm_to_vmem [thread:$0]  %s5, 2048, %s66, [#allocation9], 256, 256, 16
    $region25: #{tpu_custom_call.1} parent=1 // pred_fallthru
      _
    // Predicated region
    $region26: #{tpu_custom_call.1} parent=1 // pred_check
      _
    $region27: #{tpu_custom_call.1} parent=1 // pred_check_branch
      %73 = sbr.rel (0) target = $region29
    $region28: #{tpu_custom_call.1} parent=1 // pred_region
      _
    $region29: #{tpu_custom_call.1} parent=1 // pred_fallthru
      _
    // Predicated region
    $region30: #{tpu_custom_call.1} parent=1 // pred_check
      _
    $region31: #{tpu_custom_call.1} parent=1 // pred_check_branch
      %75 = sbr.rel (0) target = $region33
    $region32: #{tpu_custom_call.1} parent=1 // pred_region
      _
    $region33: #{tpu_custom_call.1} parent=1 // pred_fallthru
      _
    // Predicated region
    $region34: #{tpu_custom_call.1} parent=1 // pred_check
      _
    $region35: #{tpu_custom_call.1} parent=1 // pred_check_branch
      %77 = sbr.rel (0) target = $region37
    $region36: #{tpu_custom_call.1} parent=1 // pred_region
      _
    $region37: #{tpu_custom_call.1} parent=1 // pred_fallthru
      _
    // Predicated region
    $region38: #{tpu_custom_call.1} parent=1 // pred_check
      _
    $region39: #{tpu_custom_call.1} parent=1 // pred_check_branch
      %79 = sbr.rel (0) target = $region41
    $region40: #{tpu_custom_call.1} parent=1 // pred_region
      %s81 = ssub.s32 2048, 2048
      %82 = vsyncadd [#allocation9], %s81
      %s83 = sshll.u32 [#allocation10], 4
      %s84 = int_to_ptr.vmem [resolvable:$true] %s83
      %89 = dma.hbm_to_vmem [thread:$0]  %s9, 2048, %s84, [#allocation9], 128, 128, 8
    $region41: #{tpu_custom_call.1} parent=1 // pred_fallthru
      _
    // Predicated region
    $region42: #{tpu_custom_call.1} parent=1 // pred_check
      _
    $region43: #{tpu_custom_call.1} parent=1 // pred_check_branch
      %91 = sbr.rel (0) target = $region45
    $region44: #{tpu_custom_call.1} parent=1 // pred_region
      _
    $region45: #{tpu_custom_call.1} parent=1 // pred_fallthru
      _
    // Predicated region
    $region46: #{tpu_custom_call.1} parent=1 // pred_check
      _
    $region47: #{tpu_custom_call.1} parent=1 // pred_check_branch
      %93 = sbr.rel (0) target = $region49
    $region48: #{tpu_custom_call.1} parent=1 // pred_region
      %94 = dma.done [#allocation3], 512
    $region49: #{tpu_custom_call.1} parent=1 // pred_fallthru
      _
    // Predicated region
    $region50: #{tpu_custom_call.1} parent=1 // pred_check
      _
    $region51: #{tpu_custom_call.1} parent=1 // pred_check_branch
      %96 = sbr.rel (0) target = $region53
    $region52: #{tpu_custom_call.1} parent=1 // pred_region
      %97 = dma.done [#allocation6], 2048
    $region53: #{tpu_custom_call.1} parent=1 // pred_fallthru
      _
    // Predicated region
    $region54: #{tpu_custom_call.1} parent=1 // pred_check
      _
    $region55: #{tpu_custom_call.1} parent=1 // pred_check_branch
      %99 = sbr.rel (0) target = $region57
    $region56: #{tpu_custom_call.1} parent=1 // pred_region
      %100 = dma.done [#allocation6], 2048
    $region57: #{tpu_custom_call.1} parent=1 // pred_fallthru
      _
    // Predicated region
    $region58: #{tpu_custom_call.1} parent=1 // pred_check
      _
    $region59: #{tpu_custom_call.1} parent=1 // pred_check_branch
      %102 = sbr.rel (0) target = $region61
    $region60: #{tpu_custom_call.1} parent=1 // pred_region
      %103 = dma.done [#allocation9], 2048
    $region61: #{tpu_custom_call.1} parent=1 // pred_fallthru
      _
    // Predicated region
    $region62: #{tpu_custom_call.1} parent=1 // pred_check
      _
    $region63: #{tpu_custom_call.1} parent=1 // pred_check_branch
      %105 = sbr.rel (0) target = $region65
    $region64: #{tpu_custom_call.1} parent=1 // pred_region
      %106 = dma.done [#allocation9], 2048
    $region65: #{tpu_custom_call.1} parent=1 // pred_fallthru
      _
    %v107 = vlaneseq
    %v108 = vand.u32 %v107, 127
    %v109 = vadd.s32 %v108, 128
    %vm110 = vcmp.lt.s32.totalorder %v108, 0
    %v111 = vsub.s32 0, %v108
    %v112 = vsel %vm110, %v111, %v108
    %v113 = vshrl.u32 %v112, 6
    %v114 = vand.u32 %v112, 63
    %v115 = vsub.s32 0, %v114
    %v116 = vsel %vm110, %v115, %v114
    %vm117 = vcmp.lt.s32.totalorder %v109, 0
    %v118 = vsub.s32 0, %v109
    %v119 = vsel %vm117, %v118, %v109
    %v120 = vshrl.u32 %v119, 6
    %v121 = vand.u32 %v119, 63
    %v122 = vsub.s32 0, %v121
    %v123 = vsel %vm117, %v122, %v121
    %vm124 = vcmp.ne.s32.totalorder %v116, 0
    %vm125 = vcmp.ne.s32.totalorder %v123, 0
    %vm126 = vcmp.lt.s32.totalorder %v116, 0
    %vm127 = vcmp.lt.s32.totalorder %v123, 0
    %vm128 = vmand %vm126, %vm124
    %vm129 = vmand %vm127, %vm125
    %v130 = vadd.s32 %v116, 64
    %v131 = vadd.s32 %v123, 64
    %v132 = vsel %vm128, %v130, %v116
    %v133 = vsel %vm129, %v131, %v123
    %vm134 = vcmp.lt.s32.totalorder %v132, 32
    %vm135 = vcmp.lt.s32.totalorder %v133, 32
    %v136 = vld [vmem:[%s0] sm:$0xff]
    %v137 = vld [vmem:[%s0 + $0x8] sm:$0xff]
    %v138 = vld [vmem:[%s0 + $0x10] sm:$0xff]
    %v139 = vld [vmem:[%s0 + $0x18] sm:$0xff]
    %v140 = vld [vmem:[%s0 + $0x20] sm:$0xff]
    %v141 = vld [vmem:[%s0 + $0x28] sm:$0xff]
    %v142 = vld [vmem:[%s0 + $0x30] sm:$0xff]
    %v143 = vld [vmem:[%s0 + $0x38] sm:$0xff]
    %v144 = vld [vmem:[#allocation2] sm:$0xff]
    %v145 = vld [vmem:[#allocation2 + $0x8] sm:$0xff]
    %v146 = vld [vmem:[#allocation2 + $0x10] sm:$0xff]
    %v147 = vld [vmem:[#allocation2 + $0x18] sm:$0xff]
    %v148 = vld [vmem:[%s3] sm:$0x3]
    %v149 = vld [vmem:[#allocation5] sm:$0xff]
    %v150 = vld [vmem:[#allocation5 + $0x8] sm:$0xff]
    %v151 = vld [vmem:[#allocation5 + $0x10] sm:$0xff]
    %v152 = vld [vmem:[#allocation5 + $0x18] sm:$0xff]
    %v153 = vld [vmem:[#allocation5 + $0x20] sm:$0xff]
    %v154 = vld [vmem:[#allocation5 + $0x28] sm:$0xff]
    %v155 = vld [vmem:[#allocation5 + $0x30] sm:$0xff]
    %v156 = vld [vmem:[#allocation5 + $0x38] sm:$0xff]
    %v157 = vld [vmem:[#allocation5 + $0x40] sm:$0xff]
    %v158 = vld [vmem:[#allocation5 + $0x48] sm:$0xff]
    %v159 = vld [vmem:[#allocation5 + $0x50] sm:$0xff]
    %v160 = vld [vmem:[#allocation5 + $0x58] sm:$0xff]
    %v161 = vld [vmem:[#allocation5 + $0x60] sm:$0xff]
    %v162 = vld [vmem:[#allocation5 + $0x68] sm:$0xff]
    %v163 = vld [vmem:[#allocation5 + $0x70] sm:$0xff]
    %v164 = vld [vmem:[#allocation5 + $0x78] sm:$0xff]
    %v166 = vlaneseq
    %v167 = vshrl.u32 %v166, 7
    %v168 = vsub.s32 0, %v167
    %v169 = vrot.slane %v148, %v168
    %v170 = vlaneseq
    %v171 = vshrl.u32 %v170, 7
    %v172 = vsub.s32 1, %v171
    %v173 = vrot.slane %v148, %v172
    %vm176 = vcmask 130048
    %v178 = vsel %vm176, %v136, 0
    %v181 = vsel %vm176, %v137, 0
    %v184 = vsel %vm176, %v138, 0
    %v187 = vsel %vm176, %v139, 0
    %v190 = vsel %vm176, %v140, 0
    %v193 = vsel %vm176, %v141, 0
    %v196 = vsel %vm176, %v142, 0
    %v199 = vsel %vm176, %v143, 0
    %201 = vmatprep.subr.mxu0 0.0
    %202 = vmatpush1.msra.mxu0 0.0
    %203 = vmatprep.subr.mxu0 0.0
    %204 = vmatpush1.msra.mxu0 0.0
    %205 = vmatprep.subr.mxu0 0.0
    %206 = vmatpush1.msra.mxu0 0.0
    %207 = vmatprep.subr.mxu0 0.0
    %208 = vmatpush1.msra.mxu0 0.0
    %209 = vmatprep.subr.mxu0 0.0
    %210 = vmatpush1.msra.mxu0 0.0
    %211 = vmatprep.subr.mxu0 0.0
    %212 = vmatpush1.msra.mxu0 0.0
    %213 = vmatprep.subr.mxu0 0.0
    %214 = vmatpush1.msra.mxu0 0.0
    %215 = vmatprep.subr.mxu0 0.0
    %216 = vmatpush1.msra.mxu0 0.0
    %217 = vmatprep.subr.mxu0 0.0
    %218 = vmatpush1.msra.mxu0 0.0
    %219 = vmatprep.subr.mxu0 0.0
    %220 = vmatpush1.msra.mxu0 0.0
    %221 = vmatprep.subr.mxu0 0.0
    %222 = vmatpush1.msra.mxu0 0.0
    %223 = vmatprep.subr.mxu0 0.0
    %224 = vmatpush1.msra.mxu0 0.0
    %225 = vmatprep.subr.mxu0 0.0
    %226 = vmatpush1.msra.mxu0 0.0
    %227 = vmatprep.subr.mxu0 0.0
    %228 = vmatpush1.msra.mxu0 0.0
    %229 = vmatprep.subr.mxu0 %v147
    %230 = vmatpush1.msra.mxu0 %v146
    %231 = vmatprep.subr.mxu0 %v145
    %232 = vmatpush1.msra.mxu0 %v144
    %233 = vmatprep.subr.mxu0 0.0
    %234 = vmatpush2.msra.mxu0 0.0
    %235 = vmatprep.subr.mxu0 0.0
    %236 = vmatpush2.msra.mxu0 0.0
    %237 = vmatprep.subr.mxu0 0.0
    %238 = vmatpush2.msra.mxu0 0.0
    %239 = vmatprep.subr.mxu0 0.0
    %240 = vmatpush2.msra.mxu0 0.0
    %241 = vmatprep.subr.mxu0 0.0
    %242 = vmatpush2.msra.mxu0 0.0
    %243 = vmatprep.subr.mxu0 0.0
    %244 = vmatpush2.msra.mxu0 0.0
    %245 = vmatprep.subr.mxu0 0.0
    %246 = vmatpush2.msra.mxu0 0.0
    %247 = vmatprep.subr.mxu0 0.0
    %248 = vmatpush2.msra.mxu0 0.0
    %249 = vmatprep.subr.mxu0 0.0
    %250 = vmatpush2.msra.mxu0 0.0
    %251 = vmatprep.subr.mxu0 0.0
    %252 = vmatpush2.msra.mxu0 0.0
    %253 = vmatprep.subr.mxu0 0.0
    %254 = vmatpush2.msra.mxu0 0.0
    %255 = vmatprep.subr.mxu0 0.0
    %256 = vmatpush2.msra.mxu0 0.0
    %257 = vmatprep.subr.mxu0 0.0
    %258 = vmatpush2.msra.mxu0 0.0
    %259 = vmatprep.subr.mxu0 0.0
    %260 = vmatpush2.msra.mxu0 0.0
    %261 = vmatprep.subr.mxu0 0.0
    %262 = vmatpush2.msra.mxu0 0.0
    %263 = vmatprep.subr.mxu0 0.0
    %264 = vmatpush2.msra.mxu0 0.0
    %265 = vmatprep.mubr.f32.mxu0 0.0
    %266 = vmatmul.mubr.f32.gmra.mxu0 %v178
    %v267 = vpop.f32.mrf.mxu0
    %v268 = vadd.f32 %v169, %v267
    %v269 = vpop.f32.mrf.mxu0
    %v270 = vadd.f32 %v173, %v269
    %271 = vmatprep.mubr.f32.mxu0 0.0
    %272 = vmatmul.mubr.f32.gmra.mxu0 %v181
    %v273 = vpop.f32.mrf.mxu0
    %v274 = vadd.f32 %v169, %v273
    %v275 = vpop.f32.mrf.mxu0
    %v276 = vadd.f32 %v173, %v275
    %277 = vmatprep.mubr.f32.mxu0 0.0
    %278 = vmatmul.mubr.f32.gmra.mxu0 %v184
    %v279 = vpop.f32.mrf.mxu0
    %v280 = vadd.f32 %v169, %v279
    %v281 = vpop.f32.mrf.mxu0
    %v282 = vadd.f32 %v173, %v281
    %283 = vmatprep.mubr.f32.mxu0 0.0
    %284 = vmatmul.mubr.f32.gmra.mxu0 %v187
    %v285 = vpop.f32.mrf.mxu0
    %v286 = vadd.f32 %v169, %v285
    %v287 = vpop.f32.mrf.mxu0
    %v288 = vadd.f32 %v173, %v287
    %289 = vmatprep.mubr.f32.mxu0 0.0
    %290 = vmatmul.mubr.f32.gmra.mxu0 %v190
    %v291 = vpop.f32.mrf.mxu0
    %v292 = vadd.f32 %v169, %v291
    %v293 = vpop.f32.mrf.mxu0
    %v294 = vadd.f32 %v173, %v293
    %295 = vmatprep.mubr.f32.mxu0 0.0
    %296 = vmatmul.mubr.f32.gmra.mxu0 %v193
    %v297 = vpop.f32.mrf.mxu0
    %v298 = vadd.f32 %v169, %v297
    %v299 = vpop.f32.mrf.mxu0
    %v300 = vadd.f32 %v173, %v299
    %301 = vmatprep.mubr.f32.mxu0 0.0
    %302 = vmatmul.mubr.f32.gmra.mxu0 %v196
    %v303 = vpop.f32.mrf.mxu0
    %v304 = vadd.f32 %v169, %v303
    %v305 = vpop.f32.mrf.mxu0
    %v306 = vadd.f32 %v173, %v305
    %307 = vmatprep.mubr.f32.mxu0 0.0
    %308 = vmatmul.mubr.f32.gmra.mxu0 %v199
    %v309 = vpop.f32.mrf.mxu0
    %v310 = vadd.f32 %v169, %v309
    %v311 = vpop.f32.mrf.mxu0
    %v312 = vadd.f32 %v173, %v311
    %313 = vdwg.mxu0
    %v314 = vsel %vm134, %v268, %v310
    %v315 = vsel %vm135, %v270, %v312
    %v316 = vsel %vm134, %v274, %v304
    %v317 = vsel %vm135, %v276, %v306
    %v318 = vsel %vm134, %v280, %v298
    %v319 = vsel %vm135, %v282, %v300
    %v320 = vsel %vm134, %v286, %v292
    %v321 = vsel %vm135, %v288, %v294
    %v322 = vsel %vm134, %v292, %v286
    %v323 = vsel %vm135, %v294, %v288
    %v324 = vsel %vm134, %v298, %v280
    %v325 = vsel %vm135, %v300, %v282
    %v326 = vsel %vm134, %v304, %v274
    %v327 = vsel %vm135, %v306, %v276
    %v328 = vsel %vm134, %v310, %v268
    %v329 = vsel %vm135, %v312, %v270
    %vm330 = vcmask 523264
    %v332 = vsel %vm330, 0.0, 0
    %334 = vmatprep.subr.mxu0 0.0
    %335 = vmatpush1.msra.mxu0 0.0
    %336 = vmatprep.subr.mxu0 0.0
    %337 = vmatpush1.msra.mxu0 0.0
    %338 = vmatprep.subr.mxu0 0.0
    %339 = vmatpush1.msra.mxu0 0.0
    %340 = vmatprep.subr.mxu0 0.0
    %341 = vmatpush1.msra.mxu0 0.0
    %342 = vmatprep.subr.mxu0 0.0
    %343 = vmatpush1.msra.mxu0 0.0
    %344 = vmatprep.subr.mxu0 0.0
    %345 = vmatpush1.msra.mxu0 0.0
    %346 = vmatprep.subr.mxu0 0.0
    %347 = vmatpush1.msra.mxu0 0.0
    %348 = vmatprep.subr.mxu0 0.0
    %349 = vmatpush1.msra.mxu0 0.0
    %350 = vmatprep.subr.mxu0 %v164
    %351 = vmatpush1.msra.mxu0 %v163
    %352 = vmatprep.subr.mxu0 %v162
    %353 = vmatpush1.msra.mxu0 %v161
    %354 = vmatprep.subr.mxu0 %v160
    %355 = vmatpush1.msra.mxu0 %v159
    %356 = vmatprep.subr.mxu0 %v158
    %357 = vmatpush1.msra.mxu0 %v157
    %358 = vmatprep.subr.mxu0 %v156
    %359 = vmatpush1.msra.mxu0 %v155
    %360 = vmatprep.subr.mxu0 %v154
    %361 = vmatpush1.msra.mxu0 %v153
    %362 = vmatprep.subr.mxu0 %v152
    %363 = vmatpush1.msra.mxu0 %v151
    %364 = vmatprep.subr.mxu0 %v150
    %365 = vmatpush1.msra.mxu0 %v149
    %366 = vmatprep.subr.mxu0 0.0
    %367 = vmatpush2.msra.mxu0 0.0
    %368 = vmatprep.subr.mxu0 0.0
    %369 = vmatpush2.msra.mxu0 0.0
    %370 = vmatprep.subr.mxu0 0.0
    %371 = vmatpush2.msra.mxu0 0.0
    %372 = vmatprep.subr.mxu0 0.0
    %373 = vmatpush2.msra.mxu0 0.0
    %374 = vmatprep.subr.mxu0 0.0
    %375 = vmatpush2.msra.mxu0 0.0
    %376 = vmatprep.subr.mxu0 0.0
    %377 = vmatpush2.msra.mxu0 0.0
    %378 = vmatprep.subr.mxu0 0.0
    %379 = vmatpush2.msra.mxu0 0.0
    %380 = vmatprep.subr.mxu0 0.0
    %381 = vmatpush2.msra.mxu0 0.0
    %382 = vmatprep.subr.mxu0 0.0
    %383 = vmatpush2.msra.mxu0 0.0
    %384 = vmatprep.subr.mxu0 0.0
    %385 = vmatpush2.msra.mxu0 0.0
    %386 = vmatprep.subr.mxu0 0.0
    %387 = vmatpush2.msra.mxu0 0.0
    %388 = vmatprep.subr.mxu0 0.0
    %389 = vmatpush2.msra.mxu0 0.0
    %390 = vmatprep.subr.mxu0 0.0
    %391 = vmatpush2.msra.mxu0 0.0
    %392 = vmatprep.subr.mxu0 0.0
    %393 = vmatpush2.msra.mxu0 0.0
    %394 = vmatprep.subr.mxu0 0.0
    %395 = vmatpush2.msra.mxu0 0.0
    %396 = vmatprep.subr.mxu0 0.0
    %397 = vmatpush2.msra.mxu0 0.0
    %398 = vmatprep.mubr.f32.mxu0 0.0
    %399 = vmatmul.mubr.f32.gmra.mxu0 %v332
    %v400 = vpop.f32.mrf.mxu0
    %v401 = vadd.f32 0.0, %v400
    %v402 = vpop.f32.mrf.mxu0
    %v403 = vadd.f32 0.0, %v402
    %404 = vdwg.mxu0
    %v405 = vadd.f32 %v314, %v401
    %v406 = vadd.f32 %v315, %v403
    %v407 = vxor.u32 %v405, 2147483648
    %v408 = vxor.u32 %v406, 2147483648
    %v409 = vmul.f32 %v407, 1.442695
    %v410 = vpow.pop %v409
    %v411 = vmul.f32 %v408, 1.442695
    %v412 = vpow.pop %v411
    %v413 = vadd.f32 %v410, 1.0
    %v414 = vadd.f32 %v412, 1.0
    %v415 = vrcp.pop %v413
    %v416 = vmul.f32 1.0, %v415
    %v417 = vrcp.pop %v414
    %v418 = vmul.f32 1.0, %v417
    %v419 = vtanh.pop %v406
    %v420 = vmul.f32 %v416, 0.0
    %422 = vrot.lane.b32.xlu0 %v419, 64
    %v423 = vpop.permute.xlu0 %422
    %v425 = vmul.f32 %v416, %v423
    %427 = vrot.lane.b32.xlu0 %v425, 64
    %v428 = vpop.permute.xlu0 %427
    %v430 = vadd.f32 %v420, %v428
    %v431 = vtanh.pop %v430
    %433 = vrot.lane.b32.xlu0 %v431, 64
    %v434 = vpop.permute.xlu0 %433
    %v436 = vmul.f32 %v418, %v434
    %v438 = vsel %vm330, %v436, 0
    %440 = vmatprep.subr.mxu0 0.0
    %441 = vmatpush1.msra.mxu0 0.0
    %442 = vmatprep.subr.mxu0 0.0
    %443 = vmatpush1.msra.mxu0 0.0
    %444 = vmatprep.subr.mxu0 0.0
    %445 = vmatpush1.msra.mxu0 0.0
    %446 = vmatprep.subr.mxu0 0.0
    %447 = vmatpush1.msra.mxu0 0.0
    %448 = vmatprep.subr.mxu0 0.0
    %449 = vmatpush1.msra.mxu0 0.0
    %450 = vmatprep.subr.mxu0 0.0
    %451 = vmatpush1.msra.mxu0 0.0
    %452 = vmatprep.subr.mxu0 0.0
    %453 = vmatpush1.msra.mxu0 0.0
    %454 = vmatprep.subr.mxu0 0.0
    %455 = vmatpush1.msra.mxu0 0.0
    %456 = vmatprep.subr.mxu0 %v164
    %457 = vmatpush1.msra.mxu0 %v163
    %458 = vmatprep.subr.mxu0 %v162
    %459 = vmatpush1.msra.mxu0 %v161
    %460 = vmatprep.subr.mxu0 %v160
    %461 = vmatpush1.msra.mxu0 %v159
    %462 = vmatprep.subr.mxu0 %v158
    %463 = vmatpush1.msra.mxu0 %v157
    %464 = vmatprep.subr.mxu0 %v156
    %465 = vmatpush1.msra.mxu0 %v155
    %466 = vmatprep.subr.mxu0 %v154
    %467 = vmatpush1.msra.mxu0 %v153
    %468 = vmatprep.subr.mxu0 %v152
    %469 = vmatpush1.msra.mxu0 %v151
    %470 = vmatprep.subr.mxu0 %v150
    %471 = vmatpush1.msra.mxu0 %v149
    %472 = vmatprep.subr.mxu0 0.0
    %473 = vmatpush2.msra.mxu0 0.0
    %474 = vmatprep.subr.mxu0 0.0
    %475 = vmatpush2.msra.mxu0 0.0
    %476 = vmatprep.subr.mxu0 0.0
    %477 = vmatpush2.msra.mxu0 0.0
    %478 = vmatprep.subr.mxu0 0.0
    %479 = vmatpush2.msra.mxu0 0.0
    %480 = vmatprep.subr.mxu0 0.0
    %481 = vmatpush2.msra.mxu0 0.0
    %482 = vmatprep.subr.mxu0 0.0
    %483 = vmatpush2.msra.mxu0 0.0
    %484 = vmatprep.subr.mxu0 0.0
    %485 = vmatpush2.msra.mxu0 0.0
    %486 = vmatprep.subr.mxu0 0.0
    %487 = vmatpush2.msra.mxu0 0.0
    %488 = vmatprep.subr.mxu0 0.0
    %489 = vmatpush2.msra.mxu0 0.0
    %490 = vmatprep.subr.mxu0 0.0
    %491 = vmatpush2.msra.mxu0 0.0
    %492 = vmatprep.subr.mxu0 0.0
    %493 = vmatpush2.msra.mxu0 0.0
    %494 = vmatprep.subr.mxu0 0.0
    %495 = vmatpush2.msra.mxu0 0.0
    %496 = vmatprep.subr.mxu0 0.0
    %497 = vmatpush2.msra.mxu0 0.0
    %498 = vmatprep.subr.mxu0 0.0
    %499 = vmatpush2.msra.mxu0 0.0
    %500 = vmatprep.subr.mxu0 0.0
    %501 = vmatpush2.msra.mxu0 0.0
    %502 = vmatprep.subr.mxu0 0.0
    %503 = vmatpush2.msra.mxu0 0.0
    %504 = vmatprep.mubr.f32.mxu0 0.0
    %505 = vmatmul.mubr.f32.gmra.mxu0 %v438
    %v506 = vpop.f32.mrf.mxu0
    %v507 = vadd.f32 0.0, %v506
    %v508 = vpop.f32.mrf.mxu0
    %v509 = vadd.f32 0.0, %v508
    %510 = vdwg.mxu0
    %v511 = vadd.f32 %v316, %v507
    %v512 = vadd.f32 %v317, %v509
    %v513 = vxor.u32 %v511, 2147483648
    %v514 = vxor.u32 %v512, 2147483648
    %v515 = vmul.f32 %v513, 1.442695
    %v516 = vpow.pop %v515
    %v517 = vmul.f32 %v514, 1.442695
    %v518 = vpow.pop %v517
    %v519 = vadd.f32 %v516, 1.0
    %v520 = vadd.f32 %v518, 1.0
    %v521 = vrcp.pop %v519
    %v522 = vmul.f32 1.0, %v521
    %v523 = vrcp.pop %v520
    %v524 = vmul.f32 1.0, %v523
    %v525 = vtanh.pop %v512
    %v526 = vmul.f32 %v522, %v430
    %528 = vrot.lane.b32.xlu0 %v525, 64
    %v529 = vpop.permute.xlu0 %528
    %v531 = vmul.f32 %v522, %v529
    %533 = vrot.lane.b32.xlu0 %v531, 64
    %v534 = vpop.permute.xlu0 %533
    %v536 = vadd.f32 %v526, %v534
    %v537 = vtanh.pop %v536
    %539 = vrot.lane.b32.xlu0 %v537, 64
    %v540 = vpop.permute.xlu0 %539
    %v542 = vmul.f32 %v524, %v540
    %v544 = vsel %vm330, %v542, 0
    %546 = vmatprep.subr.mxu0 0.0
    %547 = vmatpush1.msra.mxu0 0.0
    %548 = vmatprep.subr.mxu0 0.0
    %549 = vmatpush1.msra.mxu0 0.0
    %550 = vmatprep.subr.mxu0 0.0
    %551 = vmatpush1.msra.mxu0 0.0
    %552 = vmatprep.subr.mxu0 0.0
    %553 = vmatpush1.msra.mxu0 0.0
    %554 = vmatprep.subr.mxu0 0.0
    %555 = vmatpush1.msra.mxu0 0.0
    %556 = vmatprep.subr.mxu0 0.0
    %557 = vmatpush1.msra.mxu0 0.0
    %558 = vmatprep.subr.mxu0 0.0
    %559 = vmatpush1.msra.mxu0 0.0
    %560 = vmatprep.subr.mxu0 0.0
    %561 = vmatpush1.msra.mxu0 0.0
    %562 = vmatprep.subr.mxu0 %v164
    %563 = vmatpush1.msra.mxu0 %v163
    %564 = vmatprep.subr.mxu0 %v162
    %565 = vmatpush1.msra.mxu0 %v161
    %566 = vmatprep.subr.mxu0 %v160
    %567 = vmatpush1.msra.mxu0 %v159
    %568 = vmatprep.subr.mxu0 %v158
    %569 = vmatpush1.msra.mxu0 %v157
    %570 = vmatprep.subr.mxu0 %v156
    %571 = vmatpush1.msra.mxu0 %v155
    %572 = vmatprep.subr.mxu0 %v154
    %573 = vmatpush1.msra.mxu0 %v153
    %574 = vmatprep.subr.mxu0 %v152
    %575 = vmatpush1.msra.mxu0 %v151
    %576 = vmatprep.subr.mxu0 %v150
    %577 = vmatpush1.msra.mxu0 %v149
    %578 = vmatprep.subr.mxu0 0.0
    %579 = vmatpush2.msra.mxu0 0.0
    %580 = vmatprep.subr.mxu0 0.0
    %581 = vmatpush2.msra.mxu0 0.0
    %582 = vmatprep.subr.mxu0 0.0
    %583 = vmatpush2.msra.mxu0 0.0
    %584 = vmatprep.subr.mxu0 0.0
    %585 = vmatpush2.msra.mxu0 0.0
    %586 = vmatprep.subr.mxu0 0.0
    %587 = vmatpush2.msra.mxu0 0.0
    %588 = vmatprep.subr.mxu0 0.0
    %589 = vmatpush2.msra.mxu0 0.0
    %590 = vmatprep.subr.mxu0 0.0
    %591 = vmatpush2.msra.mxu0 0.0
    %592 = vmatprep.subr.mxu0 0.0
    %593 = vmatpush2.msra.mxu0 0.0
    %594 = vmatprep.subr.mxu0 0.0
    %595 = vmatpush2.msra.mxu0 0.0
    %596 = vmatprep.subr.mxu0 0.0
    %597 = vmatpush2.msra.mxu0 0.0
    %598 = vmatprep.subr.mxu0 0.0
    %599 = vmatpush2.msra.mxu0 0.0
    %600 = vmatprep.subr.mxu0 0.0
    %601 = vmatpush2.msra.mxu0 0.0
    %602 = vmatprep.subr.mxu0 0.0
    %603 = vmatpush2.msra.mxu0 0.0
    %604 = vmatprep.subr.mxu0 0.0
    %605 = vmatpush2.msra.mxu0 0.0
    %606 = vmatprep.subr.mxu0 0.0
    %607 = vmatpush2.msra.mxu0 0.0
    %608 = vmatprep.subr.mxu0 0.0
    %609 = vmatpush2.msra.mxu0 0.0
    %610 = vmatprep.mubr.f32.mxu0 0.0
    %611 = vmatmul.mubr.f32.gmra.mxu0 %v544
    %v612 = vpop.f32.mrf.mxu0
    %v613 = vadd.f32 0.0, %v612
    %v614 = vpop.f32.mrf.mxu0
    %v615 = vadd.f32 0.0, %v614
    %616 = vdwg.mxu0
    %v617 = vadd.f32 %v318, %v613
    %v618 = vadd.f32 %v319, %v615
    %v619 = vxor.u32 %v617, 2147483648
    %v620 = vxor.u32 %v618, 2147483648
    %v621 = vmul.f32 %v619, 1.442695
    %v622 = vpow.pop %v621
    %v623 = vmul.f32 %v620, 1.442695
    %v624 = vpow.pop %v623
    %v625 = vadd.f32 %v622, 1.0
    %v626 = vadd.f32 %v624, 1.0
    %v627 = vrcp.pop %v625
    %v628 = vmul.f32 1.0, %v627
    %v629 = vrcp.pop %v626
    %v630 = vmul.f32 1.0, %v629
    %v631 = vtanh.pop %v618
    %v632 = vmul.f32 %v628, %v536
    %634 = vrot.lane.b32.xlu0 %v631, 64
    %v635 = vpop.permute.xlu0 %634
    %v637 = vmul.f32 %v628, %v635
    %639 = vrot.lane.b32.xlu0 %v637, 64
    %v640 = vpop.permute.xlu0 %639
    %v642 = vadd.f32 %v632, %v640
    %v643 = vtanh.pop %v642
    %645 = vrot.lane.b32.xlu0 %v643, 64
    %v646 = vpop.permute.xlu0 %645
    %v648 = vmul.f32 %v630, %v646
    %v650 = vsel %vm330, %v648, 0
    %652 = vmatprep.subr.mxu0 0.0
    %653 = vmatpush1.msra.mxu0 0.0
    %654 = vmatprep.subr.mxu0 0.0
    %655 = vmatpush1.msra.mxu0 0.0
    %656 = vmatprep.subr.mxu0 0.0
    %657 = vmatpush1.msra.mxu0 0.0
    %658 = vmatprep.subr.mxu0 0.0
    %659 = vmatpush1.msra.mxu0 0.0
    %660 = vmatprep.subr.mxu0 0.0
    %661 = vmatpush1.msra.mxu0 0.0
    %662 = vmatprep.subr.mxu0 0.0
    %663 = vmatpush1.msra.mxu0 0.0
    %664 = vmatprep.subr.mxu0 0.0
    %665 = vmatpush1.msra.mxu0 0.0
    %666 = vmatprep.subr.mxu0 0.0
    %667 = vmatpush1.msra.mxu0 0.0
    %668 = vmatprep.subr.mxu0 %v164
    %669 = vmatpush1.msra.mxu0 %v163
    %670 = vmatprep.subr.mxu0 %v162
    %671 = vmatpush1.msra.mxu0 %v161
    %672 = vmatprep.subr.mxu0 %v160
    %673 = vmatpush1.msra.mxu0 %v159
    %674 = vmatprep.subr.mxu0 %v158
    %675 = vmatpush1.msra.mxu0 %v157
    %676 = vmatprep.subr.mxu0 %v156
    %677 = vmatpush1.msra.mxu0 %v155
    %678 = vmatprep.subr.mxu0 %v154
    %679 = vmatpush1.msra.mxu0 %v153
    %680 = vmatprep.subr.mxu0 %v152
    %681 = vmatpush1.msra.mxu0 %v151
    %682 = vmatprep.subr.mxu0 %v150
    %683 = vmatpush1.msra.mxu0 %v149
    %684 = vmatprep.subr.mxu0 0.0
    %685 = vmatpush2.msra.mxu0 0.0
    %686 = vmatprep.subr.mxu0 0.0
    %687 = vmatpush2.msra.mxu0 0.0
    %688 = vmatprep.subr.mxu0 0.0
    %689 = vmatpush2.msra.mxu0 0.0
    %690 = vmatprep.subr.mxu0 0.0
    %691 = vmatpush2.msra.mxu0 0.0
    %692 = vmatprep.subr.mxu0 0.0
    %693 = vmatpush2.msra.mxu0 0.0
    %694 = vmatprep.subr.mxu0 0.0
    %695 = vmatpush2.msra.mxu0 0.0
    %696 = vmatprep.subr.mxu0 0.0
    %697 = vmatpush2.msra.mxu0 0.0
    %698 = vmatprep.subr.mxu0 0.0
    %699 = vmatpush2.msra.mxu0 0.0
    %700 = vmatprep.subr.mxu0 0.0
    %701 = vmatpush2.msra.mxu0 0.0
    %702 = vmatprep.subr.mxu0 0.0
    %703 = vmatpush2.msra.mxu0 0.0
    %704 = vmatprep.subr.mxu0 0.0
    %705 = vmatpush2.msra.mxu0 0.0
    %706 = vmatprep.subr.mxu0 0.0
    %707 = vmatpush2.msra.mxu0 0.0
    %708 = vmatprep.subr.mxu0 0.0
    %709 = vmatpush2.msra.mxu0 0.0
    %710 = vmatprep.subr.mxu0 0.0
    %711 = vmatpush2.msra.mxu0 0.0
    %712 = vmatprep.subr.mxu0 0.0
    %713 = vmatpush2.msra.mxu0 0.0
    %714 = vmatprep.subr.mxu0 0.0
    %715 = vmatpush2.msra.mxu0 0.0
    %716 = vmatprep.mubr.f32.mxu0 0.0
    %717 = vmatmul.mubr.f32.gmra.mxu0 %v650
    %v718 = vpop.f32.mrf.mxu0
    %v719 = vadd.f32 0.0, %v718
    %v720 = vpop.f32.mrf.mxu0
    %v721 = vadd.f32 0.0, %v720
    %722 = vdwg.mxu0
    %v723 = vadd.f32 %v320, %v719
    %v724 = vadd.f32 %v321, %v721
    %v725 = vxor.u32 %v723, 2147483648
    %v726 = vxor.u32 %v724, 2147483648
    %v727 = vmul.f32 %v725, 1.442695
    %v728 = vpow.pop %v727
    %v729 = vmul.f32 %v726, 1.442695
    %v730 = vpow.pop %v729
    %v731 = vadd.f32 %v728, 1.0
    %v732 = vadd.f32 %v730, 1.0
    %v733 = vrcp.pop %v731
    %v734 = vmul.f32 1.0, %v733
    %v735 = vrcp.pop %v732
    %v736 = vmul.f32 1.0, %v735
    %v737 = vtanh.pop %v724
    %v738 = vmul.f32 %v734, %v642
    %740 = vrot.lane.b32.xlu0 %v737, 64
    %v741 = vpop.permute.xlu0 %740
    %v743 = vmul.f32 %v734, %v741
    %745 = vrot.lane.b32.xlu0 %v743, 64
    %v746 = vpop.permute.xlu0 %745
    %v748 = vadd.f32 %v738, %v746
    %v749 = vtanh.pop %v748
    %751 = vrot.lane.b32.xlu0 %v749, 64
    %v752 = vpop.permute.xlu0 %751
    %v754 = vmul.f32 %v736, %v752
    %v756 = vsel %vm330, %v754, 0
    %758 = vmatprep.subr.mxu0 0.0
    %759 = vmatpush1.msra.mxu0 0.0
    %760 = vmatprep.subr.mxu0 0.0
    %761 = vmatpush1.msra.mxu0 0.0
    %762 = vmatprep.subr.mxu0 0.0
    %763 = vmatpush1.msra.mxu0 0.0
    %764 = vmatprep.subr.mxu0 0.0
    %765 = vmatpush1.msra.mxu0 0.0
    %766 = vmatprep.subr.mxu0 0.0
    %767 = vmatpush1.msra.mxu0 0.0
    %768 = vmatprep.subr.mxu0 0.0
    %769 = vmatpush1.msra.mxu0 0.0
    %770 = vmatprep.subr.mxu0 0.0
    %771 = vmatpush1.msra.mxu0 0.0
    %772 = vmatprep.subr.mxu0 0.0
    %773 = vmatpush1.msra.mxu0 0.0
    %774 = vmatprep.subr.mxu0 %v164
    %775 = vmatpush1.msra.mxu0 %v163
    %776 = vmatprep.subr.mxu0 %v162
    %777 = vmatpush1.msra.mxu0 %v161
    %778 = vmatprep.subr.mxu0 %v160
    %779 = vmatpush1.msra.mxu0 %v159
    %780 = vmatprep.subr.mxu0 %v158
    %781 = vmatpush1.msra.mxu0 %v157
    %782 = vmatprep.subr.mxu0 %v156
    %783 = vmatpush1.msra.mxu0 %v155
    %784 = vmatprep.subr.mxu0 %v154
    %785 = vmatpush1.msra.mxu0 %v153
    %786 = vmatprep.subr.mxu0 %v152
    %787 = vmatpush1.msra.mxu0 %v151
    %788 = vmatprep.subr.mxu0 %v150
    %789 = vmatpush1.msra.mxu0 %v149
    %790 = vmatprep.subr.mxu0 0.0
    %791 = vmatpush2.msra.mxu0 0.0
    %792 = vmatprep.subr.mxu0 0.0
    %793 = vmatpush2.msra.mxu0 0.0
    %794 = vmatprep.subr.mxu0 0.0
    %795 = vmatpush2.msra.mxu0 0.0
    %796 = vmatprep.subr.mxu0 0.0
    %797 = vmatpush2.msra.mxu0 0.0
    %798 = vmatprep.subr.mxu0 0.0
    %799 = vmatpush2.msra.mxu0 0.0
    %800 = vmatprep.subr.mxu0 0.0
    %801 = vmatpush2.msra.mxu0 0.0
    %802 = vmatprep.subr.mxu0 0.0
    %803 = vmatpush2.msra.mxu0 0.0
    %804 = vmatprep.subr.mxu0 0.0
    %805 = vmatpush2.msra.mxu0 0.0
    %806 = vmatprep.subr.mxu0 0.0
    %807 = vmatpush2.msra.mxu0 0.0
    %808 = vmatprep.subr.mxu0 0.0
    %809 = vmatpush2.msra.mxu0 0.0
    %810 = vmatprep.subr.mxu0 0.0
    %811 = vmatpush2.msra.mxu0 0.0
    %812 = vmatprep.subr.mxu0 0.0
    %813 = vmatpush2.msra.mxu0 0.0
    %814 = vmatprep.subr.mxu0 0.0
    %815 = vmatpush2.msra.mxu0 0.0
    %816 = vmatprep.subr.mxu0 0.0
    %817 = vmatpush2.msra.mxu0 0.0
    %818 = vmatprep.subr.mxu0 0.0
    %819 = vmatpush2.msra.mxu0 0.0
    %820 = vmatprep.subr.mxu0 0.0
    %821 = vmatpush2.msra.mxu0 0.0
    %822 = vmatprep.mubr.f32.mxu0 0.0
    %823 = vmatmul.mubr.f32.gmra.mxu0 %v756
    %v824 = vpop.f32.mrf.mxu0
    %v825 = vadd.f32 0.0, %v824
    %v826 = vpop.f32.mrf.mxu0
    %v827 = vadd.f32 0.0, %v826
    %828 = vdwg.mxu0
    %v829 = vadd.f32 %v322, %v825
    %v830 = vadd.f32 %v323, %v827
    %v831 = vxor.u32 %v829, 2147483648
    %v832 = vxor.u32 %v830, 2147483648
    %v833 = vmul.f32 %v831, 1.442695
    %v834 = vpow.pop %v833
    %v835 = vmul.f32 %v832, 1.442695
    %v836 = vpow.pop %v835
    %v837 = vadd.f32 %v834, 1.0
    %v838 = vadd.f32 %v836, 1.0
    %v839 = vrcp.pop %v837
    %v840 = vmul.f32 1.0, %v839
    %v841 = vrcp.pop %v838
    %v842 = vmul.f32 1.0, %v841
    %v843 = vtanh.pop %v830
    %v844 = vmul.f32 %v840, %v748
    %846 = vrot.lane.b32.xlu0 %v843, 64
    %v847 = vpop.permute.xlu0 %846
    %v849 = vmul.f32 %v840, %v847
    %851 = vrot.lane.b32.xlu0 %v849, 64
    %v852 = vpop.permute.xlu0 %851
    %v854 = vadd.f32 %v844, %v852
    %v855 = vtanh.pop %v854
    %857 = vrot.lane.b32.xlu0 %v855, 64
    %v858 = vpop.permute.xlu0 %857
    %v860 = vmul.f32 %v842, %v858
    %v862 = vsel %vm330, %v860, 0
    %864 = vmatprep.subr.mxu0 0.0
    %865 = vmatpush1.msra.mxu0 0.0
    %866 = vmatprep.subr.mxu0 0.0
    %867 = vmatpush1.msra.mxu0 0.0
    %868 = vmatprep.subr.mxu0 0.0
    %869 = vmatpush1.msra.mxu0 0.0
    %870 = vmatprep.subr.mxu0 0.0
    %871 = vmatpush1.msra.mxu0 0.0
    %872 = vmatprep.subr.mxu0 0.0
    %873 = vmatpush1.msra.mxu0 0.0
    %874 = vmatprep.subr.mxu0 0.0
    %875 = vmatpush1.msra.mxu0 0.0
    %876 = vmatprep.subr.mxu0 0.0
    %877 = vmatpush1.msra.mxu0 0.0
    %878 = vmatprep.subr.mxu0 0.0
    %879 = vmatpush1.msra.mxu0 0.0
    %880 = vmatprep.subr.mxu0 %v164
    %881 = vmatpush1.msra.mxu0 %v163
    %882 = vmatprep.subr.mxu0 %v162
    %883 = vmatpush1.msra.mxu0 %v161
    %884 = vmatprep.subr.mxu0 %v160
    %885 = vmatpush1.msra.mxu0 %v159
    %886 = vmatprep.subr.mxu0 %v158
    %887 = vmatpush1.msra.mxu0 %v157
    %888 = vmatprep.subr.mxu0 %v156
    %889 = vmatpush1.msra.mxu0 %v155
    %890 = vmatprep.subr.mxu0 %v154
    %891 = vmatpush1.msra.mxu0 %v153
    %892 = vmatprep.subr.mxu0 %v152
    %893 = vmatpush1.msra.mxu0 %v151
    %894 = vmatprep.subr.mxu0 %v150
    %895 = vmatpush1.msra.mxu0 %v149
    %896 = vmatprep.subr.mxu0 0.0
    %897 = vmatpush2.msra.mxu0 0.0
    %898 = vmatprep.subr.mxu0 0.0
    %899 = vmatpush2.msra.mxu0 0.0
    %900 = vmatprep.subr.mxu0 0.0
    %901 = vmatpush2.msra.mxu0 0.0
    %902 = vmatprep.subr.mxu0 0.0
    %903 = vmatpush2.msra.mxu0 0.0
    %904 = vmatprep.subr.mxu0 0.0
    %905 = vmatpush2.msra.mxu0 0.0
    %906 = vmatprep.subr.mxu0 0.0
    %907 = vmatpush2.msra.mxu0 0.0
    %908 = vmatprep.subr.mxu0 0.0
    %909 = vmatpush2.msra.mxu0 0.0
    %910 = vmatprep.subr.mxu0 0.0
    %911 = vmatpush2.msra.mxu0 0.0
    %912 = vmatprep.subr.mxu0 0.0
    %913 = vmatpush2.msra.mxu0 0.0
    %914 = vmatprep.subr.mxu0 0.0
    %915 = vmatpush2.msra.mxu0 0.0
    %916 = vmatprep.subr.mxu0 0.0
    %917 = vmatpush2.msra.mxu0 0.0
    %918 = vmatprep.subr.mxu0 0.0
    %919 = vmatpush2.msra.mxu0 0.0
    %920 = vmatprep.subr.mxu0 0.0
    %921 = vmatpush2.msra.mxu0 0.0
    %922 = vmatprep.subr.mxu0 0.0
    %923 = vmatpush2.msra.mxu0 0.0
    %924 = vmatprep.subr.mxu0 0.0
    %925 = vmatpush2.msra.mxu0 0.0
    %926 = vmatprep.subr.mxu0 0.0
    %927 = vmatpush2.msra.mxu0 0.0
    %928 = vmatprep.mubr.f32.mxu0 0.0
    %929 = vmatmul.mubr.f32.gmra.mxu0 %v862
    %v930 = vpop.f32.mrf.mxu0
    %v931 = vadd.f32 0.0, %v930
    %v932 = vpop.f32.mrf.mxu0
    %v933 = vadd.f32 0.0, %v932
    %934 = vdwg.mxu0
    %v935 = vadd.f32 %v324, %v931
    %v936 = vadd.f32 %v325, %v933
    %v937 = vxor.u32 %v935, 2147483648
    %v938 = vxor.u32 %v936, 2147483648
    %v939 = vmul.f32 %v937, 1.442695
    %v940 = vpow.pop %v939
    %v941 = vmul.f32 %v938, 1.442695
    %v942 = vpow.pop %v941
    %v943 = vadd.f32 %v940, 1.0
    %v944 = vadd.f32 %v942, 1.0
    %v945 = vrcp.pop %v943
    %v946 = vmul.f32 1.0, %v945
    %v947 = vrcp.pop %v944
    %v948 = vmul.f32 1.0, %v947
    %v949 = vtanh.pop %v936
    %v950 = vmul.f32 %v946, %v854
    %952 = vrot.lane.b32.xlu0 %v949, 64
    %v953 = vpop.permute.xlu0 %952
    %v955 = vmul.f32 %v946, %v953
    %957 = vrot.lane.b32.xlu0 %v955, 64
    %v958 = vpop.permute.xlu0 %957
    %v960 = vadd.f32 %v950, %v958
    %v961 = vtanh.pop %v960
    %963 = vrot.lane.b32.xlu0 %v961, 64
    %v964 = vpop.permute.xlu0 %963
    %v966 = vmul.f32 %v948, %v964
    %v968 = vsel %vm330, %v966, 0
    %970 = vmatprep.subr.mxu0 0.0
    %971 = vmatpush1.msra.mxu0 0.0
    %972 = vmatprep.subr.mxu0 0.0
    %973 = vmatpush1.msra.mxu0 0.0
    %974 = vmatprep.subr.mxu0 0.0
    %975 = vmatpush1.msra.mxu0 0.0
    %976 = vmatprep.subr.mxu0 0.0
    %977 = vmatpush1.msra.mxu0 0.0
    %978 = vmatprep.subr.mxu0 0.0
    %979 = vmatpush1.msra.mxu0 0.0
    %980 = vmatprep.subr.mxu0 0.0
    %981 = vmatpush1.msra.mxu0 0.0
    %982 = vmatprep.subr.mxu0 0.0
    %983 = vmatpush1.msra.mxu0 0.0
    %984 = vmatprep.subr.mxu0 0.0
    %985 = vmatpush1.msra.mxu0 0.0
    %986 = vmatprep.subr.mxu0 %v164
    %987 = vmatpush1.msra.mxu0 %v163
    %988 = vmatprep.subr.mxu0 %v162
    %989 = vmatpush1.msra.mxu0 %v161
    %990 = vmatprep.subr.mxu0 %v160
    %991 = vmatpush1.msra.mxu0 %v159
    %992 = vmatprep.subr.mxu0 %v158
    %993 = vmatpush1.msra.mxu0 %v157
    %994 = vmatprep.subr.mxu0 %v156
    %995 = vmatpush1.msra.mxu0 %v155
    %996 = vmatprep.subr.mxu0 %v154
    %997 = vmatpush1.msra.mxu0 %v153
    %998 = vmatprep.subr.mxu0 %v152
    %999 = vmatpush1.msra.mxu0 %v151
    %1000 = vmatprep.subr.mxu0 %v150
    %1001 = vmatpush1.msra.mxu0 %v149
    %1002 = vmatprep.subr.mxu0 0.0
    %1003 = vmatpush2.msra.mxu0 0.0
    %1004 = vmatprep.subr.mxu0 0.0
    %1005 = vmatpush2.msra.mxu0 0.0
    %1006 = vmatprep.subr.mxu0 0.0
    %1007 = vmatpush2.msra.mxu0 0.0
    %1008 = vmatprep.subr.mxu0 0.0
    %1009 = vmatpush2.msra.mxu0 0.0
    %1010 = vmatprep.subr.mxu0 0.0
    %1011 = vmatpush2.msra.mxu0 0.0
    %1012 = vmatprep.subr.mxu0 0.0
    %1013 = vmatpush2.msra.mxu0 0.0
    %1014 = vmatprep.subr.mxu0 0.0
    %1015 = vmatpush2.msra.mxu0 0.0
    %1016 = vmatprep.subr.mxu0 0.0
    %1017 = vmatpush2.msra.mxu0 0.0
    %1018 = vmatprep.subr.mxu0 0.0
    %1019 = vmatpush2.msra.mxu0 0.0
    %1020 = vmatprep.subr.mxu0 0.0
    %1021 = vmatpush2.msra.mxu0 0.0
    %1022 = vmatprep.subr.mxu0 0.0
    %1023 = vmatpush2.msra.mxu0 0.0
    %1024 = vmatprep.subr.mxu0 0.0
    %1025 = vmatpush2.msra.mxu0 0.0
    %1026 = vmatprep.subr.mxu0 0.0
    %1027 = vmatpush2.msra.mxu0 0.0
    %1028 = vmatprep.subr.mxu0 0.0
    %1029 = vmatpush2.msra.mxu0 0.0
    %1030 = vmatprep.subr.mxu0 0.0
    %1031 = vmatpush2.msra.mxu0 0.0
    %1032 = vmatprep.subr.mxu0 0.0
    %1033 = vmatpush2.msra.mxu0 0.0
    %1034 = vmatprep.mubr.f32.mxu0 0.0
    %1035 = vmatmul.mubr.f32.gmra.mxu0 %v968
    %v1036 = vpop.f32.mrf.mxu0
    %v1037 = vadd.f32 0.0, %v1036
    %v1038 = vpop.f32.mrf.mxu0
    %v1039 = vadd.f32 0.0, %v1038
    %1040 = vdwg.mxu0
    %v1041 = vadd.f32 %v326, %v1037
    %v1042 = vadd.f32 %v327, %v1039
    %v1043 = vxor.u32 %v1041, 2147483648
    %v1044 = vxor.u32 %v1042, 2147483648
    %v1045 = vmul.f32 %v1043, 1.442695
    %v1046 = vpow.pop %v1045
    %v1047 = vmul.f32 %v1044, 1.442695
    %v1048 = vpow.pop %v1047
    %v1049 = vadd.f32 %v1046, 1.0
    %v1050 = vadd.f32 %v1048, 1.0
    %v1051 = vrcp.pop %v1049
    %v1052 = vmul.f32 1.0, %v1051
    %v1053 = vrcp.pop %v1050
    %v1054 = vmul.f32 1.0, %v1053
    %v1055 = vtanh.pop %v1042
    %v1056 = vmul.f32 %v1052, %v960
    %1058 = vrot.lane.b32.xlu0 %v1055, 64
    %v1059 = vpop.permute.xlu0 %1058
    %v1061 = vmul.f32 %v1052, %v1059
    %1063 = vrot.lane.b32.xlu0 %v1061, 64
    %v1064 = vpop.permute.xlu0 %1063
    %v1066 = vadd.f32 %v1056, %v1064
    %v1067 = vtanh.pop %v1066
    %1069 = vrot.lane.b32.xlu0 %v1067, 64
    %v1070 = vpop.permute.xlu0 %1069
    %v1072 = vmul.f32 %v1054, %v1070
    %v1074 = vsel %vm330, %v1072, 0
    %1076 = vmatprep.subr.mxu0 0.0
    %1077 = vmatpush1.msra.mxu0 0.0
    %1078 = vmatprep.subr.mxu0 0.0
    %1079 = vmatpush1.msra.mxu0 0.0
    %1080 = vmatprep.subr.mxu0 0.0
    %1081 = vmatpush1.msra.mxu0 0.0
    %1082 = vmatprep.subr.mxu0 0.0
    %1083 = vmatpush1.msra.mxu0 0.0
    %1084 = vmatprep.subr.mxu0 0.0
    %1085 = vmatpush1.msra.mxu0 0.0
    %1086 = vmatprep.subr.mxu0 0.0
    %1087 = vmatpush1.msra.mxu0 0.0
    %1088 = vmatprep.subr.mxu0 0.0
    %1089 = vmatpush1.msra.mxu0 0.0
    %1090 = vmatprep.subr.mxu0 0.0
    %1091 = vmatpush1.msra.mxu0 0.0
    %1092 = vmatprep.subr.mxu0 %v164
    %1093 = vmatpush1.msra.mxu0 %v163
    %1094 = vmatprep.subr.mxu0 %v162
    %1095 = vmatpush1.msra.mxu0 %v161
    %1096 = vmatprep.subr.mxu0 %v160
    %1097 = vmatpush1.msra.mxu0 %v159
    %1098 = vmatprep.subr.mxu0 %v158
    %1099 = vmatpush1.msra.mxu0 %v157
    %1100 = vmatprep.subr.mxu0 %v156
    %1101 = vmatpush1.msra.mxu0 %v155
    %1102 = vmatprep.subr.mxu0 %v154
    %1103 = vmatpush1.msra.mxu0 %v153
    %1104 = vmatprep.subr.mxu0 %v152
    %1105 = vmatpush1.msra.mxu0 %v151
    %1106 = vmatprep.subr.mxu0 %v150
    %1107 = vmatpush1.msra.mxu0 %v149
    %1108 = vmatprep.subr.mxu0 0.0
    %1109 = vmatpush2.msra.mxu0 0.0
    %1110 = vmatprep.subr.mxu0 0.0
    %1111 = vmatpush2.msra.mxu0 0.0
    %1112 = vmatprep.subr.mxu0 0.0
    %1113 = vmatpush2.msra.mxu0 0.0
    %1114 = vmatprep.subr.mxu0 0.0
    %1115 = vmatpush2.msra.mxu0 0.0
    %1116 = vmatprep.subr.mxu0 0.0
    %1117 = vmatpush2.msra.mxu0 0.0
    %1118 = vmatprep.subr.mxu0 0.0
    %1119 = vmatpush2.msra.mxu0 0.0
    %1120 = vmatprep.subr.mxu0 0.0
    %1121 = vmatpush2.msra.mxu0 0.0
    %1122 = vmatprep.subr.mxu0 0.0
    %1123 = vmatpush2.msra.mxu0 0.0
    %1124 = vmatprep.subr.mxu0 0.0
    %1125 = vmatpush2.msra.mxu0 0.0
    %1126 = vmatprep.subr.mxu0 0.0
    %1127 = vmatpush2.msra.mxu0 0.0
    %1128 = vmatprep.subr.mxu0 0.0
    %1129 = vmatpush2.msra.mxu0 0.0
    %1130 = vmatprep.subr.mxu0 0.0
    %1131 = vmatpush2.msra.mxu0 0.0
    %1132 = vmatprep.subr.mxu0 0.0
    %1133 = vmatpush2.msra.mxu0 0.0
    %1134 = vmatprep.subr.mxu0 0.0
    %1135 = vmatpush2.msra.mxu0 0.0
    %1136 = vmatprep.subr.mxu0 0.0
    %1137 = vmatpush2.msra.mxu0 0.0
    %1138 = vmatprep.subr.mxu0 0.0
    %1139 = vmatpush2.msra.mxu0 0.0
    %1140 = vmatprep.mubr.f32.mxu0 0.0
    %1141 = vmatmul.mubr.f32.gmra.mxu0 %v1074
    %v1142 = vpop.f32.mrf.mxu0
    %v1143 = vadd.f32 0.0, %v1142
    %v1144 = vpop.f32.mrf.mxu0
    %v1145 = vadd.f32 0.0, %v1144
    %1146 = vdwg.mxu0
    %v1147 = vadd.f32 %v328, %v1143
    %v1148 = vadd.f32 %v329, %v1145
    %v1149 = vxor.u32 %v1147, 2147483648
    %v1150 = vxor.u32 %v1148, 2147483648
    %v1151 = vmul.f32 %v1149, 1.442695
    %v1152 = vpow.pop %v1151
    %v1153 = vmul.f32 %v1150, 1.442695
    %v1154 = vpow.pop %v1153
    %v1155 = vadd.f32 %v1152, 1.0
    %v1156 = vadd.f32 %v1154, 1.0
    %v1157 = vrcp.pop %v1155
    %v1158 = vmul.f32 1.0, %v1157
    %v1159 = vrcp.pop %v1156
    %v1160 = vmul.f32 1.0, %v1159
    %v1161 = vtanh.pop %v1148
    %v1162 = vmul.f32 %v1158, %v1066
    %1164 = vrot.lane.b32.xlu0 %v1161, 64
    %v1165 = vpop.permute.xlu0 %1164
    %v1167 = vmul.f32 %v1158, %v1165
    %1169 = vrot.lane.b32.xlu0 %v1167, 64
    %v1170 = vpop.permute.xlu0 %1169
    %v1172 = vadd.f32 %v1162, %v1170
    %v1173 = vtanh.pop %v1172
    %1175 = vrot.lane.b32.xlu0 %v1173, 64
    %v1176 = vpop.permute.xlu0 %1175
    %v1178 = vmul.f32 %v1160, %v1176
    %vm1179 = vcmask 261120
    %v1180 = vsel %vm1179, %v436, %v1178
    %v1181 = vsel %vm1179, %v542, %v1072
    %v1182 = vsel %vm1179, %v648, %v966
    %v1183 = vsel %vm1179, %v754, %v860
    %v1184 = vsel %vm1179, %v860, %v754
    %v1185 = vsel %vm1179, %v966, %v648
    %v1186 = vsel %vm1179, %v1072, %v542
    %v1187 = vsel %vm1179, %v1178, %v436
    %v1188 = vld [vmem:[#allocation7] sm:$0xff]
    %v1189 = vld [vmem:[#allocation7 + $0x8] sm:$0xff]
    %v1190 = vld [vmem:[#allocation7 + $0x10] sm:$0xff]
    %v1191 = vld [vmem:[#allocation7 + $0x18] sm:$0xff]
    %v1192 = vld [vmem:[#allocation7 + $0x20] sm:$0xff]
    %v1193 = vld [vmem:[#allocation7 + $0x28] sm:$0xff]
    %v1194 = vld [vmem:[#allocation7 + $0x30] sm:$0xff]
    %v1195 = vld [vmem:[#allocation7 + $0x38] sm:$0xff]
    %v1196 = vld [vmem:[#allocation7 + $0x40] sm:$0xff]
    %v1197 = vld [vmem:[#allocation7 + $0x48] sm:$0xff]
    %v1198 = vld [vmem:[#allocation7 + $0x50] sm:$0xff]
    %v1199 = vld [vmem:[#allocation7 + $0x58] sm:$0xff]
    %v1200 = vld [vmem:[#allocation7 + $0x60] sm:$0xff]
    %v1201 = vld [vmem:[#allocation7 + $0x68] sm:$0xff]
    %v1202 = vld [vmem:[#allocation7 + $0x70] sm:$0xff]
    %v1203 = vld [vmem:[#allocation7 + $0x78] sm:$0xff]
    %v1204 = vld [vmem:[%s6] sm:$0x3]
    %v1205 = vld [vmem:[#allocation8] sm:$0xff]
    %v1206 = vld [vmem:[#allocation8 + $0x8] sm:$0xff]
    %v1207 = vld [vmem:[#allocation8 + $0x10] sm:$0xff]
    %v1208 = vld [vmem:[#allocation8 + $0x18] sm:$0xff]
    %v1209 = vld [vmem:[#allocation8 + $0x20] sm:$0xff]
    %v1210 = vld [vmem:[#allocation8 + $0x28] sm:$0xff]
    %v1211 = vld [vmem:[#allocation8 + $0x30] sm:$0xff]
    %v1212 = vld [vmem:[#allocation8 + $0x38] sm:$0xff]
    %v1213 = vld [vmem:[#allocation8 + $0x40] sm:$0xff]
    %v1214 = vld [vmem:[#allocation8 + $0x48] sm:$0xff]
    %v1215 = vld [vmem:[#allocation8 + $0x50] sm:$0xff]
    %v1216 = vld [vmem:[#allocation8 + $0x58] sm:$0xff]
    %v1217 = vld [vmem:[#allocation8 + $0x60] sm:$0xff]
    %v1218 = vld [vmem:[#allocation8 + $0x68] sm:$0xff]
    %v1219 = vld [vmem:[#allocation8 + $0x70] sm:$0xff]
    %v1220 = vld [vmem:[#allocation8 + $0x78] sm:$0xff]
    %v1222 = vlaneseq
    %v1223 = vshrl.u32 %v1222, 7
    %v1224 = vsub.s32 0, %v1223
    %v1225 = vrot.slane %v1204, %v1224
    %v1226 = vlaneseq
    %v1227 = vshrl.u32 %v1226, 7
    %v1228 = vsub.s32 1, %v1227
    %v1229 = vrot.slane %v1204, %v1228
    %v1233 = vsel %vm330, %v1180, 0
    %v1236 = vsel %vm330, %v1181, 0
    %v1239 = vsel %vm330, %v1182, 0
    %v1242 = vsel %vm330, %v1183, 0
    %v1245 = vsel %vm330, %v1184, 0
    %v1248 = vsel %vm330, %v1185, 0
    %v1251 = vsel %vm330, %v1186, 0
    %v1254 = vsel %vm330, %v1187, 0
    %1256 = vmatprep.subr.mxu0 0.0
    %1257 = vmatpush1.msra.mxu0 0.0
    %1258 = vmatprep.subr.mxu0 0.0
    %1259 = vmatpush1.msra.mxu0 0.0
    %1260 = vmatprep.subr.mxu0 0.0
    %1261 = vmatpush1.msra.mxu0 0.0
    %1262 = vmatprep.subr.mxu0 0.0
    %1263 = vmatpush1.msra.mxu0 0.0
    %1264 = vmatprep.subr.mxu0 0.0
    %1265 = vmatpush1.msra.mxu0 0.0
    %1266 = vmatprep.subr.mxu0 0.0
    %1267 = vmatpush1.msra.mxu0 0.0
    %1268 = vmatprep.subr.mxu0 0.0
    %1269 = vmatpush1.msra.mxu0 0.0
    %1270 = vmatprep.subr.mxu0 0.0
    %1271 = vmatpush1.msra.mxu0 0.0
    %1272 = vmatprep.subr.mxu0 %v1203
    %1273 = vmatpush1.msra.mxu0 %v1202
    %1274 = vmatprep.subr.mxu0 %v1201
    %1275 = vmatpush1.msra.mxu0 %v1200
    %1276 = vmatprep.subr.mxu0 %v1199
    %1277 = vmatpush1.msra.mxu0 %v1198
    %1278 = vmatprep.subr.mxu0 %v1197
    %1279 = vmatpush1.msra.mxu0 %v1196
    %1280 = vmatprep.subr.mxu0 %v1195
    %1281 = vmatpush1.msra.mxu0 %v1194
    %1282 = vmatprep.subr.mxu0 %v1193
    %1283 = vmatpush1.msra.mxu0 %v1192
    %1284 = vmatprep.subr.mxu0 %v1191
    %1285 = vmatpush1.msra.mxu0 %v1190
    %1286 = vmatprep.subr.mxu0 %v1189
    %1287 = vmatpush1.msra.mxu0 %v1188
    %1288 = vmatprep.subr.mxu0 0.0
    %1289 = vmatpush2.msra.mxu0 0.0
    %1290 = vmatprep.subr.mxu0 0.0
    %1291 = vmatpush2.msra.mxu0 0.0
    %1292 = vmatprep.subr.mxu0 0.0
    %1293 = vmatpush2.msra.mxu0 0.0
    %1294 = vmatprep.subr.mxu0 0.0
    %1295 = vmatpush2.msra.mxu0 0.0
    %1296 = vmatprep.subr.mxu0 0.0
    %1297 = vmatpush2.msra.mxu0 0.0
    %1298 = vmatprep.subr.mxu0 0.0
    %1299 = vmatpush2.msra.mxu0 0.0
    %1300 = vmatprep.subr.mxu0 0.0
    %1301 = vmatpush2.msra.mxu0 0.0
    %1302 = vmatprep.subr.mxu0 0.0
    %1303 = vmatpush2.msra.mxu0 0.0
    %1304 = vmatprep.subr.mxu0 0.0
    %1305 = vmatpush2.msra.mxu0 0.0
    %1306 = vmatprep.subr.mxu0 0.0
    %1307 = vmatpush2.msra.mxu0 0.0
    %1308 = vmatprep.subr.mxu0 0.0
    %1309 = vmatpush2.msra.mxu0 0.0
    %1310 = vmatprep.subr.mxu0 0.0
    %1311 = vmatpush2.msra.mxu0 0.0
    %1312 = vmatprep.subr.mxu0 0.0
    %1313 = vmatpush2.msra.mxu0 0.0
    %1314 = vmatprep.subr.mxu0 0.0
    %1315 = vmatpush2.msra.mxu0 0.0
    %1316 = vmatprep.subr.mxu0 0.0
    %1317 = vmatpush2.msra.mxu0 0.0
    %1318 = vmatprep.subr.mxu0 0.0
    %1319 = vmatpush2.msra.mxu0 0.0
    %1320 = vmatprep.mubr.f32.mxu0 0.0
    %1321 = vmatmul.mubr.f32.gmra.mxu0 %v1233
    %v1322 = vpop.f32.mrf.mxu0
    %v1323 = vadd.f32 %v1225, %v1322
    %v1324 = vpop.f32.mrf.mxu0
    %v1325 = vadd.f32 %v1229, %v1324
    %1326 = vmatprep.mubr.f32.mxu0 0.0
    %1327 = vmatmul.mubr.f32.gmra.mxu0 %v1236
    %v1328 = vpop.f32.mrf.mxu0
    %v1329 = vadd.f32 %v1225, %v1328
    %v1330 = vpop.f32.mrf.mxu0
    %v1331 = vadd.f32 %v1229, %v1330
    %1332 = vmatprep.mubr.f32.mxu0 0.0
    %1333 = vmatmul.mubr.f32.gmra.mxu0 %v1239
    %v1334 = vpop.f32.mrf.mxu0
    %v1335 = vadd.f32 %v1225, %v1334
    %v1336 = vpop.f32.mrf.mxu0
    %v1337 = vadd.f32 %v1229, %v1336
    %1338 = vmatprep.mubr.f32.mxu0 0.0
    %1339 = vmatmul.mubr.f32.gmra.mxu0 %v1242
    %v1340 = vpop.f32.mrf.mxu0
    %v1341 = vadd.f32 %v1225, %v1340
    %v1342 = vpop.f32.mrf.mxu0
    %v1343 = vadd.f32 %v1229, %v1342
    %1344 = vmatprep.mubr.f32.mxu0 0.0
    %1345 = vmatmul.mubr.f32.gmra.mxu0 %v1245
    %v1346 = vpop.f32.mrf.mxu0
    %v1347 = vadd.f32 %v1225, %v1346
    %v1348 = vpop.f32.mrf.mxu0
    %v1349 = vadd.f32 %v1229, %v1348
    %1350 = vmatprep.mubr.f32.mxu0 0.0
    %1351 = vmatmul.mubr.f32.gmra.mxu0 %v1248
    %v1352 = vpop.f32.mrf.mxu0
    %v1353 = vadd.f32 %v1225, %v1352
    %v1354 = vpop.f32.mrf.mxu0
    %v1355 = vadd.f32 %v1229, %v1354
    %1356 = vmatprep.mubr.f32.mxu0 0.0
    %1357 = vmatmul.mubr.f32.gmra.mxu0 %v1251
    %v1358 = vpop.f32.mrf.mxu0
    %v1359 = vadd.f32 %v1225, %v1358
    %v1360 = vpop.f32.mrf.mxu0
    %v1361 = vadd.f32 %v1229, %v1360
    %1362 = vmatprep.mubr.f32.mxu0 0.0
    %1363 = vmatmul.mubr.f32.gmra.mxu0 %v1254
    %v1364 = vpop.f32.mrf.mxu0
    %v1365 = vadd.f32 %v1225, %v1364
    %v1366 = vpop.f32.mrf.mxu0
    %v1367 = vadd.f32 %v1229, %v1366
    %1368 = vdwg.mxu0
    %v1369 = vsel %vm134, %v1323, %v1365
    %v1370 = vsel %vm135, %v1325, %v1367
    %v1371 = vsel %vm134, %v1329, %v1359
    %v1372 = vsel %vm135, %v1331, %v1361
    %v1373 = vsel %vm134, %v1335, %v1353
    %v1374 = vsel %vm135, %v1337, %v1355
    %v1375 = vsel %vm134, %v1341, %v1347
    %v1376 = vsel %vm135, %v1343, %v1349
    %v1377 = vsel %vm134, %v1347, %v1341
    %v1378 = vsel %vm135, %v1349, %v1343
    %v1379 = vsel %vm134, %v1353, %v1335
    %v1380 = vsel %vm135, %v1355, %v1337
    %v1381 = vsel %vm134, %v1359, %v1329
    %v1382 = vsel %vm135, %v1361, %v1331
    %v1383 = vsel %vm134, %v1365, %v1323
    %v1384 = vsel %vm135, %v1367, %v1325
    %1385 = vmatprep.subr.mxu0 0.0
    %1386 = vmatpush1.msra.mxu0 0.0
    %1387 = vmatprep.subr.mxu0 0.0
    %1388 = vmatpush1.msra.mxu0 0.0
    %1389 = vmatprep.subr.mxu0 0.0
    %1390 = vmatpush1.msra.mxu0 0.0
    %1391 = vmatprep.subr.mxu0 0.0
    %1392 = vmatpush1.msra.mxu0 0.0
    %1393 = vmatprep.subr.mxu0 0.0
    %1394 = vmatpush1.msra.mxu0 0.0
    %1395 = vmatprep.subr.mxu0 0.0
    %1396 = vmatpush1.msra.mxu0 0.0
    %1397 = vmatprep.subr.mxu0 0.0
    %1398 = vmatpush1.msra.mxu0 0.0
    %1399 = vmatprep.subr.mxu0 0.0
    %1400 = vmatpush1.msra.mxu0 0.0
    %1401 = vmatprep.subr.mxu0 %v1220
    %1402 = vmatpush1.msra.mxu0 %v1219
    %1403 = vmatprep.subr.mxu0 %v1218
    %1404 = vmatpush1.msra.mxu0 %v1217
    %1405 = vmatprep.subr.mxu0 %v1216
    %1406 = vmatpush1.msra.mxu0 %v1215
    %1407 = vmatprep.subr.mxu0 %v1214
    %1408 = vmatpush1.msra.mxu0 %v1213
    %1409 = vmatprep.subr.mxu0 %v1212
    %1410 = vmatpush1.msra.mxu0 %v1211
    %1411 = vmatprep.subr.mxu0 %v1210
    %1412 = vmatpush1.msra.mxu0 %v1209
    %1413 = vmatprep.subr.mxu0 %v1208
    %1414 = vmatpush1.msra.mxu0 %v1207
    %1415 = vmatprep.subr.mxu0 %v1206
    %1416 = vmatpush1.msra.mxu0 %v1205
    %1417 = vmatprep.subr.mxu0 0.0
    %1418 = vmatpush2.msra.mxu0 0.0
    %1419 = vmatprep.subr.mxu0 0.0
    %1420 = vmatpush2.msra.mxu0 0.0
    %1421 = vmatprep.subr.mxu0 0.0
    %1422 = vmatpush2.msra.mxu0 0.0
    %1423 = vmatprep.subr.mxu0 0.0
    %1424 = vmatpush2.msra.mxu0 0.0
    %1425 = vmatprep.subr.mxu0 0.0
    %1426 = vmatpush2.msra.mxu0 0.0
    %1427 = vmatprep.subr.mxu0 0.0
    %1428 = vmatpush2.msra.mxu0 0.0
    %1429 = vmatprep.subr.mxu0 0.0
    %1430 = vmatpush2.msra.mxu0 0.0
    %1431 = vmatprep.subr.mxu0 0.0
    %1432 = vmatpush2.msra.mxu0 0.0
    %1433 = vmatprep.subr.mxu0 0.0
    %1434 = vmatpush2.msra.mxu0 0.0
    %1435 = vmatprep.subr.mxu0 0.0
    %1436 = vmatpush2.msra.mxu0 0.0
    %1437 = vmatprep.subr.mxu0 0.0
    %1438 = vmatpush2.msra.mxu0 0.0
    %1439 = vmatprep.subr.mxu0 0.0
    %1440 = vmatpush2.msra.mxu0 0.0
    %1441 = vmatprep.subr.mxu0 0.0
    %1442 = vmatpush2.msra.mxu0 0.0
    %1443 = vmatprep.subr.mxu0 0.0
    %1444 = vmatpush2.msra.mxu0 0.0
    %1445 = vmatprep.subr.mxu0 0.0
    %1446 = vmatpush2.msra.mxu0 0.0
    %1447 = vmatprep.subr.mxu0 0.0
    %1448 = vmatpush2.msra.mxu0 0.0
    %1449 = vmatprep.mubr.f32.mxu0 0.0
    %1450 = vmatmul.mubr.f32.gmra.mxu0 %v332
    %v1451 = vpop.f32.mrf.mxu0
    %v1452 = vadd.f32 0.0, %v1451
    %v1453 = vpop.f32.mrf.mxu0
    %v1454 = vadd.f32 0.0, %v1453
    %1455 = vdwg.mxu0
    %v1456 = vadd.f32 %v1369, %v1452
    %v1457 = vadd.f32 %v1370, %v1454
    %v1458 = vxor.u32 %v1456, 2147483648
    %v1459 = vxor.u32 %v1457, 2147483648
    %v1460 = vmul.f32 %v1458, 1.442695
    %v1461 = vpow.pop %v1460
    %v1462 = vmul.f32 %v1459, 1.442695
    %v1463 = vpow.pop %v1462
    %v1464 = vadd.f32 %v1461, 1.0
    %v1465 = vadd.f32 %v1463, 1.0
    %v1466 = vrcp.pop %v1464
    %v1467 = vmul.f32 1.0, %v1466
    %v1468 = vrcp.pop %v1465
    %v1469 = vmul.f32 1.0, %v1468
    %v1470 = vtanh.pop %v1457
    %v1471 = vmul.f32 %v1467, 0.0
    %1473 = vrot.lane.b32.xlu0 %v1470, 64
    %v1474 = vpop.permute.xlu0 %1473
    %v1476 = vmul.f32 %v1467, %v1474
    %1478 = vrot.lane.b32.xlu0 %v1476, 64
    %v1479 = vpop.permute.xlu0 %1478
    %v1481 = vadd.f32 %v1471, %v1479
    %v1482 = vtanh.pop %v1481
    %1484 = vrot.lane.b32.xlu0 %v1482, 64
    %v1485 = vpop.permute.xlu0 %1484
    %v1487 = vmul.f32 %v1469, %v1485
    %v1489 = vsel %vm330, %v1487, 0
    %1491 = vmatprep.subr.mxu0 0.0
    %1492 = vmatpush1.msra.mxu0 0.0
    %1493 = vmatprep.subr.mxu0 0.0
    %1494 = vmatpush1.msra.mxu0 0.0
    %1495 = vmatprep.subr.mxu0 0.0
    %1496 = vmatpush1.msra.mxu0 0.0
    %1497 = vmatprep.subr.mxu0 0.0
    %1498 = vmatpush1.msra.mxu0 0.0
    %1499 = vmatprep.subr.mxu0 0.0
    %1500 = vmatpush1.msra.mxu0 0.0
    %1501 = vmatprep.subr.mxu0 0.0
    %1502 = vmatpush1.msra.mxu0 0.0
    %1503 = vmatprep.subr.mxu0 0.0
    %1504 = vmatpush1.msra.mxu0 0.0
    %1505 = vmatprep.subr.mxu0 0.0
    %1506 = vmatpush1.msra.mxu0 0.0
    %1507 = vmatprep.subr.mxu0 %v1220
    %1508 = vmatpush1.msra.mxu0 %v1219
    %1509 = vmatprep.subr.mxu0 %v1218
    %1510 = vmatpush1.msra.mxu0 %v1217
    %1511 = vmatprep.subr.mxu0 %v1216
    %1512 = vmatpush1.msra.mxu0 %v1215
    %1513 = vmatprep.subr.mxu0 %v1214
    %1514 = vmatpush1.msra.mxu0 %v1213
    %1515 = vmatprep.subr.mxu0 %v1212
    %1516 = vmatpush1.msra.mxu0 %v1211
    %1517 = vmatprep.subr.mxu0 %v1210
    %1518 = vmatpush1.msra.mxu0 %v1209
    %1519 = vmatprep.subr.mxu0 %v1208
    %1520 = vmatpush1.msra.mxu0 %v1207
    %1521 = vmatprep.subr.mxu0 %v1206
    %1522 = vmatpush1.msra.mxu0 %v1205
    %1523 = vmatprep.subr.mxu0 0.0
    %1524 = vmatpush2.msra.mxu0 0.0
    %1525 = vmatprep.subr.mxu0 0.0
    %1526 = vmatpush2.msra.mxu0 0.0
    %1527 = vmatprep.subr.mxu0 0.0
    %1528 = vmatpush2.msra.mxu0 0.0
    %1529 = vmatprep.subr.mxu0 0.0
    %1530 = vmatpush2.msra.mxu0 0.0
    %1531 = vmatprep.subr.mxu0 0.0
    %1532 = vmatpush2.msra.mxu0 0.0
    %1533 = vmatprep.subr.mxu0 0.0
    %1534 = vmatpush2.msra.mxu0 0.0
    %1535 = vmatprep.subr.mxu0 0.0
    %1536 = vmatpush2.msra.mxu0 0.0
    %1537 = vmatprep.subr.mxu0 0.0
    %1538 = vmatpush2.msra.mxu0 0.0
    %1539 = vmatprep.subr.mxu0 0.0
    %1540 = vmatpush2.msra.mxu0 0.0
    %1541 = vmatprep.subr.mxu0 0.0
    %1542 = vmatpush2.msra.mxu0 0.0
    %1543 = vmatprep.subr.mxu0 0.0
    %1544 = vmatpush2.msra.mxu0 0.0
    %1545 = vmatprep.subr.mxu0 0.0
    %1546 = vmatpush2.msra.mxu0 0.0
    %1547 = vmatprep.subr.mxu0 0.0
    %1548 = vmatpush2.msra.mxu0 0.0
    %1549 = vmatprep.subr.mxu0 0.0
    %1550 = vmatpush2.msra.mxu0 0.0
    %1551 = vmatprep.subr.mxu0 0.0
    %1552 = vmatpush2.msra.mxu0 0.0
    %1553 = vmatprep.subr.mxu0 0.0
    %1554 = vmatpush2.msra.mxu0 0.0
    %1555 = vmatprep.mubr.f32.mxu0 0.0
    %1556 = vmatmul.mubr.f32.gmra.mxu0 %v1489
    %v1557 = vpop.f32.mrf.mxu0
    %v1558 = vadd.f32 0.0, %v1557
    %v1559 = vpop.f32.mrf.mxu0
    %v1560 = vadd.f32 0.0, %v1559
    %1561 = vdwg.mxu0
    %v1562 = vadd.f32 %v1371, %v1558
    %v1563 = vadd.f32 %v1372, %v1560
    %v1564 = vxor.u32 %v1562, 2147483648
    %v1565 = vxor.u32 %v1563, 2147483648
    %v1566 = vmul.f32 %v1564, 1.442695
    %v1567 = vpow.pop %v1566
    %v1568 = vmul.f32 %v1565, 1.442695
    %v1569 = vpow.pop %v1568
    %v1570 = vadd.f32 %v1567, 1.0
    %v1571 = vadd.f32 %v1569, 1.0
    %v1572 = vrcp.pop %v1570
    %v1573 = vmul.f32 1.0, %v1572
    %v1574 = vrcp.pop %v1571
    %v1575 = vmul.f32 1.0, %v1574
    %v1576 = vtanh.pop %v1563
    %v1577 = vmul.f32 %v1573, %v1481
    %1579 = vrot.lane.b32.xlu0 %v1576, 64
    %v1580 = vpop.permute.xlu0 %1579
    %v1582 = vmul.f32 %v1573, %v1580
    %1584 = vrot.lane.b32.xlu0 %v1582, 64
    %v1585 = vpop.permute.xlu0 %1584
    %v1587 = vadd.f32 %v1577, %v1585
    %v1588 = vtanh.pop %v1587
    %1590 = vrot.lane.b32.xlu0 %v1588, 64
    %v1591 = vpop.permute.xlu0 %1590
    %v1593 = vmul.f32 %v1575, %v1591
    %v1595 = vsel %vm330, %v1593, 0
    %1597 = vmatprep.subr.mxu0 0.0
    %1598 = vmatpush1.msra.mxu0 0.0
    %1599 = vmatprep.subr.mxu0 0.0
    %1600 = vmatpush1.msra.mxu0 0.0
    %1601 = vmatprep.subr.mxu0 0.0
    %1602 = vmatpush1.msra.mxu0 0.0
    %1603 = vmatprep.subr.mxu0 0.0
    %1604 = vmatpush1.msra.mxu0 0.0
    %1605 = vmatprep.subr.mxu0 0.0
    %1606 = vmatpush1.msra.mxu0 0.0
    %1607 = vmatprep.subr.mxu0 0.0
    %1608 = vmatpush1.msra.mxu0 0.0
    %1609 = vmatprep.subr.mxu0 0.0
    %1610 = vmatpush1.msra.mxu0 0.0
    %1611 = vmatprep.subr.mxu0 0.0
    %1612 = vmatpush1.msra.mxu0 0.0
    %1613 = vmatprep.subr.mxu0 %v1220
    %1614 = vmatpush1.msra.mxu0 %v1219
    %1615 = vmatprep.subr.mxu0 %v1218
    %1616 = vmatpush1.msra.mxu0 %v1217
    %1617 = vmatprep.subr.mxu0 %v1216
    %1618 = vmatpush1.msra.mxu0 %v1215
    %1619 = vmatprep.subr.mxu0 %v1214
    %1620 = vmatpush1.msra.mxu0 %v1213
    %1621 = vmatprep.subr.mxu0 %v1212
    %1622 = vmatpush1.msra.mxu0 %v1211
    %1623 = vmatprep.subr.mxu0 %v1210
    %1624 = vmatpush1.msra.mxu0 %v1209
    %1625 = vmatprep.subr.mxu0 %v1208
    %1626 = vmatpush1.msra.mxu0 %v1207
    %1627 = vmatprep.subr.mxu0 %v1206
    %1628 = vmatpush1.msra.mxu0 %v1205
    %1629 = vmatprep.subr.mxu0 0.0
    %1630 = vmatpush2.msra.mxu0 0.0
    %1631 = vmatprep.subr.mxu0 0.0
    %1632 = vmatpush2.msra.mxu0 0.0
    %1633 = vmatprep.subr.mxu0 0.0
    %1634 = vmatpush2.msra.mxu0 0.0
    %1635 = vmatprep.subr.mxu0 0.0
    %1636 = vmatpush2.msra.mxu0 0.0
    %1637 = vmatprep.subr.mxu0 0.0
    %1638 = vmatpush2.msra.mxu0 0.0
    %1639 = vmatprep.subr.mxu0 0.0
    %1640 = vmatpush2.msra.mxu0 0.0
    %1641 = vmatprep.subr.mxu0 0.0
    %1642 = vmatpush2.msra.mxu0 0.0
    %1643 = vmatprep.subr.mxu0 0.0
    %1644 = vmatpush2.msra.mxu0 0.0
    %1645 = vmatprep.subr.mxu0 0.0
    %1646 = vmatpush2.msra.mxu0 0.0
    %1647 = vmatprep.subr.mxu0 0.0
    %1648 = vmatpush2.msra.mxu0 0.0
    %1649 = vmatprep.subr.mxu0 0.0
    %1650 = vmatpush2.msra.mxu0 0.0
    %1651 = vmatprep.subr.mxu0 0.0
    %1652 = vmatpush2.msra.mxu0 0.0
    %1653 = vmatprep.subr.mxu0 0.0
    %1654 = vmatpush2.msra.mxu0 0.0
    %1655 = vmatprep.subr.mxu0 0.0
    %1656 = vmatpush2.msra.mxu0 0.0
    %1657 = vmatprep.subr.mxu0 0.0
    %1658 = vmatpush2.msra.mxu0 0.0
    %1659 = vmatprep.subr.mxu0 0.0
    %1660 = vmatpush2.msra.mxu0 0.0
    %1661 = vmatprep.mubr.f32.mxu0 0.0
    %1662 = vmatmul.mubr.f32.gmra.mxu0 %v1595
    %v1663 = vpop.f32.mrf.mxu0
    %v1664 = vadd.f32 0.0, %v1663
    %v1665 = vpop.f32.mrf.mxu0
    %v1666 = vadd.f32 0.0, %v1665
    %1667 = vdwg.mxu0
    %v1668 = vadd.f32 %v1373, %v1664
    %v1669 = vadd.f32 %v1374, %v1666
    %v1670 = vxor.u32 %v1668, 2147483648
    %v1671 = vxor.u32 %v1669, 2147483648
    %v1672 = vmul.f32 %v1670, 1.442695
    %v1673 = vpow.pop %v1672
    %v1674 = vmul.f32 %v1671, 1.442695
    %v1675 = vpow.pop %v1674
    %v1676 = vadd.f32 %v1673, 1.0
    %v1677 = vadd.f32 %v1675, 1.0
    %v1678 = vrcp.pop %v1676
    %v1679 = vmul.f32 1.0, %v1678
    %v1680 = vrcp.pop %v1677
    %v1681 = vmul.f32 1.0, %v1680
    %v1682 = vtanh.pop %v1669
    %v1683 = vmul.f32 %v1679, %v1587
    %1685 = vrot.lane.b32.xlu0 %v1682, 64
    %v1686 = vpop.permute.xlu0 %1685
    %v1688 = vmul.f32 %v1679, %v1686
    %1690 = vrot.lane.b32.xlu0 %v1688, 64
    %v1691 = vpop.permute.xlu0 %1690
    %v1693 = vadd.f32 %v1683, %v1691
    %v1694 = vtanh.pop %v1693
    %1696 = vrot.lane.b32.xlu0 %v1694, 64
    %v1697 = vpop.permute.xlu0 %1696
    %v1699 = vmul.f32 %v1681, %v1697
    %v1701 = vsel %vm330, %v1699, 0
    %1703 = vmatprep.subr.mxu0 0.0
    %1704 = vmatpush1.msra.mxu0 0.0
    %1705 = vmatprep.subr.mxu0 0.0
    %1706 = vmatpush1.msra.mxu0 0.0
    %1707 = vmatprep.subr.mxu0 0.0
    %1708 = vmatpush1.msra.mxu0 0.0
    %1709 = vmatprep.subr.mxu0 0.0
    %1710 = vmatpush1.msra.mxu0 0.0
    %1711 = vmatprep.subr.mxu0 0.0
    %1712 = vmatpush1.msra.mxu0 0.0
    %1713 = vmatprep.subr.mxu0 0.0
    %1714 = vmatpush1.msra.mxu0 0.0
    %1715 = vmatprep.subr.mxu0 0.0
    %1716 = vmatpush1.msra.mxu0 0.0
    %1717 = vmatprep.subr.mxu0 0.0
    %1718 = vmatpush1.msra.mxu0 0.0
    %1719 = vmatprep.subr.mxu0 %v1220
    %1720 = vmatpush1.msra.mxu0 %v1219
    %1721 = vmatprep.subr.mxu0 %v1218
    %1722 = vmatpush1.msra.mxu0 %v1217
    %1723 = vmatprep.subr.mxu0 %v1216
    %1724 = vmatpush1.msra.mxu0 %v1215
    %1725 = vmatprep.subr.mxu0 %v1214
    %1726 = vmatpush1.msra.mxu0 %v1213
    %1727 = vmatprep.subr.mxu0 %v1212
    %1728 = vmatpush1.msra.mxu0 %v1211
    %1729 = vmatprep.subr.mxu0 %v1210
    %1730 = vmatpush1.msra.mxu0 %v1209
    %1731 = vmatprep.subr.mxu0 %v1208
    %1732 = vmatpush1.msra.mxu0 %v1207
    %1733 = vmatprep.subr.mxu0 %v1206
    %1734 = vmatpush1.msra.mxu0 %v1205
    %1735 = vmatprep.subr.mxu0 0.0
    %1736 = vmatpush2.msra.mxu0 0.0
    %1737 = vmatprep.subr.mxu0 0.0
    %1738 = vmatpush2.msra.mxu0 0.0
    %1739 = vmatprep.subr.mxu0 0.0
    %1740 = vmatpush2.msra.mxu0 0.0
    %1741 = vmatprep.subr.mxu0 0.0
    %1742 = vmatpush2.msra.mxu0 0.0
    %1743 = vmatprep.subr.mxu0 0.0
    %1744 = vmatpush2.msra.mxu0 0.0
    %1745 = vmatprep.subr.mxu0 0.0
    %1746 = vmatpush2.msra.mxu0 0.0
    %1747 = vmatprep.subr.mxu0 0.0
    %1748 = vmatpush2.msra.mxu0 0.0
    %1749 = vmatprep.subr.mxu0 0.0
    %1750 = vmatpush2.msra.mxu0 0.0
    %1751 = vmatprep.subr.mxu0 0.0
    %1752 = vmatpush2.msra.mxu0 0.0
    %1753 = vmatprep.subr.mxu0 0.0
    %1754 = vmatpush2.msra.mxu0 0.0
    %1755 = vmatprep.subr.mxu0 0.0
    %1756 = vmatpush2.msra.mxu0 0.0
    %1757 = vmatprep.subr.mxu0 0.0
    %1758 = vmatpush2.msra.mxu0 0.0
    %1759 = vmatprep.subr.mxu0 0.0
    %1760 = vmatpush2.msra.mxu0 0.0
    %1761 = vmatprep.subr.mxu0 0.0
    %1762 = vmatpush2.msra.mxu0 0.0
    %1763 = vmatprep.subr.mxu0 0.0
    %1764 = vmatpush2.msra.mxu0 0.0
    %1765 = vmatprep.subr.mxu0 0.0
    %1766 = vmatpush2.msra.mxu0 0.0
    %1767 = vmatprep.mubr.f32.mxu0 0.0
    %1768 = vmatmul.mubr.f32.gmra.mxu0 %v1701
    %v1769 = vpop.f32.mrf.mxu0
    %v1770 = vadd.f32 0.0, %v1769
    %v1771 = vpop.f32.mrf.mxu0
    %v1772 = vadd.f32 0.0, %v1771
    %1773 = vdwg.mxu0
    %v1774 = vadd.f32 %v1375, %v1770
    %v1775 = vadd.f32 %v1376, %v1772
    %v1776 = vxor.u32 %v1774, 2147483648
    %v1777 = vxor.u32 %v1775, 2147483648
    %v1778 = vmul.f32 %v1776, 1.442695
    %v1779 = vpow.pop %v1778
    %v1780 = vmul.f32 %v1777, 1.442695
    %v1781 = vpow.pop %v1780
    %v1782 = vadd.f32 %v1779, 1.0
    %v1783 = vadd.f32 %v1781, 1.0
    %v1784 = vrcp.pop %v1782
    %v1785 = vmul.f32 1.0, %v1784
    %v1786 = vrcp.pop %v1783
    %v1787 = vmul.f32 1.0, %v1786
    %v1788 = vtanh.pop %v1775
    %v1789 = vmul.f32 %v1785, %v1693
    %1791 = vrot.lane.b32.xlu0 %v1788, 64
    %v1792 = vpop.permute.xlu0 %1791
    %v1794 = vmul.f32 %v1785, %v1792
    %1796 = vrot.lane.b32.xlu0 %v1794, 64
    %v1797 = vpop.permute.xlu0 %1796
    %v1799 = vadd.f32 %v1789, %v1797
    %v1800 = vtanh.pop %v1799
    %1802 = vrot.lane.b32.xlu0 %v1800, 64
    %v1803 = vpop.permute.xlu0 %1802
    %v1805 = vmul.f32 %v1787, %v1803
    %v1807 = vsel %vm330, %v1805, 0
    %1809 = vmatprep.subr.mxu0 0.0
    %1810 = vmatpush1.msra.mxu0 0.0
    %1811 = vmatprep.subr.mxu0 0.0
    %1812 = vmatpush1.msra.mxu0 0.0
    %1813 = vmatprep.subr.mxu0 0.0
    %1814 = vmatpush1.msra.mxu0 0.0
    %1815 = vmatprep.subr.mxu0 0.0
    %1816 = vmatpush1.msra.mxu0 0.0
    %1817 = vmatprep.subr.mxu0 0.0
    %1818 = vmatpush1.msra.mxu0 0.0
    %1819 = vmatprep.subr.mxu0 0.0
    %1820 = vmatpush1.msra.mxu0 0.0
    %1821 = vmatprep.subr.mxu0 0.0
    %1822 = vmatpush1.msra.mxu0 0.0
    %1823 = vmatprep.subr.mxu0 0.0
    %1824 = vmatpush1.msra.mxu0 0.0
    %1825 = vmatprep.subr.mxu0 %v1220
    %1826 = vmatpush1.msra.mxu0 %v1219
    %1827 = vmatprep.subr.mxu0 %v1218
    %1828 = vmatpush1.msra.mxu0 %v1217
    %1829 = vmatprep.subr.mxu0 %v1216
    %1830 = vmatpush1.msra.mxu0 %v1215
    %1831 = vmatprep.subr.mxu0 %v1214
    %1832 = vmatpush1.msra.mxu0 %v1213
    %1833 = vmatprep.subr.mxu0 %v1212
    %1834 = vmatpush1.msra.mxu0 %v1211
    %1835 = vmatprep.subr.mxu0 %v1210
    %1836 = vmatpush1.msra.mxu0 %v1209
    %1837 = vmatprep.subr.mxu0 %v1208
    %1838 = vmatpush1.msra.mxu0 %v1207
    %1839 = vmatprep.subr.mxu0 %v1206
    %1840 = vmatpush1.msra.mxu0 %v1205
    %1841 = vmatprep.subr.mxu0 0.0
    %1842 = vmatpush2.msra.mxu0 0.0
    %1843 = vmatprep.subr.mxu0 0.0
    %1844 = vmatpush2.msra.mxu0 0.0
    %1845 = vmatprep.subr.mxu0 0.0
    %1846 = vmatpush2.msra.mxu0 0.0
    %1847 = vmatprep.subr.mxu0 0.0
    %1848 = vmatpush2.msra.mxu0 0.0
    %1849 = vmatprep.subr.mxu0 0.0
    %1850 = vmatpush2.msra.mxu0 0.0
    %1851 = vmatprep.subr.mxu0 0.0
    %1852 = vmatpush2.msra.mxu0 0.0
    %1853 = vmatprep.subr.mxu0 0.0
    %1854 = vmatpush2.msra.mxu0 0.0
    %1855 = vmatprep.subr.mxu0 0.0
    %1856 = vmatpush2.msra.mxu0 0.0
    %1857 = vmatprep.subr.mxu0 0.0
    %1858 = vmatpush2.msra.mxu0 0.0
    %1859 = vmatprep.subr.mxu0 0.0
    %1860 = vmatpush2.msra.mxu0 0.0
    %1861 = vmatprep.subr.mxu0 0.0
    %1862 = vmatpush2.msra.mxu0 0.0
    %1863 = vmatprep.subr.mxu0 0.0
    %1864 = vmatpush2.msra.mxu0 0.0
    %1865 = vmatprep.subr.mxu0 0.0
    %1866 = vmatpush2.msra.mxu0 0.0
    %1867 = vmatprep.subr.mxu0 0.0
    %1868 = vmatpush2.msra.mxu0 0.0
    %1869 = vmatprep.subr.mxu0 0.0
    %1870 = vmatpush2.msra.mxu0 0.0
    %1871 = vmatprep.subr.mxu0 0.0
    %1872 = vmatpush2.msra.mxu0 0.0
    %1873 = vmatprep.mubr.f32.mxu0 0.0
    %1874 = vmatmul.mubr.f32.gmra.mxu0 %v1807
    %v1875 = vpop.f32.mrf.mxu0
    %v1876 = vadd.f32 0.0, %v1875
    %v1877 = vpop.f32.mrf.mxu0
    %v1878 = vadd.f32 0.0, %v1877
    %1879 = vdwg.mxu0
    %v1880 = vadd.f32 %v1377, %v1876
    %v1881 = vadd.f32 %v1378, %v1878
    %v1882 = vxor.u32 %v1880, 2147483648
    %v1883 = vxor.u32 %v1881, 2147483648
    %v1884 = vmul.f32 %v1882, 1.442695
    %v1885 = vpow.pop %v1884
    %v1886 = vmul.f32 %v1883, 1.442695
    %v1887 = vpow.pop %v1886
    %v1888 = vadd.f32 %v1885, 1.0
    %v1889 = vadd.f32 %v1887, 1.0
    %v1890 = vrcp.pop %v1888
    %v1891 = vmul.f32 1.0, %v1890
    %v1892 = vrcp.pop %v1889
    %v1893 = vmul.f32 1.0, %v1892
    %v1894 = vtanh.pop %v1881
    %v1895 = vmul.f32 %v1891, %v1799
    %1897 = vrot.lane.b32.xlu0 %v1894, 64
    %v1898 = vpop.permute.xlu0 %1897
    %v1900 = vmul.f32 %v1891, %v1898
    %1902 = vrot.lane.b32.xlu0 %v1900, 64
    %v1903 = vpop.permute.xlu0 %1902
    %v1905 = vadd.f32 %v1895, %v1903
    %v1906 = vtanh.pop %v1905
    %1908 = vrot.lane.b32.xlu0 %v1906, 64
    %v1909 = vpop.permute.xlu0 %1908
    %v1911 = vmul.f32 %v1893, %v1909
    %v1913 = vsel %vm330, %v1911, 0
    %1915 = vmatprep.subr.mxu0 0.0
    %1916 = vmatpush1.msra.mxu0 0.0
    %1917 = vmatprep.subr.mxu0 0.0
    %1918 = vmatpush1.msra.mxu0 0.0
    %1919 = vmatprep.subr.mxu0 0.0
    %1920 = vmatpush1.msra.mxu0 0.0
    %1921 = vmatprep.subr.mxu0 0.0
    %1922 = vmatpush1.msra.mxu0 0.0
    %1923 = vmatprep.subr.mxu0 0.0
    %1924 = vmatpush1.msra.mxu0 0.0
    %1925 = vmatprep.subr.mxu0 0.0
    %1926 = vmatpush1.msra.mxu0 0.0
    %1927 = vmatprep.subr.mxu0 0.0
    %1928 = vmatpush1.msra.mxu0 0.0
    %1929 = vmatprep.subr.mxu0 0.0
    %1930 = vmatpush1.msra.mxu0 0.0
    %1931 = vmatprep.subr.mxu0 %v1220
    %1932 = vmatpush1.msra.mxu0 %v1219
    %1933 = vmatprep.subr.mxu0 %v1218
    %1934 = vmatpush1.msra.mxu0 %v1217
    %1935 = vmatprep.subr.mxu0 %v1216
    %1936 = vmatpush1.msra.mxu0 %v1215
    %1937 = vmatprep.subr.mxu0 %v1214
    %1938 = vmatpush1.msra.mxu0 %v1213
    %1939 = vmatprep.subr.mxu0 %v1212
    %1940 = vmatpush1.msra.mxu0 %v1211
    %1941 = vmatprep.subr.mxu0 %v1210
    %1942 = vmatpush1.msra.mxu0 %v1209
    %1943 = vmatprep.subr.mxu0 %v1208
    %1944 = vmatpush1.msra.mxu0 %v1207
    %1945 = vmatprep.subr.mxu0 %v1206
    %1946 = vmatpush1.msra.mxu0 %v1205
    %1947 = vmatprep.subr.mxu0 0.0
    %1948 = vmatpush2.msra.mxu0 0.0
    %1949 = vmatprep.subr.mxu0 0.0
    %1950 = vmatpush2.msra.mxu0 0.0
    %1951 = vmatprep.subr.mxu0 0.0
    %1952 = vmatpush2.msra.mxu0 0.0
    %1953 = vmatprep.subr.mxu0 0.0
    %1954 = vmatpush2.msra.mxu0 0.0
    %1955 = vmatprep.subr.mxu0 0.0
    %1956 = vmatpush2.msra.mxu0 0.0
    %1957 = vmatprep.subr.mxu0 0.0
    %1958 = vmatpush2.msra.mxu0 0.0
    %1959 = vmatprep.subr.mxu0 0.0
    %1960 = vmatpush2.msra.mxu0 0.0
    %1961 = vmatprep.subr.mxu0 0.0
    %1962 = vmatpush2.msra.mxu0 0.0
    %1963 = vmatprep.subr.mxu0 0.0
    %1964 = vmatpush2.msra.mxu0 0.0
    %1965 = vmatprep.subr.mxu0 0.0
    %1966 = vmatpush2.msra.mxu0 0.0
    %1967 = vmatprep.subr.mxu0 0.0
    %1968 = vmatpush2.msra.mxu0 0.0
    %1969 = vmatprep.subr.mxu0 0.0
    %1970 = vmatpush2.msra.mxu0 0.0
    %1971 = vmatprep.subr.mxu0 0.0
    %1972 = vmatpush2.msra.mxu0 0.0
    %1973 = vmatprep.subr.mxu0 0.0
    %1974 = vmatpush2.msra.mxu0 0.0
    %1975 = vmatprep.subr.mxu0 0.0
    %1976 = vmatpush2.msra.mxu0 0.0
    %1977 = vmatprep.subr.mxu0 0.0
    %1978 = vmatpush2.msra.mxu0 0.0
    %1979 = vmatprep.mubr.f32.mxu0 0.0
    %1980 = vmatmul.mubr.f32.gmra.mxu0 %v1913
    %v1981 = vpop.f32.mrf.mxu0
    %v1982 = vadd.f32 0.0, %v1981
    %v1983 = vpop.f32.mrf.mxu0
    %v1984 = vadd.f32 0.0, %v1983
    %1985 = vdwg.mxu0
    %v1986 = vadd.f32 %v1379, %v1982
    %v1987 = vadd.f32 %v1380, %v1984
    %v1988 = vxor.u32 %v1986, 2147483648
    %v1989 = vxor.u32 %v1987, 2147483648
    %v1990 = vmul.f32 %v1988, 1.442695
    %v1991 = vpow.pop %v1990
    %v1992 = vmul.f32 %v1989, 1.442695
    %v1993 = vpow.pop %v1992
    %v1994 = vadd.f32 %v1991, 1.0
    %v1995 = vadd.f32 %v1993, 1.0
    %v1996 = vrcp.pop %v1994
    %v1997 = vmul.f32 1.0, %v1996
    %v1998 = vrcp.pop %v1995
    %v1999 = vmul.f32 1.0, %v1998
    %v2000 = vtanh.pop %v1987
    %v2001 = vmul.f32 %v1997, %v1905
    %2003 = vrot.lane.b32.xlu0 %v2000, 64
    %v2004 = vpop.permute.xlu0 %2003
    %v2006 = vmul.f32 %v1997, %v2004
    %2008 = vrot.lane.b32.xlu0 %v2006, 64
    %v2009 = vpop.permute.xlu0 %2008
    %v2011 = vadd.f32 %v2001, %v2009
    %v2012 = vtanh.pop %v2011
    %2014 = vrot.lane.b32.xlu0 %v2012, 64
    %v2015 = vpop.permute.xlu0 %2014
    %v2017 = vmul.f32 %v1999, %v2015
    %v2019 = vsel %vm330, %v2017, 0
    %2021 = vmatprep.subr.mxu0 0.0
    %2022 = vmatpush1.msra.mxu0 0.0
    %2023 = vmatprep.subr.mxu0 0.0
    %2024 = vmatpush1.msra.mxu0 0.0
    %2025 = vmatprep.subr.mxu0 0.0
    %2026 = vmatpush1.msra.mxu0 0.0
    %2027 = vmatprep.subr.mxu0 0.0
    %2028 = vmatpush1.msra.mxu0 0.0
    %2029 = vmatprep.subr.mxu0 0.0
    %2030 = vmatpush1.msra.mxu0 0.0
    %2031 = vmatprep.subr.mxu0 0.0
    %2032 = vmatpush1.msra.mxu0 0.0
    %2033 = vmatprep.subr.mxu0 0.0
    %2034 = vmatpush1.msra.mxu0 0.0
    %2035 = vmatprep.subr.mxu0 0.0
    %2036 = vmatpush1.msra.mxu0 0.0
    %2037 = vmatprep.subr.mxu0 %v1220
    %2038 = vmatpush1.msra.mxu0 %v1219
    %2039 = vmatprep.subr.mxu0 %v1218
    %2040 = vmatpush1.msra.mxu0 %v1217
    %2041 = vmatprep.subr.mxu0 %v1216
    %2042 = vmatpush1.msra.mxu0 %v1215
    %2043 = vmatprep.subr.mxu0 %v1214
    %2044 = vmatpush1.msra.mxu0 %v1213
    %2045 = vmatprep.subr.mxu0 %v1212
    %2046 = vmatpush1.msra.mxu0 %v1211
    %2047 = vmatprep.subr.mxu0 %v1210
    %2048 = vmatpush1.msra.mxu0 %v1209
    %2049 = vmatprep.subr.mxu0 %v1208
    %2050 = vmatpush1.msra.mxu0 %v1207
    %2051 = vmatprep.subr.mxu0 %v1206
    %2052 = vmatpush1.msra.mxu0 %v1205
    %2053 = vmatprep.subr.mxu0 0.0
    %2054 = vmatpush2.msra.mxu0 0.0
    %2055 = vmatprep.subr.mxu0 0.0
    %2056 = vmatpush2.msra.mxu0 0.0
    %2057 = vmatprep.subr.mxu0 0.0
    %2058 = vmatpush2.msra.mxu0 0.0
    %2059 = vmatprep.subr.mxu0 0.0
    %2060 = vmatpush2.msra.mxu0 0.0
    %2061 = vmatprep.subr.mxu0 0.0
    %2062 = vmatpush2.msra.mxu0 0.0
    %2063 = vmatprep.subr.mxu0 0.0
    %2064 = vmatpush2.msra.mxu0 0.0
    %2065 = vmatprep.subr.mxu0 0.0
    %2066 = vmatpush2.msra.mxu0 0.0
    %2067 = vmatprep.subr.mxu0 0.0
    %2068 = vmatpush2.msra.mxu0 0.0
    %2069 = vmatprep.subr.mxu0 0.0
    %2070 = vmatpush2.msra.mxu0 0.0
    %2071 = vmatprep.subr.mxu0 0.0
    %2072 = vmatpush2.msra.mxu0 0.0
    %2073 = vmatprep.subr.mxu0 0.0
    %2074 = vmatpush2.msra.mxu0 0.0
    %2075 = vmatprep.subr.mxu0 0.0
    %2076 = vmatpush2.msra.mxu0 0.0
    %2077 = vmatprep.subr.mxu0 0.0
    %2078 = vmatpush2.msra.mxu0 0.0
    %2079 = vmatprep.subr.mxu0 0.0
    %2080 = vmatpush2.msra.mxu0 0.0
    %2081 = vmatprep.subr.mxu0 0.0
    %2082 = vmatpush2.msra.mxu0 0.0
    %2083 = vmatprep.subr.mxu0 0.0
    %2084 = vmatpush2.msra.mxu0 0.0
    %2085 = vmatprep.mubr.f32.mxu0 0.0
    %2086 = vmatmul.mubr.f32.gmra.mxu0 %v2019
    %v2087 = vpop.f32.mrf.mxu0
    %v2088 = vadd.f32 0.0, %v2087
    %v2089 = vpop.f32.mrf.mxu0
    %v2090 = vadd.f32 0.0, %v2089
    %2091 = vdwg.mxu0
    %v2092 = vadd.f32 %v1381, %v2088
    %v2093 = vadd.f32 %v1382, %v2090
    %v2094 = vxor.u32 %v2092, 2147483648
    %v2095 = vxor.u32 %v2093, 2147483648
    %v2096 = vmul.f32 %v2094, 1.442695
    %v2097 = vpow.pop %v2096
    %v2098 = vmul.f32 %v2095, 1.442695
    %v2099 = vpow.pop %v2098
    %v2100 = vadd.f32 %v2097, 1.0
    %v2101 = vadd.f32 %v2099, 1.0
    %v2102 = vrcp.pop %v2100
    %v2103 = vmul.f32 1.0, %v2102
    %v2104 = vrcp.pop %v2101
    %v2105 = vmul.f32 1.0, %v2104
    %v2106 = vtanh.pop %v2093
    %v2107 = vmul.f32 %v2103, %v2011
    %2109 = vrot.lane.b32.xlu0 %v2106, 64
    %v2110 = vpop.permute.xlu0 %2109
    %v2112 = vmul.f32 %v2103, %v2110
    %2114 = vrot.lane.b32.xlu0 %v2112, 64
    %v2115 = vpop.permute.xlu0 %2114
    %v2117 = vadd.f32 %v2107, %v2115
    %v2118 = vtanh.pop %v2117
    %2120 = vrot.lane.b32.xlu0 %v2118, 64
    %v2121 = vpop.permute.xlu0 %2120
    %v2123 = vmul.f32 %v2105, %v2121
    %v2125 = vsel %vm330, %v2123, 0
    %2127 = vmatprep.subr.mxu0 0.0
    %2128 = vmatpush1.msra.mxu0 0.0
    %2129 = vmatprep.subr.mxu0 0.0
    %2130 = vmatpush1.msra.mxu0 0.0
    %2131 = vmatprep.subr.mxu0 0.0
    %2132 = vmatpush1.msra.mxu0 0.0
    %2133 = vmatprep.subr.mxu0 0.0
    %2134 = vmatpush1.msra.mxu0 0.0
    %2135 = vmatprep.subr.mxu0 0.0
    %2136 = vmatpush1.msra.mxu0 0.0
    %2137 = vmatprep.subr.mxu0 0.0
    %2138 = vmatpush1.msra.mxu0 0.0
    %2139 = vmatprep.subr.mxu0 0.0
    %2140 = vmatpush1.msra.mxu0 0.0
    %2141 = vmatprep.subr.mxu0 0.0
    %2142 = vmatpush1.msra.mxu0 0.0
    %2143 = vmatprep.subr.mxu0 %v1220
    %2144 = vmatpush1.msra.mxu0 %v1219
    %2145 = vmatprep.subr.mxu0 %v1218
    %2146 = vmatpush1.msra.mxu0 %v1217
    %2147 = vmatprep.subr.mxu0 %v1216
    %2148 = vmatpush1.msra.mxu0 %v1215
    %2149 = vmatprep.subr.mxu0 %v1214
    %2150 = vmatpush1.msra.mxu0 %v1213
    %2151 = vmatprep.subr.mxu0 %v1212
    %2152 = vmatpush1.msra.mxu0 %v1211
    %2153 = vmatprep.subr.mxu0 %v1210
    %2154 = vmatpush1.msra.mxu0 %v1209
    %2155 = vmatprep.subr.mxu0 %v1208
    %2156 = vmatpush1.msra.mxu0 %v1207
    %2157 = vmatprep.subr.mxu0 %v1206
    %2158 = vmatpush1.msra.mxu0 %v1205
    %2159 = vmatprep.subr.mxu0 0.0
    %2160 = vmatpush2.msra.mxu0 0.0
    %2161 = vmatprep.subr.mxu0 0.0
    %2162 = vmatpush2.msra.mxu0 0.0
    %2163 = vmatprep.subr.mxu0 0.0
    %2164 = vmatpush2.msra.mxu0 0.0
    %2165 = vmatprep.subr.mxu0 0.0
    %2166 = vmatpush2.msra.mxu0 0.0
    %2167 = vmatprep.subr.mxu0 0.0
    %2168 = vmatpush2.msra.mxu0 0.0
    %2169 = vmatprep.subr.mxu0 0.0
    %2170 = vmatpush2.msra.mxu0 0.0
    %2171 = vmatprep.subr.mxu0 0.0
    %2172 = vmatpush2.msra.mxu0 0.0
    %2173 = vmatprep.subr.mxu0 0.0
    %2174 = vmatpush2.msra.mxu0 0.0
    %2175 = vmatprep.subr.mxu0 0.0
    %2176 = vmatpush2.msra.mxu0 0.0
    %2177 = vmatprep.subr.mxu0 0.0
    %2178 = vmatpush2.msra.mxu0 0.0
    %2179 = vmatprep.subr.mxu0 0.0
    %2180 = vmatpush2.msra.mxu0 0.0
    %2181 = vmatprep.subr.mxu0 0.0
    %2182 = vmatpush2.msra.mxu0 0.0
    %2183 = vmatprep.subr.mxu0 0.0
    %2184 = vmatpush2.msra.mxu0 0.0
    %2185 = vmatprep.subr.mxu0 0.0
    %2186 = vmatpush2.msra.mxu0 0.0
    %2187 = vmatprep.subr.mxu0 0.0
    %2188 = vmatpush2.msra.mxu0 0.0
    %2189 = vmatprep.subr.mxu0 0.0
    %2190 = vmatpush2.msra.mxu0 0.0
    %2191 = vmatprep.mubr.f32.mxu0 0.0
    %2192 = vmatmul.mubr.f32.gmra.mxu0 %v2125
    %v2193 = vpop.f32.mrf.mxu0
    %v2194 = vadd.f32 0.0, %v2193
    %v2195 = vpop.f32.mrf.mxu0
    %v2196 = vadd.f32 0.0, %v2195
    %2197 = vdwg.mxu0
    %v2198 = vadd.f32 %v1383, %v2194
    %v2199 = vadd.f32 %v1384, %v2196
    %v2200 = vxor.u32 %v2198, 2147483648
    %v2201 = vxor.u32 %v2199, 2147483648
    %v2202 = vmul.f32 %v2200, 1.442695
    %v2203 = vpow.pop %v2202
    %v2204 = vmul.f32 %v2201, 1.442695
    %v2205 = vpow.pop %v2204
    %v2206 = vadd.f32 %v2203, 1.0
    %v2207 = vadd.f32 %v2205, 1.0
    %v2208 = vrcp.pop %v2206
    %v2209 = vmul.f32 1.0, %v2208
    %v2210 = vrcp.pop %v2207
    %v2211 = vmul.f32 1.0, %v2210
    %v2212 = vtanh.pop %v2199
    %v2213 = vmul.f32 %v2209, %v2117
    %2215 = vrot.lane.b32.xlu0 %v2212, 64
    %v2216 = vpop.permute.xlu0 %2215
    %v2218 = vmul.f32 %v2209, %v2216
    %2220 = vrot.lane.b32.xlu0 %v2218, 64
    %v2221 = vpop.permute.xlu0 %2220
    %v2223 = vadd.f32 %v2213, %v2221
    %v2224 = vtanh.pop %v2223
    %2226 = vrot.lane.b32.xlu0 %v2224, 64
    %v2227 = vpop.permute.xlu0 %2226
    %v2229 = vmul.f32 %v2211, %v2227
    %v2230 = vsel %vm1179, %v2229, %v1487
    %v2231 = vld [vmem:[%s7] sm:$0xff]
    %v2232 = vld [vmem:[%s7 + $0x8] sm:$0xff]
    %v2233 = vld [vmem:[%s7 + $0x10] sm:$0xff]
    %v2234 = vld [vmem:[%s7 + $0x18] sm:$0xff]
    %v2235 = vld [vmem:[%s7 + $0x20] sm:$0xff]
    %v2236 = vld [vmem:[%s7 + $0x28] sm:$0xff]
    %v2237 = vld [vmem:[%s7 + $0x30] sm:$0xff]
    %v2238 = vld [vmem:[%s7 + $0x38] sm:$0xff]
    %v2239 = vld [vmem:[%s8] sm:$0x1]
    %v2241 = vlaneseq
    %v2242 = vshrl.u32 %v2241, 7
    %v2243 = vsub.s32 0, %v2242
    %v2244 = vrot.slane %v2239, %v2243
    %v2247 = vsel %vm330, %v2230, 0
    %2249 = vmatprep.subr.mxu0 0.0
    %2250 = vmatpush1.msra.mxu0 0.0
    %2251 = vmatprep.subr.mxu0 0.0
    %2252 = vmatpush1.msra.mxu0 0.0
    %2253 = vmatprep.subr.mxu0 0.0
    %2254 = vmatpush1.msra.mxu0 0.0
    %2255 = vmatprep.subr.mxu0 0.0
    %2256 = vmatpush1.msra.mxu0 0.0
    %2257 = vmatprep.subr.mxu0 0.0
    %2258 = vmatpush1.msra.mxu0 0.0
    %2259 = vmatprep.subr.mxu0 0.0
    %2260 = vmatpush1.msra.mxu0 0.0
    %2261 = vmatprep.subr.mxu0 0.0
    %2262 = vmatpush1.msra.mxu0 0.0
    %2263 = vmatprep.subr.mxu0 0.0
    %2264 = vmatpush1.msra.mxu0 0.0
    %2265 = vmatprep.subr.mxu0 0.0
    %2266 = vmatpush1.msra.mxu0 %v2238
    %2267 = vmatprep.subr.mxu0 0.0
    %2268 = vmatpush1.msra.mxu0 %v2237
    %2269 = vmatprep.subr.mxu0 0.0
    %2270 = vmatpush1.msra.mxu0 %v2236
    %2271 = vmatprep.subr.mxu0 0.0
    %2272 = vmatpush1.msra.mxu0 %v2235
    %2273 = vmatprep.subr.mxu0 0.0
    %2274 = vmatpush1.msra.mxu0 %v2234
    %2275 = vmatprep.subr.mxu0 0.0
    %2276 = vmatpush1.msra.mxu0 %v2233
    %2277 = vmatprep.subr.mxu0 0.0
    %2278 = vmatpush1.msra.mxu0 %v2232
    %2279 = vmatprep.subr.mxu0 0.0
    %2280 = vmatpush1.msra.mxu0 %v2231
    %2281 = vmatprep.subr.mxu0 0.0
    %2282 = vmatpush2.msra.mxu0 0.0
    %2283 = vmatprep.subr.mxu0 0.0
    %2284 = vmatpush2.msra.mxu0 0.0
    %2285 = vmatprep.subr.mxu0 0.0
    %2286 = vmatpush2.msra.mxu0 0.0
    %2287 = vmatprep.subr.mxu0 0.0
    %2288 = vmatpush2.msra.mxu0 0.0
    %2289 = vmatprep.subr.mxu0 0.0
    %2290 = vmatpush2.msra.mxu0 0.0
    %2291 = vmatprep.subr.mxu0 0.0
    %2292 = vmatpush2.msra.mxu0 0.0
    %2293 = vmatprep.subr.mxu0 0.0
    %2294 = vmatpush2.msra.mxu0 0.0
    %2295 = vmatprep.subr.mxu0 0.0
    %2296 = vmatpush2.msra.mxu0 0.0
    %2297 = vmatprep.subr.mxu0 0.0
    %2298 = vmatpush2.msra.mxu0 0.0
    %2299 = vmatprep.subr.mxu0 0.0
    %2300 = vmatpush2.msra.mxu0 0.0
    %2301 = vmatprep.subr.mxu0 0.0
    %2302 = vmatpush2.msra.mxu0 0.0
    %2303 = vmatprep.subr.mxu0 0.0
    %2304 = vmatpush2.msra.mxu0 0.0
    %2305 = vmatprep.subr.mxu0 0.0
    %2306 = vmatpush2.msra.mxu0 0.0
    %2307 = vmatprep.subr.mxu0 0.0
    %2308 = vmatpush2.msra.mxu0 0.0
    %2309 = vmatprep.subr.mxu0 0.0
    %2310 = vmatpush2.msra.mxu0 0.0
    %2311 = vmatprep.subr.mxu0 0.0
    %2312 = vmatpush2.msra.mxu0 0.0
    %2313 = vmatprep.mubr.f32.mxu0 0.0
    %2314 = vmatmul.mubr.f32.gmra.mxu0 %v2247
    %v2315 = vpop.f32.mrf.mxu0
    %v2316 = vadd.f32 %v2244, %v2315
    %v2317 = vpop.f32.mrf.mxu0
    %2318 = vdwg.mxu0
    %v2319 = vmax.f32 %v2316, 0.0
    %v2320 = vld [vmem:[#allocation10] sm:$0xff]
    %v2321 = vld [vmem:[#allocation10 + $0x8] sm:$0xff]
    %v2322 = vld [vmem:[#allocation10 + $0x10] sm:$0xff]
    %v2323 = vld [vmem:[#allocation10 + $0x18] sm:$0xff]
    %v2324 = vld [vmem:[#allocation10 + $0x20] sm:$0xff]
    %v2325 = vld [vmem:[#allocation10 + $0x28] sm:$0xff]
    %v2326 = vld [vmem:[#allocation10 + $0x30] sm:$0xff]
    %v2327 = vld [vmem:[#allocation10 + $0x38] sm:$0xff]
    %v2328 = vld [vmem:[#allocation10 + $0x40] sm:$0xff]
    %v2329 = vld [vmem:[#allocation10 + $0x48] sm:$0xff]
    %v2330 = vld [vmem:[#allocation10 + $0x50] sm:$0xff]
    %v2331 = vld [vmem:[#allocation10 + $0x58] sm:$0xff]
    %v2332 = vld [vmem:[#allocation10 + $0x60] sm:$0xff]
    %v2333 = vld [vmem:[#allocation10 + $0x68] sm:$0xff]
    %v2334 = vld [vmem:[#allocation10 + $0x70] sm:$0xff]
    %v2335 = vld [vmem:[#allocation10 + $0x78] sm:$0xff]
    %v2336 = vld [vmem:[%s10] sm:$0x1]
    %v2338 = vlaneseq
    %v2339 = vshrl.u32 %v2338, 7
    %v2340 = vsub.s32 0, %v2339
    %v2341 = vrot.slane %v2336, %v2340
    %2343 = vmatprep.subr.mxu0 0.0
    %2344 = vmatpush1.msra.mxu0 %v2335
    %2345 = vmatprep.subr.mxu0 0.0
    %2346 = vmatpush1.msra.mxu0 %v2334
    %2347 = vmatprep.subr.mxu0 0.0
    %2348 = vmatpush1.msra.mxu0 %v2333
    %2349 = vmatprep.subr.mxu0 0.0
    %2350 = vmatpush1.msra.mxu0 %v2332
    %2351 = vmatprep.subr.mxu0 0.0
    %2352 = vmatpush1.msra.mxu0 %v2331
    %2353 = vmatprep.subr.mxu0 0.0
    %2354 = vmatpush1.msra.mxu0 %v2330
    %2355 = vmatprep.subr.mxu0 0.0
    %2356 = vmatpush1.msra.mxu0 %v2329
    %2357 = vmatprep.subr.mxu0 0.0
    %2358 = vmatpush1.msra.mxu0 %v2328
    %2359 = vmatprep.subr.mxu0 0.0
    %2360 = vmatpush1.msra.mxu0 %v2327
    %2361 = vmatprep.subr.mxu0 0.0
    %2362 = vmatpush1.msra.mxu0 %v2326
    %2363 = vmatprep.subr.mxu0 0.0
    %2364 = vmatpush1.msra.mxu0 %v2325
    %2365 = vmatprep.subr.mxu0 0.0
    %2366 = vmatpush1.msra.mxu0 %v2324
    %2367 = vmatprep.subr.mxu0 0.0
    %2368 = vmatpush1.msra.mxu0 %v2323
    %2369 = vmatprep.subr.mxu0 0.0
    %2370 = vmatpush1.msra.mxu0 %v2322
    %2371 = vmatprep.subr.mxu0 0.0
    %2372 = vmatpush1.msra.mxu0 %v2321
    %2373 = vmatprep.subr.mxu0 0.0
    %2374 = vmatpush1.msra.mxu0 %v2320
    %2375 = vmatprep.subr.mxu0 0.0
    %2376 = vmatpush2.msra.mxu0 0.0
    %2377 = vmatprep.subr.mxu0 0.0
    %2378 = vmatpush2.msra.mxu0 0.0
    %2379 = vmatprep.subr.mxu0 0.0
    %2380 = vmatpush2.msra.mxu0 0.0
    %2381 = vmatprep.subr.mxu0 0.0
    %2382 = vmatpush2.msra.mxu0 0.0
    %2383 = vmatprep.subr.mxu0 0.0
    %2384 = vmatpush2.msra.mxu0 0.0
    %2385 = vmatprep.subr.mxu0 0.0
    %2386 = vmatpush2.msra.mxu0 0.0
    %2387 = vmatprep.subr.mxu0 0.0
    %2388 = vmatpush2.msra.mxu0 0.0
    %2389 = vmatprep.subr.mxu0 0.0
    %2390 = vmatpush2.msra.mxu0 0.0
    %2391 = vmatprep.subr.mxu0 0.0
    %2392 = vmatpush2.msra.mxu0 0.0
    %2393 = vmatprep.subr.mxu0 0.0
    %2394 = vmatpush2.msra.mxu0 0.0
    %2395 = vmatprep.subr.mxu0 0.0
    %2396 = vmatpush2.msra.mxu0 0.0
    %2397 = vmatprep.subr.mxu0 0.0
    %2398 = vmatpush2.msra.mxu0 0.0
    %2399 = vmatprep.subr.mxu0 0.0
    %2400 = vmatpush2.msra.mxu0 0.0
    %2401 = vmatprep.subr.mxu0 0.0
    %2402 = vmatpush2.msra.mxu0 0.0
    %2403 = vmatprep.subr.mxu0 0.0
    %2404 = vmatpush2.msra.mxu0 0.0
    %2405 = vmatprep.subr.mxu0 0.0
    %2406 = vmatpush2.msra.mxu0 0.0
    %2407 = vmatprep.mubr.f32.mxu0 0.0
    %2408 = vmatmul.mubr.f32.gmra.mxu0 %v2319
    %v2409 = vpop.f32.mrf.mxu0
    %v2410 = vadd.f32 %v2341, %v2409
    %v2411 = vpop.f32.mrf.mxu0
    %2412 = vdwg.mxu0
    %2413 = vst [vmem:[#allocation11] sm:$0xff] %v2410
    // Predicated region
    $region66: #{tpu_custom_call.1} parent=1 // pred_check
      _
    $region67: #{tpu_custom_call.1} parent=1 // pred_check_branch
      %2415 = sbr.rel (0) target = $region69
    $region68: #{tpu_custom_call.1} parent=1 // pred_region
      %s2417 = ssub.s32 128, 128
      %2418 = vsyncadd [#allocation4], %s2417
      %s2420 = sshll.u32 [#allocation11], 4
      %s2421 = int_to_ptr.vmem [resolvable:$true] %s2420
      %2423 = dma.vmem_to_hbm [thread:$0]  %s2421, 128, %s11, [#allocation4]
    $region69: #{tpu_custom_call.1} parent=1 // pred_fallthru
      _
    // Predicated region
    $region70: #{tpu_custom_call.1} parent=1 // pred_check
      _
    $region71: #{tpu_custom_call.1} parent=1 // pred_check_branch
      %2425 = sbr.rel (0) target = $region73
    $region72: #{tpu_custom_call.1} parent=1 // pred_region
      %2426 = dma.done [#allocation4], 128
    $region73: #{tpu_custom_call.1} parent=1 // pred_fallthru
      _
    %2427 = vsyncpa [#allocation3], 1
    %2428 = vsyncpa [#allocation6], 1
    %2429 = vsyncpa [#allocation9], 1
    %2430 = vsyncpa [#allocation4], 1

</llo_original>
